<compile_context>
chip_gen: v5e
topology: v5e:2x2
jax: 0.10.0
libtpu: 0.0.40
codegen_flags: <defaults>
</compile_context>

<pallas_src>
import functools

import jax
import jax.numpy as jnp
from jax.experimental import pallas as pl
from jax.experimental.pallas import tpu as pltpu

IN_FEATS = 75        # atom-feature size hard-coded in nn.Linear(75, dim_embedding)
IN_FEATS_PAD = 128   # K padded to the lane width for the init matmul
DIM_EMB = 128        # dim_embedding
HIDDEN = 128         # hidden_feats = [128, 128, 128]
N_LAYERS = 3
BN_EPS = 1e-5
SRC_TILE = 8         # src-tile width for the running masked max (sublane aligned)
NEG_FILL = -1e30


# ----------------------------- in-kernel math helpers -----------------------------
def _relu(x):
    return jnp.maximum(x, 0.0)


def _gelu_tanh(x):
    # tanh-approx GELU: the transcendental goes to the EUP slot instead of ~10 VALU ops.
    c = 0.7978845608028654  # sqrt(2/pi)
    return 0.5 * x * (1.0 + jnp.tanh(c * (x + 0.044715 * (x * x * x))))


def _masked_max_blockdiag(adj, feats, n_per_graph, graphs_per_group, src_tile=SRC_TILE):
    """h_max[dst] = max_{src in same graph, A[dst,src]>0} feats[src].

    Exploits the per-graph block-diagonal structure of the group adjacency and keeps a
    running (n, D) max accumulator over small src tiles, so no (GN, GN, D) broadcast is
    ever materialized (the old version's dominant VMEM / VPU hazard).
    """
    d = feats.shape[-1]
    outs = []
    for g in range(graphs_per_group):
        r0 = g * n_per_graph
        a_blk = adj[r0:r0 + n_per_graph, r0:r0 + n_per_graph].astype(jnp.float32)
        h_blk = feats[r0:r0 + n_per_graph]                       # (n, D) f32
        acc = jnp.full((n_per_graph, d), NEG_FILL, jnp.float32)
        for s0 in range(0, n_per_graph, src_tile):
            s1 = min(s0 + src_tile, n_per_graph)
            mask = a_blk[:, s0:s1][:, :, None] > 0.5             # (n, ts, 1)
            cand = jnp.where(mask, h_blk[s0:s1][None, :, :], NEG_FILL)  # (n, ts, D)
            acc = jnp.maximum(acc, jnp.max(cand, axis=1))
        outs.append(acc)
    if len(outs) == 1:
        return outs[0]
    return jnp.concatenate(outs, axis=0)


# ----------------------------------- the kernel ------------------------------------
def molgcn_kernel(x_ref, a_ref, w0_ref,
                  w1_ref, b1_ref, s1_ref, t1_ref,
                  w2_ref, b2_ref, s2_ref, t2_ref,
                  wg_ref, bg_ref, wgr_ref, bgr_ref, sg_ref, tg_ref,
                  ws_ref, bs_ref, wsr_ref, bsr_ref, ss_ref, ts_ref,
                  out_ref, *, n_per_graph, graphs_per_group):
    dot = functools.partial(jnp.dot, preferred_element_type=jnp.float32)
    bf16 = jnp.bfloat16

    x = x_ref[...]                       # (GN, 128) bf16 (K padded 75 -> 128)
    adj = a_ref[0]                       # (GN, GN)  bf16, 0/1, block-diag per graph

    # init_transform (no bias; padded rows of w0 are zero)
    h = dot(x, w0_ref[...])              # (GN, 128) f32

    # ---- GCNStem (BatchNorm folded to per-channel scale/shift, eval mode) ----
    h1 = _gelu_tanh(dot(h.astype(bf16), w1_ref[...]) + b1_ref[...])
    h1n = h1 * s1_ref[...] + t1_ref[...]                 # bn1
    h2 = _gelu_tanh(dot(h1n.astype(bf16), w2_ref[...]) + b2_ref[...])
    h2n = h2 * s2_ref[...] + t2_ref[...]                 # bn2
    feats = h2n + h2                                     # "result + x" in GCNStem

    # ---- GCN_muti_out: 3 layers, each producing one output ----
    for i in range(N_LAYERS):
        # gnn_layers[i]: GraphConv(norm='none', relu) + relu residual + BN
        fb = feats.astype(bf16)
        agg = dot(adj, fb)                               # A @ feats (f32 acc)
        gc = _relu(dot(agg.astype(bf16), wg_ref[i]) + bg_ref[i])
        res = _relu(dot(fb, wgr_ref[i]) + bgr_ref[i])
        feats = (gc + res) * sg_ref[i] + tg_ref[i]

        # pool_layers[i]: max over incoming neighbors (per-graph, tiled running max)
        pooled = _masked_max_blockdiag(adj, feats, n_per_graph, graphs_per_group)

        # smooth_layers[i]: GCNLayer(norm='none', relu, residual, bn, dropout=0)
        pb = pooled.astype(bf16)
        sagg = dot(adj, pb)
        sgc = _relu(dot(sagg.astype(bf16), ws_ref[i]) + bs_ref[i])
        sres = _relu(dot(pb, wsr_ref[i]) + bsr_ref[i])
        out_ref[i] = (sgc + sres) * ss_ref[i] + ts_ref[i]


# ----------------------------------- JAX wrapper ------------------------------------
def _graphs_per_group(batch_size, n_per_graph, target_rows=256, max_rows=1024):
    """Pack whole graphs per grid step so the matmul M dim is >= ~256 when possible,
    while keeping the per-step adjacency block small and sublane-aligned."""
    divisors = [g for g in range(1, batch_size + 1) if batch_size % g == 0]
    ok = [g for g in divisors
          if g * n_per_graph <= max(max_rows, n_per_graph)
          and (g == batch_size or (g * n_per_graph) % 8 == 0)]
    if not ok:
        return batch_size
    for g in ok:
        if g * n_per_graph >= target_rows:
            return g
    return ok[-1]


def _cost_numbers(n_nodes, gn, num_groups):
    d = HIDDEN
    mm = lambda m, k, n_: 2 * m * k * n_
    flops = mm(n_nodes, IN_FEATS_PAD, d)                  # init transform
    flops += 2 * mm(n_nodes, d, d)                        # stem linears
    per_layer = 2 * num_groups * mm(gn, gn, d) + 4 * mm(n_nodes, d, d)
    flops += N_LAYERS * per_layer
    transcendentals = 2 * n_nodes * d                     # two tanh-GELUs
    bytes_accessed = (n_nodes * IN_FEATS_PAD * 2                       # x (bf16)
                      + num_groups * gn * gn * 2                       # adj (bf16)
                      + (3 + 4 * N_LAYERS) * d * d * 2                 # weight mats (bf16)
                      + (4 + 4 * N_LAYERS + 4 * N_LAYERS) * d * 4      # biases + BN (f32)
                      + N_LAYERS * n_nodes * d * 4)                    # outputs (f32)
    return flops, transcendentals, bytes_accessed


def molecular_gcn_mutiout(node_feats, adj, params, batch_size, out_feats=HIDDEN):
    (w0, w1, b1, s1, t1, w2, b2, s2, t2,
     wg, bg, wgr, bgr, sg, tg, ws, bs, wsr, bsr, ss, ts) = params

    n_nodes = node_feats.shape[0]
    assert n_nodes % batch_size == 0
    n_per_graph = n_nodes // batch_size

    gpg = _graphs_per_group(batch_size, n_per_graph)
    num_groups = batch_size // gpg
    gn = gpg * n_per_graph

    # Zero-pad K: 75 -> 128 so the init matmul is a clean lane-aligned MXU pass.
    x_pad = jnp.pad(node_feats, ((0, 0), (0, IN_FEATS_PAD - IN_FEATS))).astype(jnp.bfloat16)
    w0_pad = jnp.pad(w0, ((0, IN_FEATS_PAD - IN_FEATS), (0, 0))).astype(jnp.bfloat16)

    # Extract the diagonal per-group blocks of the block-diagonal batched adjacency
    # (0/1 values -> exact in bf16).  Off-diagonal group blocks are all zero.
    adj4 = adj.reshape(num_groups, gn, num_groups, gn)
    idx = jnp.arange(num_groups)
    adj_groups = adj4[idx, :, idx, :].astype(jnp.bfloat16)   # (num_groups, gn, gn)

    bf = lambda w: w.astype(jnp.bfloat16)
    f32 = lambda w: w.astype(jnp.float32)
    kernel_params = (
        w0_pad,
        bf(w1), f32(b1), f32(s1), f32(t1),
        bf(w2), f32(b2), f32(s2), f32(t2),
        bf(wg), f32(bg), bf(wgr), f32(bgr), f32(sg), f32(tg),
        bf(ws), f32(bs), bf(wsr), f32(bsr), f32(ss), f32(ts),
    )

    def resident_spec(arr):
        nd = arr.ndim
        return pl.BlockSpec(arr.shape, lambda g, _nd=nd: (0,) * _nd)

    in_specs = [
        pl.BlockSpec((gn, IN_FEATS_PAD), lambda g: (g, 0)),      # node features, per group
        pl.BlockSpec((1, gn, gn), lambda g: (g, 0, 0)),          # adjacency group block
    ] + [resident_spec(p) for p in kernel_params]                # weights resident in VMEM

    out_specs = pl.BlockSpec((N_LAYERS, gn, HIDDEN), lambda g: (0, g, 0))

    kernel = functools.partial(molgcn_kernel,
                               n_per_graph=n_per_graph,
                               graphs_per_group=gpg)

    flops, transcendentals, bytes_accessed = _cost_numbers(n_nodes, gn, num_groups)

    out = pl.pallas_call(
        kernel,
        out_shape=jax.ShapeDtypeStruct((N_LAYERS, n_nodes, HIDDEN), jnp.float32),
        grid=(num_groups,),
        in_specs=in_specs,
        out_specs=out_specs,
        compiler_params=pltpu.CompilerParams(
            dimension_semantics=("parallel",),        # shard groups across TCs (v7x)
            vmem_limit_bytes=48 * 1024 * 1024),       # explicit budget, fits v7x's 64 MiB
        cost_estimate=pl.CostEstimate(
            flops=flops, transcendentals=transcendentals,
            bytes_accessed=bytes_accessed),
    )(x_pad, adj_groups, *kernel_params)

    # matches: [i.view(batch_size, -1, self.output_feats) for i in muti_feats]
    return [out[i].reshape(batch_size, -1, out_feats) for i in range(N_LAYERS)]


# ----------------------------- pure-JAX f32 reference -----------------------------
def reference(node_feats, adj, params, batch_size, out_feats=HIDDEN):
    from jax.scipy.special import erf
    gelu = lambda x: 0.5 * x * (1.0 + erf(x * 0.7071067811865476))
    relu = lambda x: jnp.maximum(x, 0.0)

    def masked_max(a, h):
        mask = a[:, :, None] > 0.5
        return jnp.max(jnp.where(mask, h[None, :, :], NEG_FILL), axis=1)

    (w0, w1, b1, s1, t1, w2, b2, s2, t2,
     wg, bg, wgr, bgr, sg, tg, ws, bs, wsr, bsr, ss, ts) = params
    h = node_feats @ w0
    h1 = gelu(h @ w1 + b1)
    h1n = h1 * s1 + t1
    h2 = gelu(h1n @ w2 + b2)
    h2n = h2 * s2 + t2
    feats = h2n + h2
    outs = []
    for i in range(N_LAYERS):
        gc = relu((adj @ feats) @ wg[i] + bg[i])
        res = relu(feats @ wgr[i] + bgr[i])
        feats = (gc + res) * sg[i] + tg[i]
        pooled = masked_max(adj, feats)
        sgc = relu((adj @ pooled) @ ws[i] + bs[i])
        sres = relu(pooled @ wsr[i] + bsr[i])
        outs.append(((sgc + sres) * ss[i] + ts[i]).reshape(batch_size, -1, out_feats))
    return outs


# ------------------------------ deterministic parameters ------------------------------
def init_params(key):
    keys = iter(jax.random.split(key, 64))

    def lin_w(fan_in, fan_out):
        b = 1.0 / (fan_in ** 0.5)
        return jax.random.uniform(next(keys), (fan_in, fan_out), jnp.float32, -b, b)

    def lin_b(fan_in, fan_out):
        b = 1.0 / (fan_in ** 0.5)
        return jax.random.uniform(next(keys), (1, fan_out), jnp.float32, -b, b)

    def bn_fold(dim):
        gamma = jax.random.uniform(next(keys), (1, dim), jnp.float32, 0.5, 1.5)
        beta = jax.random.uniform(next(keys), (1, dim), jnp.float32, -0.1, 0.1)
        mean = jax.random.uniform(next(keys), (1, dim), jnp.float32, -0.1, 0.1)
        var = jax.random.uniform(next(keys), (1, dim), jnp.float32, 0.5, 1.5)
        scale = gamma * jax.lax.rsqrt(var + BN_EPS)
        return scale, beta - mean * scale

    w0 = lin_w(IN_FEATS, DIM_EMB)
    w0 = w0.at[:, -1].set(0.0)  # padding=True: init_transform.weight[-1].fill_(0)

    w1 = lin_w(DIM_EMB, DIM_EMB); b1 = lin_b(DIM_EMB, DIM_EMB); s1, t1 = bn_fold(DIM_EMB)
    w2 = lin_w(DIM_EMB, DIM_EMB); b2 = lin_b(DIM_EMB, DIM_EMB); s2, t2 = bn_fold(DIM_EMB)

    wg, bg, wgr, bgr, sg, tg = [], [], [], [], [], []
    ws, bs, wsr, bsr, ss, ts = [], [], [], [], [], []
    for _ in range(N_LAYERS):
        wg.append(lin_w(HIDDEN, HIDDEN)); bg.append(lin_b(HIDDEN, HIDDEN))
        wgr.append(lin_w(HIDDEN, HIDDEN)); bgr.append(lin_b(HIDDEN, HIDDEN))
        s, t = bn_fold(HIDDEN); sg.append(s); tg.append(t)
        ws.append(lin_w(HIDDEN, HIDDEN)); bs.append(lin_b(HIDDEN, HIDDEN))
        wsr.append(lin_w(HIDDEN, HIDDEN)); bsr.append(lin_b(HIDDEN, HIDDEN))
        s, t = bn_fold(HIDDEN); ss.append(s); ts.append(t)

    stk = lambda xs: jnp.stack(xs, axis=0)
    return (w0, w1, b1, s1, t1, w2, b2, s2, t2,
            stk(wg), stk(bg), stk(wgr), stk(bgr), stk(sg), stk(tg),
            stk(ws), stk(bs), stk(wsr), stk(bsr), stk(ss), stk(ts))


def make_batched_graph(batch_size, nodes_per_graph):
    """Block-diagonal adjacency (A[dst, src]): per-graph ring + self loops."""
    n = nodes_per_graph
    idx = jnp.arange(n)
    blk = jnp.zeros((n, n), jnp.float32)
    blk = blk.at[idx, idx].set(1.0)
    blk = blk.at[idx, (idx + 1) % n].set(1.0)
    blk = blk.at[idx, (idx - 1) % n].set(1.0)
    total = batch_size * n
    adj = jnp.zeros((total, total), jnp.float32)
    for g in range(batch_size):
        o = g * n
        adj = adj.at[o:o + n, o:o + n].set(blk)
    return adj


if __name__ == "__main__":
    key = jax.random.PRNGKey(0)
    k_x, k_p = jax.random.split(key)

    batch_size, nodes_per_graph = 2, 8
    n_nodes = batch_size * nodes_per_graph

    node_feats = jax.random.normal(k_x, (n_nodes, IN_FEATS), jnp.float32)
    adj = make_batched_graph(batch_size, nodes_per_graph)
    params = init_params(k_p)

    outs = molecular_gcn_mutiout(node_feats, adj, params, batch_size)
    outs = jax.block_until_ready(outs)

    refs = reference(node_feats, adj, params, batch_size)
    for o, r in zip(outs, refs):
        assert o.shape == (batch_size, nodes_per_graph, HIDDEN), o.shape
        err = float(jnp.max(jnp.abs(o - r)))
        scale = float(jnp.max(jnp.abs(r))) + 1.0
        # bf16 MXU operands (f32 accumulation) + tanh-GELU => small relative error.
        assert err / scale < 3e-2, (err, scale)

    print("KERNEL_OK")
</pallas_src>

<mosaic_0001>
module attributes {stable_mosaic.version = 11 : i64} {
  func.func @molgcn_kernel(%arg0: i32, %arg1: memref<16x128xbf16, #tpu.memory_space<vmem>>, %arg2: memref<1x16x16xbf16, #tpu.memory_space<vmem>>, %arg3: memref<128x128xbf16, #tpu.memory_space<vmem>>, %arg4: memref<128x128xbf16, #tpu.memory_space<vmem>>, %arg5: memref<1x128xf32, #tpu.memory_space<vmem>>, %arg6: memref<1x128xf32, #tpu.memory_space<vmem>>, %arg7: memref<1x128xf32, #tpu.memory_space<vmem>>, %arg8: memref<128x128xbf16, #tpu.memory_space<vmem>>, %arg9: memref<1x128xf32, #tpu.memory_space<vmem>>, %arg10: memref<1x128xf32, #tpu.memory_space<vmem>>, %arg11: memref<1x128xf32, #tpu.memory_space<vmem>>, %arg12: memref<3x128x128xbf16, #tpu.memory_space<vmem>>, %arg13: memref<3x1x128xf32, #tpu.memory_space<vmem>>, %arg14: memref<3x128x128xbf16, #tpu.memory_space<vmem>>, %arg15: memref<3x1x128xf32, #tpu.memory_space<vmem>>, %arg16: memref<3x1x128xf32, #tpu.memory_space<vmem>>, %arg17: memref<3x1x128xf32, #tpu.memory_space<vmem>>, %arg18: memref<3x128x128xbf16, #tpu.memory_space<vmem>>, %arg19: memref<3x1x128xf32, #tpu.memory_space<vmem>>, %arg20: memref<3x128x128xbf16, #tpu.memory_space<vmem>>, %arg21: memref<3x1x128xf32, #tpu.memory_space<vmem>>, %arg22: memref<3x1x128xf32, #tpu.memory_space<vmem>>, %arg23: memref<3x1x128xf32, #tpu.memory_space<vmem>>, %arg24: memref<3x16x128xf32, #tpu.memory_space<vmem>>) attributes {dimension_semantics = [#tpu.dimension_semantics<parallel>], iteration_bounds = array<i64: 1>, scalar_prefetch = 0 : i64, scratch_operands = 0 : i64, tpu.core_type = #tpu.core_type<tc>, window_params = [{transform_indices = @transform_0, window_bounds = array<i64: 16, 128>}, {transform_indices = @transform_1, window_bounds = array<i64: 1, 16, 16>}, {pipeline_mode = #tpu.pipeline_mode<synchronous>, transform_indices = @transform_2, window_bounds = array<i64: 128, 128>}, {pipeline_mode = #tpu.pipeline_mode<synchronous>, transform_indices = @transform_3, window_bounds = array<i64: 128, 128>}, {pipeline_mode = #tpu.pipeline_mode<synchronous>, transform_indices = @transform_4, window_bounds = array<i64: 1, 128>}, {pipeline_mode = #tpu.pipeline_mode<synchronous>, transform_indices = @transform_5, window_bounds = array<i64: 1, 128>}, {pipeline_mode = #tpu.pipeline_mode<synchronous>, transform_indices = @transform_6, window_bounds = array<i64: 1, 128>}, {pipeline_mode = #tpu.pipeline_mode<synchronous>, transform_indices = @transform_7, window_bounds = array<i64: 128, 128>}, {pipeline_mode = #tpu.pipeline_mode<synchronous>, transform_indices = @transform_8, window_bounds = array<i64: 1, 128>}, {pipeline_mode = #tpu.pipeline_mode<synchronous>, transform_indices = @transform_9, window_bounds = array<i64: 1, 128>}, {pipeline_mode = #tpu.pipeline_mode<synchronous>, transform_indices = @transform_10, window_bounds = array<i64: 1, 128>}, {pipeline_mode = #tpu.pipeline_mode<synchronous>, transform_indices = @transform_11, window_bounds = array<i64: 3, 128, 128>}, {pipeline_mode = #tpu.pipeline_mode<synchronous>, transform_indices = @transform_12, window_bounds = array<i64: 3, 1, 128>}, {pipeline_mode = #tpu.pipeline_mode<synchronous>, transform_indices = @transform_13, window_bounds = array<i64: 3, 128, 128>}, {pipeline_mode = #tpu.pipeline_mode<synchronous>, transform_indices = @transform_14, window_bounds = array<i64: 3, 1, 128>}, {pipeline_mode = #tpu.pipeline_mode<synchronous>, transform_indices = @transform_15, window_bounds = array<i64: 3, 1, 128>}, {pipeline_mode = #tpu.pipeline_mode<synchronous>, transform_indices = @transform_16, window_bounds = array<i64: 3, 1, 128>}, {pipeline_mode = #tpu.pipeline_mode<synchronous>, transform_indices = @transform_17, window_bounds = array<i64: 3, 128, 128>}, {pipeline_mode = #tpu.pipeline_mode<synchronous>, transform_indices = @transform_18, window_bounds = array<i64: 3, 1, 128>}, {pipeline_mode = #tpu.pipeline_mode<synchronous>, transform_indices = @transform_19, window_bounds = array<i64: 3, 128, 128>}, {pipeline_mode = #tpu.pipeline_mode<synchronous>, transform_indices = @transform_20, window_bounds = array<i64: 3, 1, 128>}, {pipeline_mode = #tpu.pipeline_mode<synchronous>, transform_indices = @transform_21, window_bounds = array<i64: 3, 1, 128>}, {pipeline_mode = #tpu.pipeline_mode<synchronous>, transform_indices = @transform_22, window_bounds = array<i64: 3, 1, 128>}, {transform_indices = @transform_23, window_bounds = array<i64: 3, 16, 128>}]} {
    %c0 = arith.constant 0 : index
    %c0_0 = arith.constant 0 : index
    %0 = vector.load %arg1[%c0, %c0_0] : memref<16x128xbf16, #tpu.memory_space<vmem>>, vector<16x128xbf16>
    %c0_1 = arith.constant 0 : index
    %c0_2 = arith.constant 0 : index
    %c0_3 = arith.constant 0 : index
    %1 = vector.load %arg2[%c0_1, %c0_2, %c0_3] : memref<1x16x16xbf16, #tpu.memory_space<vmem>>, vector<1x16x16xbf16>
    %2 = vector.shape_cast %1 : vector<1x16x16xbf16> to vector<16x16xbf16>
    %c0_4 = arith.constant 0 : index
    %c0_5 = arith.constant 0 : index
    %3 = vector.load %arg3[%c0_4, %c0_5] : memref<128x128xbf16, #tpu.memory_space<vmem>>, vector<128x128xbf16>
    %cst = arith.constant dense<0.000000e+00> : vector<16x128xf32>
    %4 = tpu.matmul %0, %3, %cst {dimension_numbers = #tpu.dot_dimension_numbers<[1], [0], [0], [1], [0, 0, 1, 1], [], []>} : vector<16x128xbf16>, vector<128x128xbf16>, vector<16x128xf32> -> vector<16x128xf32>
    %5 = arith.truncf %4 : vector<16x128xf32> to vector<16x128xbf16>
    %c0_6 = arith.constant 0 : index
    %c0_7 = arith.constant 0 : index
    %6 = vector.load %arg4[%c0_6, %c0_7] : memref<128x128xbf16, #tpu.memory_space<vmem>>, vector<128x128xbf16>
    %cst_8 = arith.constant dense<0.000000e+00> : vector<16x128xf32>
    %7 = tpu.matmul %5, %6, %cst_8 {dimension_numbers = #tpu.dot_dimension_numbers<[1], [0], [0], [1], [0, 0, 1, 1], [], []>} : vector<16x128xbf16>, vector<128x128xbf16>, vector<16x128xf32> -> vector<16x128xf32>
    %c0_9 = arith.constant 0 : index
    %c0_10 = arith.constant 0 : index
    %8 = vector.load %arg5[%c0_9, %c0_10] : memref<1x128xf32, #tpu.memory_space<vmem>>, vector<1x128xf32>
    %9 = vector.broadcast %8 : vector<1x128xf32> to vector<16x128xf32>
    %10 = arith.addf %7, %9 : vector<16x128xf32>
    %cst_11 = arith.constant 5.000000e-01 : f32
    %11 = vector.broadcast %cst_11 : f32 to vector<16x128xf32>
    %12 = arith.mulf %11, %10 : vector<16x128xf32>
    %13 = arith.mulf %10, %10 : vector<16x128xf32>
    %14 = arith.mulf %13, %10 : vector<16x128xf32>
    %cst_12 = arith.constant 4.471500e-02 : f32
    %15 = vector.broadcast %cst_12 : f32 to vector<16x128xf32>
    %16 = arith.mulf %15, %14 : vector<16x128xf32>
    %17 = arith.addf %10, %16 : vector<16x128xf32>
    %cst_13 = arith.constant 0.797884583 : f32
    %18 = vector.broadcast %cst_13 : f32 to vector<16x128xf32>
    %19 = arith.mulf %18, %17 : vector<16x128xf32>
    %20 = math.tanh %19 : vector<16x128xf32>
    %cst_14 = arith.constant 1.000000e+00 : f32
    %21 = vector.broadcast %cst_14 : f32 to vector<16x128xf32>
    %22 = arith.addf %21, %20 : vector<16x128xf32>
    %23 = arith.mulf %12, %22 : vector<16x128xf32>
    %c0_15 = arith.constant 0 : index
    %c0_16 = arith.constant 0 : index
    %24 = vector.load %arg6[%c0_15, %c0_16] : memref<1x128xf32, #tpu.memory_space<vmem>>, vector<1x128xf32>
    %25 = vector.broadcast %24 : vector<1x128xf32> to vector<16x128xf32>
    %26 = arith.mulf %23, %25 : vector<16x128xf32>
    %c0_17 = arith.constant 0 : index
    %c0_18 = arith.constant 0 : index
    %27 = vector.load %arg7[%c0_17, %c0_18] : memref<1x128xf32, #tpu.memory_space<vmem>>, vector<1x128xf32>
    %28 = vector.broadcast %27 : vector<1x128xf32> to vector<16x128xf32>
    %29 = arith.addf %26, %28 : vector<16x128xf32>
    %30 = arith.truncf %29 : vector<16x128xf32> to vector<16x128xbf16>
    %c0_19 = arith.constant 0 : index
    %c0_20 = arith.constant 0 : index
    %31 = vector.load %arg8[%c0_19, %c0_20] : memref<128x128xbf16, #tpu.memory_space<vmem>>, vector<128x128xbf16>
    %cst_21 = arith.constant dense<0.000000e+00> : vector<16x128xf32>
    %32 = tpu.matmul %30, %31, %cst_21 {dimension_numbers = #tpu.dot_dimension_numbers<[1], [0], [0], [1], [0, 0, 1, 1], [], []>} : vector<16x128xbf16>, vector<128x128xbf16>, vector<16x128xf32> -> vector<16x128xf32>
    %c0_22 = arith.constant 0 : index
    %c0_23 = arith.constant 0 : index
    %33 = vector.load %arg9[%c0_22, %c0_23] : memref<1x128xf32, #tpu.memory_space<vmem>>, vector<1x128xf32>
    %34 = vector.broadcast %33 : vector<1x128xf32> to vector<16x128xf32>
    %35 = arith.addf %32, %34 : vector<16x128xf32>
    %cst_24 = arith.constant 5.000000e-01 : f32
    %36 = vector.broadcast %cst_24 : f32 to vector<16x128xf32>
    %37 = arith.mulf %36, %35 : vector<16x128xf32>
    %38 = arith.mulf %35, %35 : vector<16x128xf32>
    %39 = arith.mulf %38, %35 : vector<16x128xf32>
    %cst_25 = arith.constant 4.471500e-02 : f32
    %40 = vector.broadcast %cst_25 : f32 to vector<16x128xf32>
    %41 = arith.mulf %40, %39 : vector<16x128xf32>
    %42 = arith.addf %35, %41 : vector<16x128xf32>
    %cst_26 = arith.constant 0.797884583 : f32
    %43 = vector.broadcast %cst_26 : f32 to vector<16x128xf32>
    %44 = arith.mulf %43, %42 : vector<16x128xf32>
    %45 = math.tanh %44 : vector<16x128xf32>
    %cst_27 = arith.constant 1.000000e+00 : f32
    %46 = vector.broadcast %cst_27 : f32 to vector<16x128xf32>
    %47 = arith.addf %46, %45 : vector<16x128xf32>
    %48 = arith.mulf %37, %47 : vector<16x128xf32>
    %c0_28 = arith.constant 0 : index
    %c0_29 = arith.constant 0 : index
    %49 = vector.load %arg10[%c0_28, %c0_29] : memref<1x128xf32, #tpu.memory_space<vmem>>, vector<1x128xf32>
    %50 = vector.broadcast %49 : vector<1x128xf32> to vector<16x128xf32>
    %51 = arith.mulf %48, %50 : vector<16x128xf32>
    %c0_30 = arith.constant 0 : index
    %c0_31 = arith.constant 0 : index
    %52 = vector.load %arg11[%c0_30, %c0_31] : memref<1x128xf32, #tpu.memory_space<vmem>>, vector<1x128xf32>
    %53 = vector.broadcast %52 : vector<1x128xf32> to vector<16x128xf32>
    %54 = arith.addf %51, %53 : vector<16x128xf32>
    %55 = arith.addf %54, %48 : vector<16x128xf32>
    %56 = arith.truncf %55 : vector<16x128xf32> to vector<16x128xbf16>
    %cst_32 = arith.constant dense<0.000000e+00> : vector<16x128xf32>
    %57 = tpu.matmul %2, %56, %cst_32 {dimension_numbers = #tpu.dot_dimension_numbers<[1], [0], [0], [1], [0, 0, 1, 1], [], []>} : vector<16x16xbf16>, vector<16x128xbf16>, vector<16x128xf32> -> vector<16x128xf32>
    %58 = arith.truncf %57 : vector<16x128xf32> to vector<16x128xbf16>
    %c0_33 = arith.constant 0 : index
    %c0_34 = arith.constant 0 : index
    %c0_35 = arith.constant 0 : index
    %59 = vector.load %arg12[%c0_33, %c0_34, %c0_35] : memref<3x128x128xbf16, #tpu.memory_space<vmem>>, vector<1x128x128xbf16>
    %60 = vector.shape_cast %59 : vector<1x128x128xbf16> to vector<128x128xbf16>
    %cst_36 = arith.constant dense<0.000000e+00> : vector<16x128xf32>
    %61 = tpu.matmul %58, %60, %cst_36 {dimension_numbers = #tpu.dot_dimension_numbers<[1], [0], [0], [1], [0, 0, 1, 1], [], []>} : vector<16x128xbf16>, vector<128x128xbf16>, vector<16x128xf32> -> vector<16x128xf32>
    %c0_37 = arith.constant 0 : index
    %c0_38 = arith.constant 0 : index
    %c0_39 = arith.constant 0 : index
    %62 = vector.load %arg13[%c0_37, %c0_38, %c0_39] : memref<3x1x128xf32, #tpu.memory_space<vmem>>, vector<1x1x128xf32>
    %63 = vector.shape_cast %62 : vector<1x1x128xf32> to vector<1x128xf32>
    %64 = vector.broadcast %63 : vector<1x128xf32> to vector<16x128xf32>
    %65 = arith.addf %61, %64 : vector<16x128xf32>
    %cst_40 = arith.constant 0.000000e+00 : f32
    %66 = vector.broadcast %cst_40 : f32 to vector<16x128xf32>
    %67 = arith.maximumf %65, %66 : vector<16x128xf32>
    %c0_41 = arith.constant 0 : index
    %c0_42 = arith.constant 0 : index
    %c0_43 = arith.constant 0 : index
    %68 = vector.load %arg14[%c0_41, %c0_42, %c0_43] : memref<3x128x128xbf16, #tpu.memory_space<vmem>>, vector<1x128x128xbf16>
    %69 = vector.shape_cast %68 : vector<1x128x128xbf16> to vector<128x128xbf16>
    %cst_44 = arith.constant dense<0.000000e+00> : vector<16x128xf32>
    %70 = tpu.matmul %56, %69, %cst_44 {dimension_numbers = #tpu.dot_dimension_numbers<[1], [0], [0], [1], [0, 0, 1, 1], [], []>} : vector<16x128xbf16>, vector<128x128xbf16>, vector<16x128xf32> -> vector<16x128xf32>
    %c0_45 = arith.constant 0 : index
    %c0_46 = arith.constant 0 : index
    %c0_47 = arith.constant 0 : index
    %71 = vector.load %arg15[%c0_45, %c0_46, %c0_47] : memref<3x1x128xf32, #tpu.memory_space<vmem>>, vector<1x1x128xf32>
    %72 = vector.shape_cast %71 : vector<1x1x128xf32> to vector<1x128xf32>
    %73 = vector.broadcast %72 : vector<1x128xf32> to vector<16x128xf32>
    %74 = arith.addf %70, %73 : vector<16x128xf32>
    %cst_48 = arith.constant 0.000000e+00 : f32
    %75 = vector.broadcast %cst_48 : f32 to vector<16x128xf32>
    %76 = arith.maximumf %74, %75 : vector<16x128xf32>
    %77 = arith.addf %67, %76 : vector<16x128xf32>
    %c0_49 = arith.constant 0 : index
    %c0_50 = arith.constant 0 : index
    %c0_51 = arith.constant 0 : index
    %78 = vector.load %arg16[%c0_49, %c0_50, %c0_51] : memref<3x1x128xf32, #tpu.memory_space<vmem>>, vector<1x1x128xf32>
    %79 = vector.shape_cast %78 : vector<1x1x128xf32> to vector<1x128xf32>
    %80 = vector.broadcast %79 : vector<1x128xf32> to vector<16x128xf32>
    %81 = arith.mulf %77, %80 : vector<16x128xf32>
    %c0_52 = arith.constant 0 : index
    %c0_53 = arith.constant 0 : index
    %c0_54 = arith.constant 0 : index
    %82 = vector.load %arg17[%c0_52, %c0_53, %c0_54] : memref<3x1x128xf32, #tpu.memory_space<vmem>>, vector<1x1x128xf32>
    %83 = vector.shape_cast %82 : vector<1x1x128xf32> to vector<1x128xf32>
    %84 = vector.broadcast %83 : vector<1x128xf32> to vector<16x128xf32>
    %85 = arith.addf %81, %84 : vector<16x128xf32>
    %86 = vector.extract_strided_slice %2 {offsets = [0, 0], sizes = [8, 8], strides = [1, 1]} : vector<16x16xbf16> to vector<8x8xbf16>
    %87 = arith.extf %86 : vector<8x8xbf16> to vector<8x8xf32>
    %88 = vector.extract_strided_slice %85 {offsets = [0, 0], sizes = [8, 128], strides = [1, 1]} : vector<16x128xf32> to vector<8x128xf32>
    %cst_55 = arith.constant -1.000000e+30 : f32
    %89 = vector.broadcast %cst_55 : f32 to vector<8x128xf32>
    %90 = vector.shape_cast %87 : vector<8x8xf32> to vector<8x8x1xf32>
    %cst_56 = arith.constant 5.000000e-01 : f32
    %91 = vector.broadcast %cst_56 : f32 to vector<8x8x1xf32>
    %92 = arith.cmpf ogt, %90, %91 : vector<8x8x1xf32>
    %93 = vector.shape_cast %88 : vector<8x128xf32> to vector<1x8x128xf32>
    %cst_57 = arith.constant -1.000000e+30 : f32
    %94 = vector.shape_cast %92 : vector<8x8x1xi1> to vector<8x8x1xi1>
    %95 = vector.broadcast %94 : vector<8x8x1xi1> to vector<8x8x128xi1>
    %96 = vector.shape_cast %93 : vector<1x8x128xf32> to vector<1x8x128xf32>
    %97 = vector.broadcast %96 : vector<1x8x128xf32> to vector<8x8x128xf32>
    %98 = vector.broadcast %cst_57 : f32 to vector<8x8x128xf32>
    %99 = arith.select %95, %97, %98 : vector<8x8x128xi1>, vector<8x8x128xf32>
    %cst_58 = arith.constant dense<0xFF800000> : vector<8x128xf32>
    %100 = vector.multi_reduction <maximumf>, %99, %cst_58 [1] : vector<8x8x128xf32> to vector<8x128xf32>
    %101 = arith.maximumf %89, %100 : vector<8x128xf32>
    %102 = vector.extract_strided_slice %2 {offsets = [8, 8], sizes = [8, 8], strides = [1, 1]} : vector<16x16xbf16> to vector<8x8xbf16>
    %103 = arith.extf %102 : vector<8x8xbf16> to vector<8x8xf32>
    %104 = vector.extract_strided_slice %85 {offsets = [8, 0], sizes = [8, 128], strides = [1, 1]} : vector<16x128xf32> to vector<8x128xf32>
    %cst_59 = arith.constant -1.000000e+30 : f32
    %105 = vector.broadcast %cst_59 : f32 to vector<8x128xf32>
    %106 = vector.shape_cast %103 : vector<8x8xf32> to vector<8x8x1xf32>
    %cst_60 = arith.constant 5.000000e-01 : f32
    %107 = vector.broadcast %cst_60 : f32 to vector<8x8x1xf32>
    %108 = arith.cmpf ogt, %106, %107 : vector<8x8x1xf32>
    %109 = vector.shape_cast %104 : vector<8x128xf32> to vector<1x8x128xf32>
    %cst_61 = arith.constant -1.000000e+30 : f32
    %110 = vector.shape_cast %108 : vector<8x8x1xi1> to vector<8x8x1xi1>
    %111 = vector.broadcast %110 : vector<8x8x1xi1> to vector<8x8x128xi1>
    %112 = vector.shape_cast %109 : vector<1x8x128xf32> to vector<1x8x128xf32>
    %113 = vector.broadcast %112 : vector<1x8x128xf32> to vector<8x8x128xf32>
    %114 = vector.broadcast %cst_61 : f32 to vector<8x8x128xf32>
    %115 = arith.select %111, %113, %114 : vector<8x8x128xi1>, vector<8x8x128xf32>
    %cst_62 = arith.constant dense<0xFF800000> : vector<8x128xf32>
    %116 = vector.multi_reduction <maximumf>, %115, %cst_62 [1] : vector<8x8x128xf32> to vector<8x128xf32>
    %117 = arith.maximumf %105, %116 : vector<8x128xf32>
    %118 = tpu.concatenate %101, %117 in 0 : vector<8x128xf32>, vector<8x128xf32> -> vector<16x128xf32>
    %119 = arith.truncf %118 : vector<16x128xf32> to vector<16x128xbf16>
    %cst_63 = arith.constant dense<0.000000e+00> : vector<16x128xf32>
    %120 = tpu.matmul %2, %119, %cst_63 {dimension_numbers = #tpu.dot_dimension_numbers<[1], [0], [0], [1], [0, 0, 1, 1], [], []>} : vector<16x16xbf16>, vector<16x128xbf16>, vector<16x128xf32> -> vector<16x128xf32>
    %121 = arith.truncf %120 : vector<16x128xf32> to vector<16x128xbf16>
    %c0_64 = arith.constant 0 : index
    %c0_65 = arith.constant 0 : index
    %c0_66 = arith.constant 0 : index
    %122 = vector.load %arg18[%c0_64, %c0_65, %c0_66] : memref<3x128x128xbf16, #tpu.memory_space<vmem>>, vector<1x128x128xbf16>
    %123 = vector.shape_cast %122 : vector<1x128x128xbf16> to vector<128x128xbf16>
    %cst_67 = arith.constant dense<0.000000e+00> : vector<16x128xf32>
    %124 = tpu.matmul %121, %123, %cst_67 {dimension_numbers = #tpu.dot_dimension_numbers<[1], [0], [0], [1], [0, 0, 1, 1], [], []>} : vector<16x128xbf16>, vector<128x128xbf16>, vector<16x128xf32> -> vector<16x128xf32>
    %c0_68 = arith.constant 0 : index
    %c0_69 = arith.constant 0 : index
    %c0_70 = arith.constant 0 : index
    %125 = vector.load %arg19[%c0_68, %c0_69, %c0_70] : memref<3x1x128xf32, #tpu.memory_space<vmem>>, vector<1x1x128xf32>
    %126 = vector.shape_cast %125 : vector<1x1x128xf32> to vector<1x128xf32>
    %127 = vector.broadcast %126 : vector<1x128xf32> to vector<16x128xf32>
    %128 = arith.addf %124, %127 : vector<16x128xf32>
    %cst_71 = arith.constant 0.000000e+00 : f32
    %129 = vector.broadcast %cst_71 : f32 to vector<16x128xf32>
    %130 = arith.maximumf %128, %129 : vector<16x128xf32>
    %c0_72 = arith.constant 0 : index
    %c0_73 = arith.constant 0 : index
    %c0_74 = arith.constant 0 : index
    %131 = vector.load %arg20[%c0_72, %c0_73, %c0_74] : memref<3x128x128xbf16, #tpu.memory_space<vmem>>, vector<1x128x128xbf16>
    %132 = vector.shape_cast %131 : vector<1x128x128xbf16> to vector<128x128xbf16>
    %cst_75 = arith.constant dense<0.000000e+00> : vector<16x128xf32>
    %133 = tpu.matmul %119, %132, %cst_75 {dimension_numbers = #tpu.dot_dimension_numbers<[1], [0], [0], [1], [0, 0, 1, 1], [], []>} : vector<16x128xbf16>, vector<128x128xbf16>, vector<16x128xf32> -> vector<16x128xf32>
    %c0_76 = arith.constant 0 : index
    %c0_77 = arith.constant 0 : index
    %c0_78 = arith.constant 0 : index
    %134 = vector.load %arg21[%c0_76, %c0_77, %c0_78] : memref<3x1x128xf32, #tpu.memory_space<vmem>>, vector<1x1x128xf32>
    %135 = vector.shape_cast %134 : vector<1x1x128xf32> to vector<1x128xf32>
    %136 = vector.broadcast %135 : vector<1x128xf32> to vector<16x128xf32>
    %137 = arith.addf %133, %136 : vector<16x128xf32>
    %cst_79 = arith.constant 0.000000e+00 : f32
    %138 = vector.broadcast %cst_79 : f32 to vector<16x128xf32>
    %139 = arith.maximumf %137, %138 : vector<16x128xf32>
    %140 = arith.addf %130, %139 : vector<16x128xf32>
    %c0_80 = arith.constant 0 : index
    %c0_81 = arith.constant 0 : index
    %c0_82 = arith.constant 0 : index
    %141 = vector.load %arg22[%c0_80, %c0_81, %c0_82] : memref<3x1x128xf32, #tpu.memory_space<vmem>>, vector<1x1x128xf32>
    %142 = vector.shape_cast %141 : vector<1x1x128xf32> to vector<1x128xf32>
    %143 = vector.broadcast %142 : vector<1x128xf32> to vector<16x128xf32>
    %144 = arith.mulf %140, %143 : vector<16x128xf32>
    %c0_83 = arith.constant 0 : index
    %c0_84 = arith.constant 0 : index
    %c0_85 = arith.constant 0 : index
    %145 = vector.load %arg23[%c0_83, %c0_84, %c0_85] : memref<3x1x128xf32, #tpu.memory_space<vmem>>, vector<1x1x128xf32>
    %146 = vector.shape_cast %145 : vector<1x1x128xf32> to vector<1x128xf32>
    %147 = vector.broadcast %146 : vector<1x128xf32> to vector<16x128xf32>
    %148 = arith.addf %144, %147 : vector<16x128xf32>
    %c0_86 = arith.constant 0 : index
    %c0_87 = arith.constant 0 : index
    %c0_88 = arith.constant 0 : index
    %149 = vector.load %arg24[%c0_86, %c0_87, %c0_88] : memref<3x16x128xf32, #tpu.memory_space<vmem>>, vector<1x16x128xf32>
    %150 = vector.shape_cast %149 : vector<1x16x128xf32> to vector<16x128xf32>
    %151 = vector.shape_cast %148 : vector<16x128xf32> to vector<1x16x128xf32>
    tpu.vector_store %arg24[%c0_86, %c0_87, %c0_88], %151 {strides = array<i32>} : memref<3x16x128xf32, #tpu.memory_space<vmem>>, vector<1x16x128xf32>,
    %152 = arith.truncf %85 : vector<16x128xf32> to vector<16x128xbf16>
    %cst_89 = arith.constant dense<0.000000e+00> : vector<16x128xf32>
    %153 = tpu.matmul %2, %152, %cst_89 {dimension_numbers = #tpu.dot_dimension_numbers<[1], [0], [0], [1], [0, 0, 1, 1], [], []>} : vector<16x16xbf16>, vector<16x128xbf16>, vector<16x128xf32> -> vector<16x128xf32>
    %154 = arith.truncf %153 : vector<16x128xf32> to vector<16x128xbf16>
    %c1 = arith.constant 1 : index
    %c0_90 = arith.constant 0 : index
    %c0_91 = arith.constant 0 : index
    %155 = vector.load %arg12[%c1, %c0_90, %c0_91] : memref<3x128x128xbf16, #tpu.memory_space<vmem>>, vector<1x128x128xbf16>
    %156 = vector.shape_cast %155 : vector<1x128x128xbf16> to vector<128x128xbf16>
    %cst_92 = arith.constant dense<0.000000e+00> : vector<16x128xf32>
    %157 = tpu.matmul %154, %156, %cst_92 {dimension_numbers = #tpu.dot_dimension_numbers<[1], [0], [0], [1], [0, 0, 1, 1], [], []>} : vector<16x128xbf16>, vector<128x128xbf16>, vector<16x128xf32> -> vector<16x128xf32>
    %c1_93 = arith.constant 1 : index
    %c0_94 = arith.constant 0 : index
    %c0_95 = arith.constant 0 : index
    %158 = vector.load %arg13[%c1_93, %c0_94, %c0_95] : memref<3x1x128xf32, #tpu.memory_space<vmem>>, vector<1x1x128xf32>
    %159 = vector.shape_cast %158 : vector<1x1x128xf32> to vector<1x128xf32>
    %160 = vector.broadcast %159 : vector<1x128xf32> to vector<16x128xf32>
    %161 = arith.addf %157, %160 : vector<16x128xf32>
    %cst_96 = arith.constant 0.000000e+00 : f32
    %162 = vector.broadcast %cst_96 : f32 to vector<16x128xf32>
    %163 = arith.maximumf %161, %162 : vector<16x128xf32>
    %c1_97 = arith.constant 1 : index
    %c0_98 = arith.constant 0 : index
    %c0_99 = arith.constant 0 : index
    %164 = vector.load %arg14[%c1_97, %c0_98, %c0_99] : memref<3x128x128xbf16, #tpu.memory_space<vmem>>, vector<1x128x128xbf16>
    %165 = vector.shape_cast %164 : vector<1x128x128xbf16> to vector<128x128xbf16>
    %cst_100 = arith.constant dense<0.000000e+00> : vector<16x128xf32>
    %166 = tpu.matmul %152, %165, %cst_100 {dimension_numbers = #tpu.dot_dimension_numbers<[1], [0], [0], [1], [0, 0, 1, 1], [], []>} : vector<16x128xbf16>, vector<128x128xbf16>, vector<16x128xf32> -> vector<16x128xf32>
    %c1_101 = arith.constant 1 : index
    %c0_102 = arith.constant 0 : index
    %c0_103 = arith.constant 0 : index
    %167 = vector.load %arg15[%c1_101, %c0_102, %c0_103] : memref<3x1x128xf32, #tpu.memory_space<vmem>>, vector<1x1x128xf32>
    %168 = vector.shape_cast %167 : vector<1x1x128xf32> to vector<1x128xf32>
    %169 = vector.broadcast %168 : vector<1x128xf32> to vector<16x128xf32>
    %170 = arith.addf %166, %169 : vector<16x128xf32>
    %cst_104 = arith.constant 0.000000e+00 : f32
    %171 = vector.broadcast %cst_104 : f32 to vector<16x128xf32>
    %172 = arith.maximumf %170, %171 : vector<16x128xf32>
    %173 = arith.addf %163, %172 : vector<16x128xf32>
    %c1_105 = arith.constant 1 : index
    %c0_106 = arith.constant 0 : index
    %c0_107 = arith.constant 0 : index
    %174 = vector.load %arg16[%c1_105, %c0_106, %c0_107] : memref<3x1x128xf32, #tpu.memory_space<vmem>>, vector<1x1x128xf32>
    %175 = vector.shape_cast %174 : vector<1x1x128xf32> to vector<1x128xf32>
    %176 = vector.broadcast %175 : vector<1x128xf32> to vector<16x128xf32>
    %177 = arith.mulf %173, %176 : vector<16x128xf32>
    %c1_108 = arith.constant 1 : index
    %c0_109 = arith.constant 0 : index
    %c0_110 = arith.constant 0 : index
    %178 = vector.load %arg17[%c1_108, %c0_109, %c0_110] : memref<3x1x128xf32, #tpu.memory_space<vmem>>, vector<1x1x128xf32>
    %179 = vector.shape_cast %178 : vector<1x1x128xf32> to vector<1x128xf32>
    %180 = vector.broadcast %179 : vector<1x128xf32> to vector<16x128xf32>
    %181 = arith.addf %177, %180 : vector<16x128xf32>
    %182 = vector.extract_strided_slice %2 {offsets = [0, 0], sizes = [8, 8], strides = [1, 1]} : vector<16x16xbf16> to vector<8x8xbf16>
    %183 = arith.extf %182 : vector<8x8xbf16> to vector<8x8xf32>
    %184 = vector.extract_strided_slice %181 {offsets = [0, 0], sizes = [8, 128], strides = [1, 1]} : vector<16x128xf32> to vector<8x128xf32>
    %cst_111 = arith.constant -1.000000e+30 : f32
    %185 = vector.broadcast %cst_111 : f32 to vector<8x128xf32>
    %186 = vector.shape_cast %183 : vector<8x8xf32> to vector<8x8x1xf32>
    %cst_112 = arith.constant 5.000000e-01 : f32
    %187 = vector.broadcast %cst_112 : f32 to vector<8x8x1xf32>
    %188 = arith.cmpf ogt, %186, %187 : vector<8x8x1xf32>
    %189 = vector.shape_cast %184 : vector<8x128xf32> to vector<1x8x128xf32>
    %cst_113 = arith.constant -1.000000e+30 : f32
    %190 = vector.shape_cast %188 : vector<8x8x1xi1> to vector<8x8x1xi1>
    %191 = vector.broadcast %190 : vector<8x8x1xi1> to vector<8x8x128xi1>
    %192 = vector.shape_cast %189 : vector<1x8x128xf32> to vector<1x8x128xf32>
    %193 = vector.broadcast %192 : vector<1x8x128xf32> to vector<8x8x128xf32>
    %194 = vector.broadcast %cst_113 : f32 to vector<8x8x128xf32>
    %195 = arith.select %191, %193, %194 : vector<8x8x128xi1>, vector<8x8x128xf32>
    %cst_114 = arith.constant dense<0xFF800000> : vector<8x128xf32>
    %196 = vector.multi_reduction <maximumf>, %195, %cst_114 [1] : vector<8x8x128xf32> to vector<8x128xf32>
    %197 = arith.maximumf %185, %196 : vector<8x128xf32>
    %198 = vector.extract_strided_slice %2 {offsets = [8, 8], sizes = [8, 8], strides = [1, 1]} : vector<16x16xbf16> to vector<8x8xbf16>
    %199 = arith.extf %198 : vector<8x8xbf16> to vector<8x8xf32>
    %200 = vector.extract_strided_slice %181 {offsets = [8, 0], sizes = [8, 128], strides = [1, 1]} : vector<16x128xf32> to vector<8x128xf32>
    %cst_115 = arith.constant -1.000000e+30 : f32
    %201 = vector.broadcast %cst_115 : f32 to vector<8x128xf32>
    %202 = vector.shape_cast %199 : vector<8x8xf32> to vector<8x8x1xf32>
    %cst_116 = arith.constant 5.000000e-01 : f32
    %203 = vector.broadcast %cst_116 : f32 to vector<8x8x1xf32>
    %204 = arith.cmpf ogt, %202, %203 : vector<8x8x1xf32>
    %205 = vector.shape_cast %200 : vector<8x128xf32> to vector<1x8x128xf32>
    %cst_117 = arith.constant -1.000000e+30 : f32
    %206 = vector.shape_cast %204 : vector<8x8x1xi1> to vector<8x8x1xi1>
    %207 = vector.broadcast %206 : vector<8x8x1xi1> to vector<8x8x128xi1>
    %208 = vector.shape_cast %205 : vector<1x8x128xf32> to vector<1x8x128xf32>
    %209 = vector.broadcast %208 : vector<1x8x128xf32> to vector<8x8x128xf32>
    %210 = vector.broadcast %cst_117 : f32 to vector<8x8x128xf32>
    %211 = arith.select %207, %209, %210 : vector<8x8x128xi1>, vector<8x8x128xf32>
    %cst_118 = arith.constant dense<0xFF800000> : vector<8x128xf32>
    %212 = vector.multi_reduction <maximumf>, %211, %cst_118 [1] : vector<8x8x128xf32> to vector<8x128xf32>
    %213 = arith.maximumf %201, %212 : vector<8x128xf32>
    %214 = tpu.concatenate %197, %213 in 0 : vector<8x128xf32>, vector<8x128xf32> -> vector<16x128xf32>
    %215 = arith.truncf %214 : vector<16x128xf32> to vector<16x128xbf16>
    %cst_119 = arith.constant dense<0.000000e+00> : vector<16x128xf32>
    %216 = tpu.matmul %2, %215, %cst_119 {dimension_numbers = #tpu.dot_dimension_numbers<[1], [0], [0], [1], [0, 0, 1, 1], [], []>} : vector<16x16xbf16>, vector<16x128xbf16>, vector<16x128xf32> -> vector<16x128xf32>
    %217 = arith.truncf %216 : vector<16x128xf32> to vector<16x128xbf16>
    %c1_120 = arith.constant 1 : index
    %c0_121 = arith.constant 0 : index
    %c0_122 = arith.constant 0 : index
    %218 = vector.load %arg18[%c1_120, %c0_121, %c0_122] : memref<3x128x128xbf16, #tpu.memory_space<vmem>>, vector<1x128x128xbf16>
    %219 = vector.shape_cast %218 : vector<1x128x128xbf16> to vector<128x128xbf16>
    %cst_123 = arith.constant dense<0.000000e+00> : vector<16x128xf32>
    %220 = tpu.matmul %217, %219, %cst_123 {dimension_numbers = #tpu.dot_dimension_numbers<[1], [0], [0], [1], [0, 0, 1, 1], [], []>} : vector<16x128xbf16>, vector<128x128xbf16>, vector<16x128xf32> -> vector<16x128xf32>
    %c1_124 = arith.constant 1 : index
    %c0_125 = arith.constant 0 : index
    %c0_126 = arith.constant 0 : index
    %221 = vector.load %arg19[%c1_124, %c0_125, %c0_126] : memref<3x1x128xf32, #tpu.memory_space<vmem>>, vector<1x1x128xf32>
    %222 = vector.shape_cast %221 : vector<1x1x128xf32> to vector<1x128xf32>
    %223 = vector.broadcast %222 : vector<1x128xf32> to vector<16x128xf32>
    %224 = arith.addf %220, %223 : vector<16x128xf32>
    %cst_127 = arith.constant 0.000000e+00 : f32
    %225 = vector.broadcast %cst_127 : f32 to vector<16x128xf32>
    %226 = arith.maximumf %224, %225 : vector<16x128xf32>
    %c1_128 = arith.constant 1 : index
    %c0_129 = arith.constant 0 : index
    %c0_130 = arith.constant 0 : index
    %227 = vector.load %arg20[%c1_128, %c0_129, %c0_130] : memref<3x128x128xbf16, #tpu.memory_space<vmem>>, vector<1x128x128xbf16>
    %228 = vector.shape_cast %227 : vector<1x128x128xbf16> to vector<128x128xbf16>
    %cst_131 = arith.constant dense<0.000000e+00> : vector<16x128xf32>
    %229 = tpu.matmul %215, %228, %cst_131 {dimension_numbers = #tpu.dot_dimension_numbers<[1], [0], [0], [1], [0, 0, 1, 1], [], []>} : vector<16x128xbf16>, vector<128x128xbf16>, vector<16x128xf32> -> vector<16x128xf32>
    %c1_132 = arith.constant 1 : index
    %c0_133 = arith.constant 0 : index
    %c0_134 = arith.constant 0 : index
    %230 = vector.load %arg21[%c1_132, %c0_133, %c0_134] : memref<3x1x128xf32, #tpu.memory_space<vmem>>, vector<1x1x128xf32>
    %231 = vector.shape_cast %230 : vector<1x1x128xf32> to vector<1x128xf32>
    %232 = vector.broadcast %231 : vector<1x128xf32> to vector<16x128xf32>
    %233 = arith.addf %229, %232 : vector<16x128xf32>
    %cst_135 = arith.constant 0.000000e+00 : f32
    %234 = vector.broadcast %cst_135 : f32 to vector<16x128xf32>
    %235 = arith.maximumf %233, %234 : vector<16x128xf32>
    %236 = arith.addf %226, %235 : vector<16x128xf32>
    %c1_136 = arith.constant 1 : index
    %c0_137 = arith.constant 0 : index
    %c0_138 = arith.constant 0 : index
    %237 = vector.load %arg22[%c1_136, %c0_137, %c0_138] : memref<3x1x128xf32, #tpu.memory_space<vmem>>, vector<1x1x128xf32>
    %238 = vector.shape_cast %237 : vector<1x1x128xf32> to vector<1x128xf32>
    %239 = vector.broadcast %238 : vector<1x128xf32> to vector<16x128xf32>
    %240 = arith.mulf %236, %239 : vector<16x128xf32>
    %c1_139 = arith.constant 1 : index
    %c0_140 = arith.constant 0 : index
    %c0_141 = arith.constant 0 : index
    %241 = vector.load %arg23[%c1_139, %c0_140, %c0_141] : memref<3x1x128xf32, #tpu.memory_space<vmem>>, vector<1x1x128xf32>
    %242 = vector.shape_cast %241 : vector<1x1x128xf32> to vector<1x128xf32>
    %243 = vector.broadcast %242 : vector<1x128xf32> to vector<16x128xf32>
    %244 = arith.addf %240, %243 : vector<16x128xf32>
    %c1_142 = arith.constant 1 : index
    %c0_143 = arith.constant 0 : index
    %c0_144 = arith.constant 0 : index
    %245 = vector.load %arg24[%c1_142, %c0_143, %c0_144] : memref<3x16x128xf32, #tpu.memory_space<vmem>>, vector<1x16x128xf32>
    %246 = vector.shape_cast %245 : vector<1x16x128xf32> to vector<16x128xf32>
    %247 = vector.shape_cast %244 : vector<16x128xf32> to vector<1x16x128xf32>
    tpu.vector_store %arg24[%c1_142, %c0_143, %c0_144], %247 {strides = array<i32>} : memref<3x16x128xf32, #tpu.memory_space<vmem>>, vector<1x16x128xf32>,
    %248 = arith.truncf %181 : vector<16x128xf32> to vector<16x128xbf16>
    %cst_145 = arith.constant dense<0.000000e+00> : vector<16x128xf32>
    %249 = tpu.matmul %2, %248, %cst_145 {dimension_numbers = #tpu.dot_dimension_numbers<[1], [0], [0], [1], [0, 0, 1, 1], [], []>} : vector<16x16xbf16>, vector<16x128xbf16>, vector<16x128xf32> -> vector<16x128xf32>
    %250 = arith.truncf %249 : vector<16x128xf32> to vector<16x128xbf16>
    %c2 = arith.constant 2 : index
    %c0_146 = arith.constant 0 : index
    %c0_147 = arith.constant 0 : index
    %251 = vector.load %arg12[%c2, %c0_146, %c0_147] : memref<3x128x128xbf16, #tpu.memory_space<vmem>>, vector<1x128x128xbf16>
    %252 = vector.shape_cast %251 : vector<1x128x128xbf16> to vector<128x128xbf16>
    %cst_148 = arith.constant dense<0.000000e+00> : vector<16x128xf32>
    %253 = tpu.matmul %250, %252, %cst_148 {dimension_numbers = #tpu.dot_dimension_numbers<[1], [0], [0], [1], [0, 0, 1, 1], [], []>} : vector<16x128xbf16>, vector<128x128xbf16>, vector<16x128xf32> -> vector<16x128xf32>
    %c2_149 = arith.constant 2 : index
    %c0_150 = arith.constant 0 : index
    %c0_151 = arith.constant 0 : index
    %254 = vector.load %arg13[%c2_149, %c0_150, %c0_151] : memref<3x1x128xf32, #tpu.memory_space<vmem>>, vector<1x1x128xf32>
    %255 = vector.shape_cast %254 : vector<1x1x128xf32> to vector<1x128xf32>
    %256 = vector.broadcast %255 : vector<1x128xf32> to vector<16x128xf32>
    %257 = arith.addf %253, %256 : vector<16x128xf32>
    %cst_152 = arith.constant 0.000000e+00 : f32
    %258 = vector.broadcast %cst_152 : f32 to vector<16x128xf32>
    %259 = arith.maximumf %257, %258 : vector<16x128xf32>
    %c2_153 = arith.constant 2 : index
    %c0_154 = arith.constant 0 : index
    %c0_155 = arith.constant 0 : index
    %260 = vector.load %arg14[%c2_153, %c0_154, %c0_155] : memref<3x128x128xbf16, #tpu.memory_space<vmem>>, vector<1x128x128xbf16>
    %261 = vector.shape_cast %260 : vector<1x128x128xbf16> to vector<128x128xbf16>
    %cst_156 = arith.constant dense<0.000000e+00> : vector<16x128xf32>
    %262 = tpu.matmul %248, %261, %cst_156 {dimension_numbers = #tpu.dot_dimension_numbers<[1], [0], [0], [1], [0, 0, 1, 1], [], []>} : vector<16x128xbf16>, vector<128x128xbf16>, vector<16x128xf32> -> vector<16x128xf32>
    %c2_157 = arith.constant 2 : index
    %c0_158 = arith.constant 0 : index
    %c0_159 = arith.constant 0 : index
    %263 = vector.load %arg15[%c2_157, %c0_158, %c0_159] : memref<3x1x128xf32, #tpu.memory_space<vmem>>, vector<1x1x128xf32>
    %264 = vector.shape_cast %263 : vector<1x1x128xf32> to vector<1x128xf32>
    %265 = vector.broadcast %264 : vector<1x128xf32> to vector<16x128xf32>
    %266 = arith.addf %262, %265 : vector<16x128xf32>
    %cst_160 = arith.constant 0.000000e+00 : f32
    %267 = vector.broadcast %cst_160 : f32 to vector<16x128xf32>
    %268 = arith.maximumf %266, %267 : vector<16x128xf32>
    %269 = arith.addf %259, %268 : vector<16x128xf32>
    %c2_161 = arith.constant 2 : index
    %c0_162 = arith.constant 0 : index
    %c0_163 = arith.constant 0 : index
    %270 = vector.load %arg16[%c2_161, %c0_162, %c0_163] : memref<3x1x128xf32, #tpu.memory_space<vmem>>, vector<1x1x128xf32>
    %271 = vector.shape_cast %270 : vector<1x1x128xf32> to vector<1x128xf32>
    %272 = vector.broadcast %271 : vector<1x128xf32> to vector<16x128xf32>
    %273 = arith.mulf %269, %272 : vector<16x128xf32>
    %c2_164 = arith.constant 2 : index
    %c0_165 = arith.constant 0 : index
    %c0_166 = arith.constant 0 : index
    %274 = vector.load %arg17[%c2_164, %c0_165, %c0_166] : memref<3x1x128xf32, #tpu.memory_space<vmem>>, vector<1x1x128xf32>
    %275 = vector.shape_cast %274 : vector<1x1x128xf32> to vector<1x128xf32>
    %276 = vector.broadcast %275 : vector<1x128xf32> to vector<16x128xf32>
    %277 = arith.addf %273, %276 : vector<16x128xf32>
    %278 = vector.extract_strided_slice %2 {offsets = [0, 0], sizes = [8, 8], strides = [1, 1]} : vector<16x16xbf16> to vector<8x8xbf16>
    %279 = arith.extf %278 : vector<8x8xbf16> to vector<8x8xf32>
    %280 = vector.extract_strided_slice %277 {offsets = [0, 0], sizes = [8, 128], strides = [1, 1]} : vector<16x128xf32> to vector<8x128xf32>
    %cst_167 = arith.constant -1.000000e+30 : f32
    %281 = vector.broadcast %cst_167 : f32 to vector<8x128xf32>
    %282 = vector.shape_cast %279 : vector<8x8xf32> to vector<8x8x1xf32>
    %cst_168 = arith.constant 5.000000e-01 : f32
    %283 = vector.broadcast %cst_168 : f32 to vector<8x8x1xf32>
    %284 = arith.cmpf ogt, %282, %283 : vector<8x8x1xf32>
    %285 = vector.shape_cast %280 : vector<8x128xf32> to vector<1x8x128xf32>
    %cst_169 = arith.constant -1.000000e+30 : f32
    %286 = vector.shape_cast %284 : vector<8x8x1xi1> to vector<8x8x1xi1>
    %287 = vector.broadcast %286 : vector<8x8x1xi1> to vector<8x8x128xi1>
    %288 = vector.shape_cast %285 : vector<1x8x128xf32> to vector<1x8x128xf32>
    %289 = vector.broadcast %288 : vector<1x8x128xf32> to vector<8x8x128xf32>
    %290 = vector.broadcast %cst_169 : f32 to vector<8x8x128xf32>
    %291 = arith.select %287, %289, %290 : vector<8x8x128xi1>, vector<8x8x128xf32>
    %cst_170 = arith.constant dense<0xFF800000> : vector<8x128xf32>
    %292 = vector.multi_reduction <maximumf>, %291, %cst_170 [1] : vector<8x8x128xf32> to vector<8x128xf32>
    %293 = arith.maximumf %281, %292 : vector<8x128xf32>
    %294 = vector.extract_strided_slice %2 {offsets = [8, 8], sizes = [8, 8], strides = [1, 1]} : vector<16x16xbf16> to vector<8x8xbf16>
    %295 = arith.extf %294 : vector<8x8xbf16> to vector<8x8xf32>
    %296 = vector.extract_strided_slice %277 {offsets = [8, 0], sizes = [8, 128], strides = [1, 1]} : vector<16x128xf32> to vector<8x128xf32>
    %cst_171 = arith.constant -1.000000e+30 : f32
    %297 = vector.broadcast %cst_171 : f32 to vector<8x128xf32>
    %298 = vector.shape_cast %295 : vector<8x8xf32> to vector<8x8x1xf32>
    %cst_172 = arith.constant 5.000000e-01 : f32
    %299 = vector.broadcast %cst_172 : f32 to vector<8x8x1xf32>
    %300 = arith.cmpf ogt, %298, %299 : vector<8x8x1xf32>
    %301 = vector.shape_cast %296 : vector<8x128xf32> to vector<1x8x128xf32>
    %cst_173 = arith.constant -1.000000e+30 : f32
    %302 = vector.shape_cast %300 : vector<8x8x1xi1> to vector<8x8x1xi1>
    %303 = vector.broadcast %302 : vector<8x8x1xi1> to vector<8x8x128xi1>
    %304 = vector.shape_cast %301 : vector<1x8x128xf32> to vector<1x8x128xf32>
    %305 = vector.broadcast %304 : vector<1x8x128xf32> to vector<8x8x128xf32>
    %306 = vector.broadcast %cst_173 : f32 to vector<8x8x128xf32>
    %307 = arith.select %303, %305, %306 : vector<8x8x128xi1>, vector<8x8x128xf32>
    %cst_174 = arith.constant dense<0xFF800000> : vector<8x128xf32>
    %308 = vector.multi_reduction <maximumf>, %307, %cst_174 [1] : vector<8x8x128xf32> to vector<8x128xf32>
    %309 = arith.maximumf %297, %308 : vector<8x128xf32>
    %310 = tpu.concatenate %293, %309 in 0 : vector<8x128xf32>, vector<8x128xf32> -> vector<16x128xf32>
    %311 = arith.truncf %310 : vector<16x128xf32> to vector<16x128xbf16>
    %cst_175 = arith.constant dense<0.000000e+00> : vector<16x128xf32>
    %312 = tpu.matmul %2, %311, %cst_175 {dimension_numbers = #tpu.dot_dimension_numbers<[1], [0], [0], [1], [0, 0, 1, 1], [], []>} : vector<16x16xbf16>, vector<16x128xbf16>, vector<16x128xf32> -> vector<16x128xf32>
    %313 = arith.truncf %312 : vector<16x128xf32> to vector<16x128xbf16>
    %c2_176 = arith.constant 2 : index
    %c0_177 = arith.constant 0 : index
    %c0_178 = arith.constant 0 : index
    %314 = vector.load %arg18[%c2_176, %c0_177, %c0_178] : memref<3x128x128xbf16, #tpu.memory_space<vmem>>, vector<1x128x128xbf16>
    %315 = vector.shape_cast %314 : vector<1x128x128xbf16> to vector<128x128xbf16>
    %cst_179 = arith.constant dense<0.000000e+00> : vector<16x128xf32>
    %316 = tpu.matmul %313, %315, %cst_179 {dimension_numbers = #tpu.dot_dimension_numbers<[1], [0], [0], [1], [0, 0, 1, 1], [], []>} : vector<16x128xbf16>, vector<128x128xbf16>, vector<16x128xf32> -> vector<16x128xf32>
    %c2_180 = arith.constant 2 : index
    %c0_181 = arith.constant 0 : index
    %c0_182 = arith.constant 0 : index
    %317 = vector.load %arg19[%c2_180, %c0_181, %c0_182] : memref<3x1x128xf32, #tpu.memory_space<vmem>>, vector<1x1x128xf32>
    %318 = vector.shape_cast %317 : vector<1x1x128xf32> to vector<1x128xf32>
    %319 = vector.broadcast %318 : vector<1x128xf32> to vector<16x128xf32>
    %320 = arith.addf %316, %319 : vector<16x128xf32>
    %cst_183 = arith.constant 0.000000e+00 : f32
    %321 = vector.broadcast %cst_183 : f32 to vector<16x128xf32>
    %322 = arith.maximumf %320, %321 : vector<16x128xf32>
    %c2_184 = arith.constant 2 : index
    %c0_185 = arith.constant 0 : index
    %c0_186 = arith.constant 0 : index
    %323 = vector.load %arg20[%c2_184, %c0_185, %c0_186] : memref<3x128x128xbf16, #tpu.memory_space<vmem>>, vector<1x128x128xbf16>
    %324 = vector.shape_cast %323 : vector<1x128x128xbf16> to vector<128x128xbf16>
    %cst_187 = arith.constant dense<0.000000e+00> : vector<16x128xf32>
    %325 = tpu.matmul %311, %324, %cst_187 {dimension_numbers = #tpu.dot_dimension_numbers<[1], [0], [0], [1], [0, 0, 1, 1], [], []>} : vector<16x128xbf16>, vector<128x128xbf16>, vector<16x128xf32> -> vector<16x128xf32>
    %c2_188 = arith.constant 2 : index
    %c0_189 = arith.constant 0 : index
    %c0_190 = arith.constant 0 : index
    %326 = vector.load %arg21[%c2_188, %c0_189, %c0_190] : memref<3x1x128xf32, #tpu.memory_space<vmem>>, vector<1x1x128xf32>
    %327 = vector.shape_cast %326 : vector<1x1x128xf32> to vector<1x128xf32>
    %328 = vector.broadcast %327 : vector<1x128xf32> to vector<16x128xf32>
    %329 = arith.addf %325, %328 : vector<16x128xf32>
    %cst_191 = arith.constant 0.000000e+00 : f32
    %330 = vector.broadcast %cst_191 : f32 to vector<16x128xf32>
    %331 = arith.maximumf %329, %330 : vector<16x128xf32>
    %332 = arith.addf %322, %331 : vector<16x128xf32>
    %c2_192 = arith.constant 2 : index
    %c0_193 = arith.constant 0 : index
    %c0_194 = arith.constant 0 : index
    %333 = vector.load %arg22[%c2_192, %c0_193, %c0_194] : memref<3x1x128xf32, #tpu.memory_space<vmem>>, vector<1x1x128xf32>
    %334 = vector.shape_cast %333 : vector<1x1x128xf32> to vector<1x128xf32>
    %335 = vector.broadcast %334 : vector<1x128xf32> to vector<16x128xf32>
    %336 = arith.mulf %332, %335 : vector<16x128xf32>
    %c2_195 = arith.constant 2 : index
    %c0_196 = arith.constant 0 : index
    %c0_197 = arith.constant 0 : index
    %337 = vector.load %arg23[%c2_195, %c0_196, %c0_197] : memref<3x1x128xf32, #tpu.memory_space<vmem>>, vector<1x1x128xf32>
    %338 = vector.shape_cast %337 : vector<1x1x128xf32> to vector<1x128xf32>
    %339 = vector.broadcast %338 : vector<1x128xf32> to vector<16x128xf32>
    %340 = arith.addf %336, %339 : vector<16x128xf32>
    %c2_198 = arith.constant 2 : index
    %c0_199 = arith.constant 0 : index
    %c0_200 = arith.constant 0 : index
    %341 = vector.load %arg24[%c2_198, %c0_199, %c0_200] : memref<3x16x128xf32, #tpu.memory_space<vmem>>, vector<1x16x128xf32>
    %342 = vector.shape_cast %341 : vector<1x16x128xf32> to vector<16x128xf32>
    %343 = vector.shape_cast %340 : vector<16x128xf32> to vector<1x16x128xf32>
    tpu.vector_store %arg24[%c2_198, %c0_199, %c0_200], %343 {strides = array<i32>} : memref<3x16x128xf32, #tpu.memory_space<vmem>>, vector<1x16x128xf32>,
    return
  }
  func.func @transform_0(%arg0: i32) -> (i32, i32) {
    %c0_i32 = arith.constant 0 : i32
    %c0_i32_0 = arith.constant 0 : i32
    return %arg0, %c0_i32 : i32, i32
  }
  func.func @transform_1(%arg0: i32) -> (i32, i32, i32) {
    %c0_i32 = arith.constant 0 : i32
    %c0_i32_0 = arith.constant 0 : i32
    %c0_i32_1 = arith.constant 0 : i32
    return %arg0, %c0_i32, %c0_i32_0 : i32, i32, i32
  }
  func.func @transform_2(%arg0: i32) -> (i32, i32) {
    %c0_i32 = arith.constant 0 : i32
    %c0_i32_0 = arith.constant 0 : i32
    %c0_i32_1 = arith.constant 0 : i32
    return %c0_i32, %c0_i32_0 : i32, i32
  }
  func.func @transform_3(%arg0: i32) -> (i32, i32) {
    %c0_i32 = arith.constant 0 : i32
    %c0_i32_0 = arith.constant 0 : i32
    %c0_i32_1 = arith.constant 0 : i32
    return %c0_i32, %c0_i32_0 : i32, i32
  }
  func.func @transform_4(%arg0: i32) -> (i32, i32) {
    %c0_i32 = arith.constant 0 : i32
    %c0_i32_0 = arith.constant 0 : i32
    %c0_i32_1 = arith.constant 0 : i32
    return %c0_i32, %c0_i32_0 : i32, i32
  }
  func.func @transform_5(%arg0: i32) -> (i32, i32) {
    %c0_i32 = arith.constant 0 : i32
    %c0_i32_0 = arith.constant 0 : i32
    %c0_i32_1 = arith.constant 0 : i32
    return %c0_i32, %c0_i32_0 : i32, i32
  }
  func.func @transform_6(%arg0: i32) -> (i32, i32) {
    %c0_i32 = arith.constant 0 : i32
    %c0_i32_0 = arith.constant 0 : i32
    %c0_i32_1 = arith.constant 0 : i32
    return %c0_i32, %c0_i32_0 : i32, i32
  }
  func.func @transform_7(%arg0: i32) -> (i32, i32) {
    %c0_i32 = arith.constant 0 : i32
    %c0_i32_0 = arith.constant 0 : i32
    %c0_i32_1 = arith.constant 0 : i32
    return %c0_i32, %c0_i32_0 : i32, i32
  }
  func.func @transform_8(%arg0: i32) -> (i32, i32) {
    %c0_i32 = arith.constant 0 : i32
    %c0_i32_0 = arith.constant 0 : i32
    %c0_i32_1 = arith.constant 0 : i32
    return %c0_i32, %c0_i32_0 : i32, i32
  }
  func.func @transform_9(%arg0: i32) -> (i32, i32) {
    %c0_i32 = arith.constant 0 : i32
    %c0_i32_0 = arith.constant 0 : i32
    %c0_i32_1 = arith.constant 0 : i32
    return %c0_i32, %c0_i32_0 : i32, i32
  }
  func.func @transform_10(%arg0: i32) -> (i32, i32) {
    %c0_i32 = arith.constant 0 : i32
    %c0_i32_0 = arith.constant 0 : i32
    %c0_i32_1 = arith.constant 0 : i32
    return %c0_i32, %c0_i32_0 : i32, i32
  }
  func.func @transform_11(%arg0: i32) -> (i32, i32, i32) {
    %c0_i32 = arith.constant 0 : i32
    %c0_i32_0 = arith.constant 0 : i32
    %c0_i32_1 = arith.constant 0 : i32
    %c0_i32_2 = arith.constant 0 : i32
    return %c0_i32, %c0_i32_0, %c0_i32_1 : i32, i32, i32
  }
  func.func @transform_12(%arg0: i32) -> (i32, i32, i32) {
    %c0_i32 = arith.constant 0 : i32
    %c0_i32_0 = arith.constant 0 : i32
    %c0_i32_1 = arith.constant 0 : i32
    %c0_i32_2 = arith.constant 0 : i32
    return %c0_i32, %c0_i32_0, %c0_i32_1 : i32, i32, i32
  }
  func.func @transform_13(%arg0: i32) -> (i32, i32, i32) {
    %c0_i32 = arith.constant 0 : i32
    %c0_i32_0 = arith.constant 0 : i32
    %c0_i32_1 = arith.constant 0 : i32
    %c0_i32_2 = arith.constant 0 : i32
    return %c0_i32, %c0_i32_0, %c0_i32_1 : i32, i32, i32
  }
  func.func @transform_14(%arg0: i32) -> (i32, i32, i32) {
    %c0_i32 = arith.constant 0 : i32
    %c0_i32_0 = arith.constant 0 : i32
    %c0_i32_1 = arith.constant 0 : i32
    %c0_i32_2 = arith.constant 0 : i32
    return %c0_i32, %c0_i32_0, %c0_i32_1 : i32, i32, i32
  }
  func.func @transform_15(%arg0: i32) -> (i32, i32, i32) {
    %c0_i32 = arith.constant 0 : i32
    %c0_i32_0 = arith.constant 0 : i32
    %c0_i32_1 = arith.constant 0 : i32
    %c0_i32_2 = arith.constant 0 : i32
    return %c0_i32, %c0_i32_0, %c0_i32_1 : i32, i32, i32
  }
  func.func @transform_16(%arg0: i32) -> (i32, i32, i32) {
    %c0_i32 = arith.constant 0 : i32
    %c0_i32_0 = arith.constant 0 : i32
    %c0_i32_1 = arith.constant 0 : i32
    %c0_i32_2 = arith.constant 0 : i32
    return %c0_i32, %c0_i32_0, %c0_i32_1 : i32, i32, i32
  }
  func.func @transform_17(%arg0: i32) -> (i32, i32, i32) {
    %c0_i32 = arith.constant 0 : i32
    %c0_i32_0 = arith.constant 0 : i32
    %c0_i32_1 = arith.constant 0 : i32
    %c0_i32_2 = arith.constant 0 : i32
    return %c0_i32, %c0_i32_0, %c0_i32_1 : i32, i32, i32
  }
  func.func @transform_18(%arg0: i32) -> (i32, i32, i32) {
    %c0_i32 = arith.constant 0 : i32
    %c0_i32_0 = arith.constant 0 : i32
    %c0_i32_1 = arith.constant 0 : i32
    %c0_i32_2 = arith.constant 0 : i32
    return %c0_i32, %c0_i32_0, %c0_i32_1 : i32, i32, i32
  }
  func.func @transform_19(%arg0: i32) -> (i32, i32, i32) {
    %c0_i32 = arith.constant 0 : i32
    %c0_i32_0 = arith.constant 0 : i32
    %c0_i32_1 = arith.constant 0 : i32
    %c0_i32_2 = arith.constant 0 : i32
    return %c0_i32, %c0_i32_0, %c0_i32_1 : i32, i32, i32
  }
  func.func @transform_20(%arg0: i32) -> (i32, i32, i32) {
    %c0_i32 = arith.constant 0 : i32
    %c0_i32_0 = arith.constant 0 : i32
    %c0_i32_1 = arith.constant 0 : i32
    %c0_i32_2 = arith.constant 0 : i32
    return %c0_i32, %c0_i32_0, %c0_i32_1 : i32, i32, i32
  }
  func.func @transform_21(%arg0: i32) -> (i32, i32, i32) {
    %c0_i32 = arith.constant 0 : i32
    %c0_i32_0 = arith.constant 0 : i32
    %c0_i32_1 = arith.constant 0 : i32
    %c0_i32_2 = arith.constant 0 : i32
    return %c0_i32, %c0_i32_0, %c0_i32_1 : i32, i32, i32
  }
  func.func @transform_22(%arg0: i32) -> (i32, i32, i32) {
    %c0_i32 = arith.constant 0 : i32
    %c0_i32_0 = arith.constant 0 : i32
    %c0_i32_1 = arith.constant 0 : i32
    %c0_i32_2 = arith.constant 0 : i32
    return %c0_i32, %c0_i32_0, %c0_i32_1 : i32, i32, i32
  }
  func.func @transform_23(%arg0: i32) -> (i32, i32, i32) {
    %c0_i32 = arith.constant 0 : i32
    %c0_i32_0 = arith.constant 0 : i32
    %c0_i32_1 = arith.constant 0 : i32
    return %c0_i32, %arg0, %c0_i32_0 : i32, i32, i32
  }
}

</mosaic_0001>

<llo_original>
// kernel: tpu_custom_call.1
$region0: #{tpu_custom_call.1}
  #allocation0 [shape = 'u32[]', space=smem, size = 0x4, offset = 0x4, fixed_abs, tag = 'smem constant byte address 0x4 - core index']
  #allocation1 [shape = 'u32[72,128]{1,0:T(1,128)}', space=vmem, size = 0x9000, scoped, tag = 'internal scratch']
  %s0 = inlined_call_operand.hbm [shape: bf16[16,128], index: 0, kind: input, shape index: {}]
  %s1 = inlined_call_operand.hbm [shape: bf16[1,16,16], index: 1, kind: input, shape index: {}]
  %s2 = inlined_call_operand.hbm [shape: bf16[128,128], index: 2, kind: input, shape index: {}]
  %s3 = inlined_call_operand.hbm [shape: bf16[128,128], index: 3, kind: input, shape index: {}]
  %s4 = inlined_call_operand.hbm [shape: f32[1,128], index: 4, kind: input, shape index: {}]
  %s5 = inlined_call_operand.hbm [shape: f32[1,128], index: 5, kind: input, shape index: {}]
  %s6 = inlined_call_operand.hbm [shape: f32[1,128], index: 6, kind: input, shape index: {}]
  %s7 = inlined_call_operand.hbm [shape: bf16[128,128], index: 7, kind: input, shape index: {}]
  %s8 = inlined_call_operand.hbm [shape: f32[1,128], index: 8, kind: input, shape index: {}]
  %s9 = inlined_call_operand.hbm [shape: f32[1,128], index: 9, kind: input, shape index: {}]
  %s10 = inlined_call_operand.hbm [shape: f32[1,128], index: 10, kind: input, shape index: {}]
  %s11 = inlined_call_operand.hbm [shape: bf16[3,128,128], index: 11, kind: input, shape index: {}]
  %s12 = inlined_call_operand.vmem [shape: f32[3,1,128], index: 12, kind: input, shape index: {}]
  %s13 = inlined_call_operand.hbm [shape: bf16[3,128,128], index: 13, kind: input, shape index: {}]
  %s14 = inlined_call_operand.vmem [shape: f32[3,1,128], index: 14, kind: input, shape index: {}]
  %s15 = inlined_call_operand.vmem [shape: f32[3,1,128], index: 15, kind: input, shape index: {}]
  %s16 = inlined_call_operand.vmem [shape: f32[3,1,128], index: 16, kind: input, shape index: {}]
  %s17 = inlined_call_operand.hbm [shape: bf16[3,128,128], index: 17, kind: input, shape index: {}]
  %s18 = inlined_call_operand.vmem [shape: f32[3,1,128], index: 18, kind: input, shape index: {}]
  %s19 = inlined_call_operand.hbm [shape: bf16[3,128,128], index: 19, kind: input, shape index: {}]
  %s20 = inlined_call_operand.vmem [shape: f32[3,1,128], index: 20, kind: input, shape index: {}]
  %s21 = inlined_call_operand.hbm [shape: f32[3,1,128], index: 21, kind: input, shape index: {}]
  %s22 = inlined_call_operand.vmem [shape: f32[3,1,128], index: 22, kind: input, shape index: {}]
  %s23 = inlined_call_operand.hbm [shape: f32[3,16,128], index: 23, kind: output, shape index: {}]
  %s24 = sld [smem:[#allocation0]]
  $region166: #{tpu_custom_call.1} parent=0
    _
  %s26 = ssub.s32 1, %s24
  %s27 = scalar_select 0, %s26, %s24
  $region1: #{tpu_custom_call.1} parent=0
    #allocation2 [shape = 'u8[4096]{0}', space=vmem, size = 0x1000, scoped, tag = 'input window, operand 0, single buffered']
    #allocation3 [shape = 's32[1]{0}', space=sflag, size = 0x4, scoped, tag = 'scoped memory for tpu_custom_call.1']
    #allocation4 [shape = 's32[1]{0}', space=sflag, size = 0x4, scoped, tag = 'scoped memory for tpu_custom_call.1']
    #allocation5 [shape = 'u8[4096]{0}', space=vmem, size = 0x1000, scoped, tag = 'input window, operand 1, single buffered']
    #allocation6 [shape = 's32[1]{0}', space=sflag, size = 0x4, scoped, tag = 'scoped memory for tpu_custom_call.1']
    #allocation7 [shape = 'u8[32768]{0}', space=vmem, size = 0x8000, scoped, tag = 'input window, operand 2, single buffered']
    #allocation8 [shape = 'u8[32768]{0}', space=vmem, size = 0x8000, scoped, tag = 'input window, operand 3, single buffered']
    #allocation9 [shape = 's32[1]{0}', space=sflag, size = 0x4, scoped, tag = 'scoped memory for tpu_custom_call.1']
    #allocation10 [shape = 'u8[512]{0}', space=vmem, size = 0x400, scoped, tag = 'input window, operand 4, single buffered']
    #allocation11 [shape = 'u8[512]{0}', space=vmem, size = 0x400, scoped, tag = 'input window, operand 5, single buffered']
    #allocation12 [shape = 's32[1]{0}', space=sflag, size = 0x4, scoped, tag = 'scoped memory for tpu_custom_call.1']
    #allocation13 [shape = 'u8[512]{0}', space=vmem, size = 0x400, scoped, tag = 'input window, operand 6, single buffered']
    #allocation14 [shape = 'u8[32768]{0}', space=vmem, size = 0x8000, scoped, tag = 'input window, operand 7, single buffered']
    #allocation15 [shape = 's32[1]{0}', space=sflag, size = 0x4, scoped, tag = 'scoped memory for tpu_custom_call.1']
    #allocation16 [shape = 'u8[512]{0}', space=vmem, size = 0x400, scoped, tag = 'input window, operand 8, single buffered']
    #allocation17 [shape = 'u8[512]{0}', space=vmem, size = 0x400, scoped, tag = 'input window, operand 9, single buffered']
    #allocation18 [shape = 's32[1]{0}', space=sflag, size = 0x4, scoped, tag = 'scoped memory for tpu_custom_call.1']
    #allocation19 [shape = 'u8[512]{0}', space=vmem, size = 0x400, scoped, tag = 'input window, operand 10, single buffered']
    #allocation20 [shape = 'u8[98304]{0}', space=vmem, size = 0x18000, scoped, tag = 'input window, operand 11, single buffered']
    #allocation21 [shape = 's32[1]{0}', space=sflag, size = 0x4, scoped, tag = 'scoped memory for tpu_custom_call.1']
    #allocation22 [shape = 'u8[98304]{0}', space=vmem, size = 0x18000, scoped, tag = 'input window, operand 13, single buffered']
    #allocation23 [shape = 'u8[98304]{0}', space=vmem, size = 0x18000, scoped, tag = 'input window, operand 17, single buffered']
    #allocation24 [shape = 's32[1]{0}', space=sflag, size = 0x4, scoped, tag = 'scoped memory for tpu_custom_call.1']
    #allocation25 [shape = 'u8[98304]{0}', space=vmem, size = 0x18000, scoped, tag = 'input window, operand 19, single buffered']
    #allocation26 [shape = 'u8[1536]{0}', space=vmem, size = 0x800, scoped, tag = 'input window, operand 21, single buffered']
    #allocation27 [shape = 's32[1]{0}', space=sflag, size = 0x4, scoped, tag = 'scoped memory for tpu_custom_call.1']
    #allocation28 [shape = 'u8[24576]{0}', space=vmem, size = 0x6000, scoped, tag = 'output window, operand 0, single buffered']
    %28 = vsyncpa [#allocation3], 0
    %29 = vsyncpa [#allocation6], 0
    %30 = vsyncpa [#allocation9], 0
    %31 = vsyncpa [#allocation12], 0
    %32 = vsyncpa [#allocation15], 0
    %33 = vsyncpa [#allocation18], 0
    %34 = vsyncpa [#allocation21], 0
    %35 = vsyncpa [#allocation24], 0
    %36 = vsyncpa [#allocation27], 0
    %37 = vsyncpa [#allocation4], 0
    // Predicated region
    $region2: #{tpu_custom_call.1} parent=1 // pred_check
      _
    $region3: #{tpu_custom_call.1} parent=1 // pred_check_branch
      %39 = sbr.rel (0) target = $region5
    $region4: #{tpu_custom_call.1} parent=1 // pred_region
      %41 = vsyncadd [#allocation3], 0
      %s42 = sshll.u32 %s0, 4
      %s43 = int_to_ptr.hbm [resolvable:$true] %s42
      %s44 = sshll.u32 [#allocation2], 4
      %s45 = int_to_ptr.vmem [resolvable:$true] %s44
      %50 = dma.hbm_to_vmem [thread:$0]  %s43, 128, %s45, [#allocation3], 64, 64, 4
    $region5: #{tpu_custom_call.1} parent=1 // pred_fallthru
      _
    // Predicated region
    $region6: #{tpu_custom_call.1} parent=1 // pred_check
      _
    $region7: #{tpu_custom_call.1} parent=1 // pred_check_branch
      %52 = sbr.rel (0) target = $region9
    $region8: #{tpu_custom_call.1} parent=1 // pred_region
      %54 = vsyncadd [#allocation6], 0
      %s55 = sshll.u32 %s1, 4
      %s56 = int_to_ptr.hbm [resolvable:$true] %s55
      %s57 = sshll.u32 [#allocation5], 4
      %s58 = int_to_ptr.vmem [resolvable:$true] %s57
      %63 = dma.hbm_to_vmem [thread:$0]  %s56, 128, %s58, [#allocation6], 64, 64, 4
    $region9: #{tpu_custom_call.1} parent=1 // pred_fallthru
      _
    // Predicated region
    $region10: #{tpu_custom_call.1} parent=1 // pred_check
      _
    $region11: #{tpu_custom_call.1} parent=1 // pred_check_branch
      %65 = sbr.rel (0) target = $region13
    $region12: #{tpu_custom_call.1} parent=1 // pred_region
      %67 = vsyncadd [#allocation6], 0
      %s68 = sshll.u32 %s2, 4
      %s69 = int_to_ptr.hbm [resolvable:$true] %s68
      %s70 = sshll.u32 [#allocation7], 4
      %s71 = int_to_ptr.vmem [resolvable:$true] %s70
      %76 = dma.hbm_to_vmem [thread:$0]  %s69, 1024, %s71, [#allocation6], 64, 64, 4
    $region13: #{tpu_custom_call.1} parent=1 // pred_fallthru
      _
    // Predicated region
    $region14: #{tpu_custom_call.1} parent=1 // pred_check
      _
    $region15: #{tpu_custom_call.1} parent=1 // pred_check_branch
      %78 = sbr.rel (0) target = $region17
    $region16: #{tpu_custom_call.1} parent=1 // pred_region
      %80 = vsyncadd [#allocation9], 0
      %s81 = sshll.u32 %s3, 4
      %s82 = int_to_ptr.hbm [resolvable:$true] %s81
      %s83 = sshll.u32 [#allocation8], 4
      %s84 = int_to_ptr.vmem [resolvable:$true] %s83
      %89 = dma.hbm_to_vmem [thread:$0]  %s82, 1024, %s84, [#allocation9], 64, 64, 4
    $region17: #{tpu_custom_call.1} parent=1 // pred_fallthru
      _
    // Predicated region
    $region18: #{tpu_custom_call.1} parent=1 // pred_check
      _
    $region19: #{tpu_custom_call.1} parent=1 // pred_check_branch
      %91 = sbr.rel (0) target = $region21
    $region20: #{tpu_custom_call.1} parent=1 // pred_region
      %93 = vsyncadd [#allocation9], 0
      %s95 = sshll.u32 %s4, 4
      %s96 = int_to_ptr.hbm [resolvable:$true] %s95
      %s97 = sshll.u32 [#allocation10], 4
      %s98 = int_to_ptr.vmem [resolvable:$true] %s97
      %100 = dma.hbm_to_vmem [thread:$0]  %s96, 16, %s98, [#allocation9]
    $region21: #{tpu_custom_call.1} parent=1 // pred_fallthru
      _
    // Predicated region
    $region22: #{tpu_custom_call.1} parent=1 // pred_check
      _
    $region23: #{tpu_custom_call.1} parent=1 // pred_check_branch
      %102 = sbr.rel (0) target = $region25
    $region24: #{tpu_custom_call.1} parent=1 // pred_region
      %104 = vsyncadd [#allocation12], 0
      %s106 = sshll.u32 %s5, 4
      %s107 = int_to_ptr.hbm [resolvable:$true] %s106
      %s108 = sshll.u32 [#allocation11], 4
      %s109 = int_to_ptr.vmem [resolvable:$true] %s108
      %111 = dma.hbm_to_vmem [thread:$0]  %s107, 16, %s109, [#allocation12]
    $region25: #{tpu_custom_call.1} parent=1 // pred_fallthru
      _
    // Predicated region
    $region26: #{tpu_custom_call.1} parent=1 // pred_check
      _
    $region27: #{tpu_custom_call.1} parent=1 // pred_check_branch
      %113 = sbr.rel (0) target = $region29
    $region28: #{tpu_custom_call.1} parent=1 // pred_region
      %115 = vsyncadd [#allocation12], 0
      %s117 = sshll.u32 %s6, 4
      %s118 = int_to_ptr.hbm [resolvable:$true] %s117
      %s119 = sshll.u32 [#allocation13], 4
      %s120 = int_to_ptr.vmem [resolvable:$true] %s119
      %122 = dma.hbm_to_vmem [thread:$0]  %s118, 16, %s120, [#allocation12]
    $region29: #{tpu_custom_call.1} parent=1 // pred_fallthru
      _
    // Predicated region
    $region30: #{tpu_custom_call.1} parent=1 // pred_check
      _
    $region31: #{tpu_custom_call.1} parent=1 // pred_check_branch
      %124 = sbr.rel (0) target = $region33
    $region32: #{tpu_custom_call.1} parent=1 // pred_region
      %126 = vsyncadd [#allocation15], 0
      %s127 = sshll.u32 %s7, 4
      %s128 = int_to_ptr.hbm [resolvable:$true] %s127
      %s129 = sshll.u32 [#allocation14], 4
      %s130 = int_to_ptr.vmem [resolvable:$true] %s129
      %135 = dma.hbm_to_vmem [thread:$0]  %s128, 1024, %s130, [#allocation15], 64, 64, 4
    $region33: #{tpu_custom_call.1} parent=1 // pred_fallthru
      _
    // Predicated region
    $region34: #{tpu_custom_call.1} parent=1 // pred_check
      _
    $region35: #{tpu_custom_call.1} parent=1 // pred_check_branch
      %137 = sbr.rel (0) target = $region37
    $region36: #{tpu_custom_call.1} parent=1 // pred_region
      %139 = vsyncadd [#allocation15], 0
      %s141 = sshll.u32 %s8, 4
      %s142 = int_to_ptr.hbm [resolvable:$true] %s141
      %s143 = sshll.u32 [#allocation16], 4
      %s144 = int_to_ptr.vmem [resolvable:$true] %s143
      %146 = dma.hbm_to_vmem [thread:$0]  %s142, 16, %s144, [#allocation15]
    $region37: #{tpu_custom_call.1} parent=1 // pred_fallthru
      _
    // Predicated region
    $region38: #{tpu_custom_call.1} parent=1 // pred_check
      _
    $region39: #{tpu_custom_call.1} parent=1 // pred_check_branch
      %148 = sbr.rel (0) target = $region41
    $region40: #{tpu_custom_call.1} parent=1 // pred_region
      %150 = vsyncadd [#allocation18], 0
      %s152 = sshll.u32 %s9, 4
      %s153 = int_to_ptr.hbm [resolvable:$true] %s152
      %s154 = sshll.u32 [#allocation17], 4
      %s155 = int_to_ptr.vmem [resolvable:$true] %s154
      %157 = dma.hbm_to_vmem [thread:$0]  %s153, 16, %s155, [#allocation18]
    $region41: #{tpu_custom_call.1} parent=1 // pred_fallthru
      _
    // Predicated region
    $region42: #{tpu_custom_call.1} parent=1 // pred_check
      _
    $region43: #{tpu_custom_call.1} parent=1 // pred_check_branch
      %159 = sbr.rel (0) target = $region45
    $region44: #{tpu_custom_call.1} parent=1 // pred_region
      %161 = vsyncadd [#allocation18], 0
      %s163 = sshll.u32 %s10, 4
      %s164 = int_to_ptr.hbm [resolvable:$true] %s163
      %s165 = sshll.u32 [#allocation19], 4
      %s166 = int_to_ptr.vmem [resolvable:$true] %s165
      %168 = dma.hbm_to_vmem [thread:$0]  %s164, 16, %s166, [#allocation18]
    $region45: #{tpu_custom_call.1} parent=1 // pred_fallthru
      _
    // Predicated region
    $region46: #{tpu_custom_call.1} parent=1 // pred_check
      _
    $region47: #{tpu_custom_call.1} parent=1 // pred_check_branch
      %170 = sbr.rel (0) target = $region49
    $region48: #{tpu_custom_call.1} parent=1 // pred_region
      %172 = vsyncadd [#allocation21], 0
      %s173 = sshll.u32 %s11, 4
      %s174 = int_to_ptr.hbm [resolvable:$true] %s173
      %s175 = sshll.u32 [#allocation20], 4
      %s176 = int_to_ptr.vmem [resolvable:$true] %s175
      %181 = dma.hbm_to_vmem [thread:$0]  %s174, 3072, %s176, [#allocation21], 64, 64, 4
    $region49: #{tpu_custom_call.1} parent=1 // pred_fallthru
      _
    // Predicated region
    $region50: #{tpu_custom_call.1} parent=1 // pred_check
      _
    $region51: #{tpu_custom_call.1} parent=1 // pred_check_branch
      %183 = sbr.rel (0) target = $region53
    $region52: #{tpu_custom_call.1} parent=1 // pred_region
      _
    $region53: #{tpu_custom_call.1} parent=1 // pred_fallthru
      _
    // Predicated region
    $region54: #{tpu_custom_call.1} parent=1 // pred_check
      _
    $region55: #{tpu_custom_call.1} parent=1 // pred_check_branch
      %185 = sbr.rel (0) target = $region57
    $region56: #{tpu_custom_call.1} parent=1 // pred_region
      %187 = vsyncadd [#allocation21], 0
      %s188 = sshll.u32 %s13, 4
      %s189 = int_to_ptr.hbm [resolvable:$true] %s188
      %s190 = sshll.u32 [#allocation22], 4
      %s191 = int_to_ptr.vmem [resolvable:$true] %s190
      %196 = dma.hbm_to_vmem [thread:$0]  %s189, 3072, %s191, [#allocation21], 64, 64, 4
    $region57: #{tpu_custom_call.1} parent=1 // pred_fallthru
      _
    // Predicated region
    $region58: #{tpu_custom_call.1} parent=1 // pred_check
      _
    $region59: #{tpu_custom_call.1} parent=1 // pred_check_branch
      %198 = sbr.rel (0) target = $region61
    $region60: #{tpu_custom_call.1} parent=1 // pred_region
      _
    $region61: #{tpu_custom_call.1} parent=1 // pred_fallthru
      _
    // Predicated region
    $region62: #{tpu_custom_call.1} parent=1 // pred_check
      _
    $region63: #{tpu_custom_call.1} parent=1 // pred_check_branch
      %200 = sbr.rel (0) target = $region65
    $region64: #{tpu_custom_call.1} parent=1 // pred_region
      _
    $region65: #{tpu_custom_call.1} parent=1 // pred_fallthru
      _
    // Predicated region
    $region66: #{tpu_custom_call.1} parent=1 // pred_check
      _
    $region67: #{tpu_custom_call.1} parent=1 // pred_check_branch
      %202 = sbr.rel (0) target = $region69
    $region68: #{tpu_custom_call.1} parent=1 // pred_region
      _
    $region69: #{tpu_custom_call.1} parent=1 // pred_fallthru
      _
    // Predicated region
    $region70: #{tpu_custom_call.1} parent=1 // pred_check
      _
    $region71: #{tpu_custom_call.1} parent=1 // pred_check_branch
      %204 = sbr.rel (0) target = $region73
    $region72: #{tpu_custom_call.1} parent=1 // pred_region
      %206 = vsyncadd [#allocation24], 0
      %s207 = sshll.u32 %s17, 4
      %s208 = int_to_ptr.hbm [resolvable:$true] %s207
      %s209 = sshll.u32 [#allocation23], 4
      %s210 = int_to_ptr.vmem [resolvable:$true] %s209
      %215 = dma.hbm_to_vmem [thread:$0]  %s208, 3072, %s210, [#allocation24], 64, 64, 4
    $region73: #{tpu_custom_call.1} parent=1 // pred_fallthru
      _
    // Predicated region
    $region74: #{tpu_custom_call.1} parent=1 // pred_check
      _
    $region75: #{tpu_custom_call.1} parent=1 // pred_check_branch
      %217 = sbr.rel (0) target = $region77
    $region76: #{tpu_custom_call.1} parent=1 // pred_region
      _
    $region77: #{tpu_custom_call.1} parent=1 // pred_fallthru
      _
    // Predicated region
    $region78: #{tpu_custom_call.1} parent=1 // pred_check
      _
    $region79: #{tpu_custom_call.1} parent=1 // pred_check_branch
      %219 = sbr.rel (0) target = $region81
    $region80: #{tpu_custom_call.1} parent=1 // pred_region
      %221 = vsyncadd [#allocation24], 0
      %s222 = sshll.u32 %s19, 4
      %s223 = int_to_ptr.hbm [resolvable:$true] %s222
      %s224 = sshll.u32 [#allocation25], 4
      %s225 = int_to_ptr.vmem [resolvable:$true] %s224
      %230 = dma.hbm_to_vmem [thread:$0]  %s223, 3072, %s225, [#allocation24], 64, 64, 4
    $region81: #{tpu_custom_call.1} parent=1 // pred_fallthru
      _
    // Predicated region
    $region82: #{tpu_custom_call.1} parent=1 // pred_check
      _
    $region83: #{tpu_custom_call.1} parent=1 // pred_check_branch
      %232 = sbr.rel (0) target = $region85
    $region84: #{tpu_custom_call.1} parent=1 // pred_region
      _
    $region85: #{tpu_custom_call.1} parent=1 // pred_fallthru
      _
    // Predicated region
    $region86: #{tpu_custom_call.1} parent=1 // pred_check
      _
    $region87: #{tpu_custom_call.1} parent=1 // pred_check_branch
      %234 = sbr.rel (0) target = $region89
    $region88: #{tpu_custom_call.1} parent=1 // pred_region
      %236 = vsyncadd [#allocation27], 0
      %s237 = sshll.u32 %s21, 4
      %s238 = int_to_ptr.hbm [resolvable:$true] %s237
      %s239 = sshll.u32 [#allocation26], 4
      %s240 = int_to_ptr.vmem [resolvable:$true] %s239
      %245 = dma.hbm_to_vmem [thread:$0]  %s238, 48, %s240, [#allocation27], 16, 16, 1
    $region89: #{tpu_custom_call.1} parent=1 // pred_fallthru
      _
    // Predicated region
    $region90: #{tpu_custom_call.1} parent=1 // pred_check
      _
    $region91: #{tpu_custom_call.1} parent=1 // pred_check_branch
      %247 = sbr.rel (0) target = $region93
    $region92: #{tpu_custom_call.1} parent=1 // pred_region
      _
    $region93: #{tpu_custom_call.1} parent=1 // pred_fallthru
      _
    // Predicated region
    $region94: #{tpu_custom_call.1} parent=1 // pred_check
      _
    $region95: #{tpu_custom_call.1} parent=1 // pred_check_branch
      %249 = sbr.rel (0) target = $region97
    $region96: #{tpu_custom_call.1} parent=1 // pred_region
      %251 = dma.done [#allocation3], 128
    $region97: #{tpu_custom_call.1} parent=1 // pred_fallthru
      _
    // Predicated region
    $region98: #{tpu_custom_call.1} parent=1 // pred_check
      _
    $region99: #{tpu_custom_call.1} parent=1 // pred_check_branch
      %253 = sbr.rel (0) target = $region101
    $region100: #{tpu_custom_call.1} parent=1 // pred_region
      %255 = dma.done [#allocation6], 128
    $region101: #{tpu_custom_call.1} parent=1 // pred_fallthru
      _
    // Predicated region
    $region102: #{tpu_custom_call.1} parent=1 // pred_check
      _
    $region103: #{tpu_custom_call.1} parent=1 // pred_check_branch
      %257 = sbr.rel (0) target = $region105
    $region104: #{tpu_custom_call.1} parent=1 // pred_region
      %259 = dma.done [#allocation6], 1024
    $region105: #{tpu_custom_call.1} parent=1 // pred_fallthru
      _
    // Predicated region
    $region106: #{tpu_custom_call.1} parent=1 // pred_check
      _
    $region107: #{tpu_custom_call.1} parent=1 // pred_check_branch
      %261 = sbr.rel (0) target = $region109
    $region108: #{tpu_custom_call.1} parent=1 // pred_region
      %263 = dma.done [#allocation9], 1024
    $region109: #{tpu_custom_call.1} parent=1 // pred_fallthru
      _
    // Predicated region
    $region110: #{tpu_custom_call.1} parent=1 // pred_check
      _
    $region111: #{tpu_custom_call.1} parent=1 // pred_check_branch
      %265 = sbr.rel (0) target = $region113
    $region112: #{tpu_custom_call.1} parent=1 // pred_region
      %267 = dma.done [#allocation9], 16
    $region113: #{tpu_custom_call.1} parent=1 // pred_fallthru
      _
    // Predicated region
    $region114: #{tpu_custom_call.1} parent=1 // pred_check
      _
    $region115: #{tpu_custom_call.1} parent=1 // pred_check_branch
      %269 = sbr.rel (0) target = $region117
    $region116: #{tpu_custom_call.1} parent=1 // pred_region
      %271 = dma.done [#allocation12], 16
    $region117: #{tpu_custom_call.1} parent=1 // pred_fallthru
      _
    // Predicated region
    $region118: #{tpu_custom_call.1} parent=1 // pred_check
      _
    $region119: #{tpu_custom_call.1} parent=1 // pred_check_branch
      %273 = sbr.rel (0) target = $region121
    $region120: #{tpu_custom_call.1} parent=1 // pred_region
      %275 = dma.done [#allocation12], 16
    $region121: #{tpu_custom_call.1} parent=1 // pred_fallthru
      _
    // Predicated region
    $region122: #{tpu_custom_call.1} parent=1 // pred_check
      _
    $region123: #{tpu_custom_call.1} parent=1 // pred_check_branch
      %277 = sbr.rel (0) target = $region125
    $region124: #{tpu_custom_call.1} parent=1 // pred_region
      %279 = dma.done [#allocation15], 1024
    $region125: #{tpu_custom_call.1} parent=1 // pred_fallthru
      _
    // Predicated region
    $region126: #{tpu_custom_call.1} parent=1 // pred_check
      _
    $region127: #{tpu_custom_call.1} parent=1 // pred_check_branch
      %281 = sbr.rel (0) target = $region129
    $region128: #{tpu_custom_call.1} parent=1 // pred_region
      %283 = dma.done [#allocation15], 16
    $region129: #{tpu_custom_call.1} parent=1 // pred_fallthru
      _
    // Predicated region
    $region130: #{tpu_custom_call.1} parent=1 // pred_check
      _
    $region131: #{tpu_custom_call.1} parent=1 // pred_check_branch
      %285 = sbr.rel (0) target = $region133
    $region132: #{tpu_custom_call.1} parent=1 // pred_region
      %287 = dma.done [#allocation18], 16
    $region133: #{tpu_custom_call.1} parent=1 // pred_fallthru
      _
    // Predicated region
    $region134: #{tpu_custom_call.1} parent=1 // pred_check
      _
    $region135: #{tpu_custom_call.1} parent=1 // pred_check_branch
      %289 = sbr.rel (0) target = $region137
    $region136: #{tpu_custom_call.1} parent=1 // pred_region
      %291 = dma.done [#allocation18], 16
    $region137: #{tpu_custom_call.1} parent=1 // pred_fallthru
      _
    // Predicated region
    $region138: #{tpu_custom_call.1} parent=1 // pred_check
      _
    $region139: #{tpu_custom_call.1} parent=1 // pred_check_branch
      %293 = sbr.rel (0) target = $region141
    $region140: #{tpu_custom_call.1} parent=1 // pred_region
      %295 = dma.done [#allocation21], 3072
    $region141: #{tpu_custom_call.1} parent=1 // pred_fallthru
      _
    // Predicated region
    $region142: #{tpu_custom_call.1} parent=1 // pred_check
      _
    $region143: #{tpu_custom_call.1} parent=1 // pred_check_branch
      %297 = sbr.rel (0) target = $region145
    $region144: #{tpu_custom_call.1} parent=1 // pred_region
      %299 = dma.done [#allocation21], 3072
    $region145: #{tpu_custom_call.1} parent=1 // pred_fallthru
      _
    // Predicated region
    $region146: #{tpu_custom_call.1} parent=1 // pred_check
      _
    $region147: #{tpu_custom_call.1} parent=1 // pred_check_branch
      %301 = sbr.rel (0) target = $region149
    $region148: #{tpu_custom_call.1} parent=1 // pred_region
      %303 = dma.done [#allocation24], 3072
    $region149: #{tpu_custom_call.1} parent=1 // pred_fallthru
      _
    // Predicated region
    $region150: #{tpu_custom_call.1} parent=1 // pred_check
      _
    $region151: #{tpu_custom_call.1} parent=1 // pred_check_branch
      %305 = sbr.rel (0) target = $region153
    $region152: #{tpu_custom_call.1} parent=1 // pred_region
      %307 = dma.done [#allocation24], 3072
    $region153: #{tpu_custom_call.1} parent=1 // pred_fallthru
      _
    // Predicated region
    $region154: #{tpu_custom_call.1} parent=1 // pred_check
      _
    $region155: #{tpu_custom_call.1} parent=1 // pred_check_branch
      %309 = sbr.rel (0) target = $region157
    $region156: #{tpu_custom_call.1} parent=1 // pred_region
      %311 = dma.done [#allocation27], 48
    $region157: #{tpu_custom_call.1} parent=1 // pred_fallthru
      _
    %v313 = vld [vmem:[#allocation2] sm:$0xf]
    %v314 = vld [vmem:[#allocation2 + $0x4] sm:$0xf]
    %v315 = vld [vmem:[#allocation5] sm:$0xf]
    %v316 = vld [vmem:[#allocation5 + $0x4] sm:$0xf]
    %v317 = vld [vmem:[#allocation7] sm:$0xf]
    %v318 = vld [vmem:[#allocation7 + $0x4] sm:$0xf]
    %v319 = vld [vmem:[#allocation7 + $0x8] sm:$0xf]
    %v320 = vld [vmem:[#allocation7 + $0xc] sm:$0xf]
    %v321 = vld [vmem:[#allocation7 + $0x10] sm:$0xf]
    %v322 = vld [vmem:[#allocation7 + $0x14] sm:$0xf]
    %v323 = vld [vmem:[#allocation7 + $0x18] sm:$0xf]
    %v324 = vld [vmem:[#allocation7 + $0x1c] sm:$0xf]
    %v325 = vld [vmem:[#allocation7 + $0x20] sm:$0xf]
    %v326 = vld [vmem:[#allocation7 + $0x24] sm:$0xf]
    %v327 = vld [vmem:[#allocation7 + $0x28] sm:$0xf]
    %v328 = vld [vmem:[#allocation7 + $0x2c] sm:$0xf]
    %v329 = vld [vmem:[#allocation7 + $0x30] sm:$0xf]
    %v330 = vld [vmem:[#allocation7 + $0x34] sm:$0xf]
    %v331 = vld [vmem:[#allocation7 + $0x38] sm:$0xf]
    %v332 = vld [vmem:[#allocation7 + $0x3c] sm:$0xf]
    %v335 = vunpack.c.l.b16 %v313
    %v336 = vunpack.c.l.b16 %v314
    %v337 = vpack.c.b16 %v336, %v335
    %v355 = vunpack.c.l.b16 %v317
    %v356 = vunpack.c.l.b16 %v318
    %v357 = vunpack.c.l.b16 %v319
    %v358 = vunpack.c.l.b16 %v320
    %v359 = vunpack.c.l.b16 %v321
    %v360 = vunpack.c.l.b16 %v322
    %v361 = vunpack.c.l.b16 %v323
    %v362 = vunpack.c.l.b16 %v324
    %v363 = vunpack.c.l.b16 %v325
    %v364 = vunpack.c.l.b16 %v326
    %v365 = vunpack.c.l.b16 %v327
    %v366 = vunpack.c.l.b16 %v328
    %v367 = vunpack.c.l.b16 %v329
    %v368 = vunpack.c.l.b16 %v330
    %v369 = vunpack.c.l.b16 %v331
    %v370 = vunpack.c.l.b16 %v332
    %v371 = vpack.c.b16 %v356, %v355
    %v372 = vpack.c.b16 %v358, %v357
    %v373 = vpack.c.b16 %v360, %v359
    %v374 = vpack.c.b16 %v362, %v361
    %v375 = vpack.c.b16 %v364, %v363
    %v376 = vpack.c.b16 %v366, %v365
    %v377 = vpack.c.b16 %v368, %v367
    %v378 = vpack.c.b16 %v370, %v369
    %387 = vmatpush.bf16.msra.mxu0 %v378
    %388 = vmatpush.bf16.msra.mxu0 %v377
    %389 = vmatpush.bf16.msra.mxu0 %v376
    %390 = vmatpush.bf16.msra.mxu0 %v375
    %391 = vmatpush.bf16.msra.mxu0 %v374
    %392 = vmatpush.bf16.msra.mxu0 %v373
    %393 = vmatpush.bf16.msra.mxu0 %v372
    %394 = vmatpush.bf16.msra.mxu0 %v371
    %395 = vmatmul.bf16.gmra.mxu0 %v337
    %v396 = vpop.f32.mrf.mxu0
    %v397 = vadd.f32 0.0, %v396
    %v398 = vpop.f32.mrf.mxu0
    %v399 = vadd.f32 0.0, %v398
    %400 = vdwg.mxu0
    %v401 = vpack.c.bf16 %v399, %v397
    %v402 = vld [vmem:[#allocation8] sm:$0xf]
    %v403 = vld [vmem:[#allocation8 + $0x4] sm:$0xf]
    %v404 = vld [vmem:[#allocation8 + $0x8] sm:$0xf]
    %v405 = vld [vmem:[#allocation8 + $0xc] sm:$0xf]
    %v406 = vld [vmem:[#allocation8 + $0x10] sm:$0xf]
    %v407 = vld [vmem:[#allocation8 + $0x14] sm:$0xf]
    %v408 = vld [vmem:[#allocation8 + $0x18] sm:$0xf]
    %v409 = vld [vmem:[#allocation8 + $0x1c] sm:$0xf]
    %v410 = vld [vmem:[#allocation8 + $0x20] sm:$0xf]
    %v411 = vld [vmem:[#allocation8 + $0x24] sm:$0xf]
    %v412 = vld [vmem:[#allocation8 + $0x28] sm:$0xf]
    %v413 = vld [vmem:[#allocation8 + $0x2c] sm:$0xf]
    %v414 = vld [vmem:[#allocation8 + $0x30] sm:$0xf]
    %v415 = vld [vmem:[#allocation8 + $0x34] sm:$0xf]
    %v416 = vld [vmem:[#allocation8 + $0x38] sm:$0xf]
    %v417 = vld [vmem:[#allocation8 + $0x3c] sm:$0xf]
    %v418 = vld [vmem:[#allocation10] sm:$0x1]
    %v420 = vperm.slane %v418, 0
    %v438 = vunpack.c.l.b16 %v402
    %v439 = vunpack.c.l.b16 %v403
    %v440 = vunpack.c.l.b16 %v404
    %v441 = vunpack.c.l.b16 %v405
    %v442 = vunpack.c.l.b16 %v406
    %v443 = vunpack.c.l.b16 %v407
    %v444 = vunpack.c.l.b16 %v408
    %v445 = vunpack.c.l.b16 %v409
    %v446 = vunpack.c.l.b16 %v410
    %v447 = vunpack.c.l.b16 %v411
    %v448 = vunpack.c.l.b16 %v412
    %v449 = vunpack.c.l.b16 %v413
    %v450 = vunpack.c.l.b16 %v414
    %v451 = vunpack.c.l.b16 %v415
    %v452 = vunpack.c.l.b16 %v416
    %v453 = vunpack.c.l.b16 %v417
    %v454 = vpack.c.b16 %v439, %v438
    %v455 = vpack.c.b16 %v441, %v440
    %v456 = vpack.c.b16 %v443, %v442
    %v457 = vpack.c.b16 %v445, %v444
    %v458 = vpack.c.b16 %v447, %v446
    %v459 = vpack.c.b16 %v449, %v448
    %v460 = vpack.c.b16 %v451, %v450
    %v461 = vpack.c.b16 %v453, %v452
    %470 = vmatpush.bf16.msra.mxu0 %v461
    %471 = vmatpush.bf16.msra.mxu0 %v460
    %472 = vmatpush.bf16.msra.mxu0 %v459
    %473 = vmatpush.bf16.msra.mxu0 %v458
    %474 = vmatpush.bf16.msra.mxu0 %v457
    %475 = vmatpush.bf16.msra.mxu0 %v456
    %476 = vmatpush.bf16.msra.mxu0 %v455
    %477 = vmatpush.bf16.msra.mxu0 %v454
    %478 = vmatmul.bf16.gmra.mxu0 %v401
    %v479 = vpop.f32.mrf.mxu0
    %v480 = vadd.f32 %v420, %v479
    %v481 = vpop.f32.mrf.mxu0
    %v482 = vadd.f32 %v420, %v481
    %483 = vdwg.mxu0
    %v484 = vmul.f32 %v480, 0.5
    %v485 = vmul.f32 %v482, 0.5
    %v486 = vmul.f32 %v480, %v480
    %v487 = vmul.f32 %v482, %v482
    %v488 = vmul.f32 %v486, %v480
    %v489 = vmul.f32 %v487, %v482
    %v490 = vmul.f32 %v488, 0.044715
    %v491 = vmul.f32 %v489, 0.044715
    %v492 = vadd.f32 %v480, %v490
    %v493 = vadd.f32 %v482, %v491
    %v494 = vmul.f32 %v492, 0.7978846
    %v495 = vmul.f32 %v493, 0.7978846
    %v496 = vtanh.pop %v494
    %v497 = vtanh.pop %v495
    %v498 = vadd.f32 %v496, 1.0
    %v499 = vadd.f32 %v497, 1.0
    %v500 = vmul.f32 %v484, %v498
    %v501 = vmul.f32 %v485, %v499
    %v502 = vld [vmem:[#allocation11] sm:$0x1]
    %v504 = vperm.slane %v502, 0
    %v506 = vmul.f32 %v500, %v504
    %v507 = vmul.f32 %v501, %v504
    %v508 = vld [vmem:[#allocation13] sm:$0x1]
    %v510 = vperm.slane %v508, 0
    %v512 = vadd.f32 %v506, %v510
    %v513 = vadd.f32 %v507, %v510
    %v514 = vpack.c.bf16 %v513, %v512
    %v515 = vld [vmem:[#allocation14] sm:$0xf]
    %v516 = vld [vmem:[#allocation14 + $0x4] sm:$0xf]
    %v517 = vld [vmem:[#allocation14 + $0x8] sm:$0xf]
    %v518 = vld [vmem:[#allocation14 + $0xc] sm:$0xf]
    %v519 = vld [vmem:[#allocation14 + $0x10] sm:$0xf]
    %v520 = vld [vmem:[#allocation14 + $0x14] sm:$0xf]
    %v521 = vld [vmem:[#allocation14 + $0x18] sm:$0xf]
    %v522 = vld [vmem:[#allocation14 + $0x1c] sm:$0xf]
    %v523 = vld [vmem:[#allocation14 + $0x20] sm:$0xf]
    %v524 = vld [vmem:[#allocation14 + $0x24] sm:$0xf]
    %v525 = vld [vmem:[#allocation14 + $0x28] sm:$0xf]
    %v526 = vld [vmem:[#allocation14 + $0x2c] sm:$0xf]
    %v527 = vld [vmem:[#allocation14 + $0x30] sm:$0xf]
    %v528 = vld [vmem:[#allocation14 + $0x34] sm:$0xf]
    %v529 = vld [vmem:[#allocation14 + $0x38] sm:$0xf]
    %v530 = vld [vmem:[#allocation14 + $0x3c] sm:$0xf]
    %v531 = vld [vmem:[#allocation16] sm:$0x1]
    %v533 = vperm.slane %v531, 0
    %v551 = vunpack.c.l.b16 %v515
    %v552 = vunpack.c.l.b16 %v516
    %v553 = vunpack.c.l.b16 %v517
    %v554 = vunpack.c.l.b16 %v518
    %v555 = vunpack.c.l.b16 %v519
    %v556 = vunpack.c.l.b16 %v520
    %v557 = vunpack.c.l.b16 %v521
    %v558 = vunpack.c.l.b16 %v522
    %v559 = vunpack.c.l.b16 %v523
    %v560 = vunpack.c.l.b16 %v524
    %v561 = vunpack.c.l.b16 %v525
    %v562 = vunpack.c.l.b16 %v526
    %v563 = vunpack.c.l.b16 %v527
    %v564 = vunpack.c.l.b16 %v528
    %v565 = vunpack.c.l.b16 %v529
    %v566 = vunpack.c.l.b16 %v530
    %v567 = vpack.c.b16 %v552, %v551
    %v568 = vpack.c.b16 %v554, %v553
    %v569 = vpack.c.b16 %v556, %v555
    %v570 = vpack.c.b16 %v558, %v557
    %v571 = vpack.c.b16 %v560, %v559
    %v572 = vpack.c.b16 %v562, %v561
    %v573 = vpack.c.b16 %v564, %v563
    %v574 = vpack.c.b16 %v566, %v565
    %583 = vmatpush.bf16.msra.mxu0 %v574
    %584 = vmatpush.bf16.msra.mxu0 %v573
    %585 = vmatpush.bf16.msra.mxu0 %v572
    %586 = vmatpush.bf16.msra.mxu0 %v571
    %587 = vmatpush.bf16.msra.mxu0 %v570
    %588 = vmatpush.bf16.msra.mxu0 %v569
    %589 = vmatpush.bf16.msra.mxu0 %v568
    %590 = vmatpush.bf16.msra.mxu0 %v567
    %591 = vmatmul.bf16.gmra.mxu0 %v514
    %v592 = vpop.f32.mrf.mxu0
    %v593 = vadd.f32 %v533, %v592
    %v594 = vpop.f32.mrf.mxu0
    %v595 = vadd.f32 %v533, %v594
    %596 = vdwg.mxu0
    %v597 = vmul.f32 %v593, 0.5
    %v598 = vmul.f32 %v595, 0.5
    %v599 = vmul.f32 %v593, %v593
    %v600 = vmul.f32 %v595, %v595
    %v601 = vmul.f32 %v599, %v593
    %v602 = vmul.f32 %v600, %v595
    %v603 = vmul.f32 %v601, 0.044715
    %v604 = vmul.f32 %v602, 0.044715
    %v605 = vadd.f32 %v593, %v603
    %v606 = vadd.f32 %v595, %v604
    %v607 = vmul.f32 %v605, 0.7978846
    %v608 = vmul.f32 %v606, 0.7978846
    %v609 = vtanh.pop %v607
    %v610 = vtanh.pop %v608
    %v611 = vadd.f32 %v609, 1.0
    %v612 = vadd.f32 %v610, 1.0
    %v613 = vmul.f32 %v597, %v611
    %v614 = vmul.f32 %v598, %v612
    %v615 = vld [vmem:[#allocation17] sm:$0x1]
    %v617 = vperm.slane %v615, 0
    %v619 = vmul.f32 %v613, %v617
    %v620 = vmul.f32 %v614, %v617
    %v621 = vld [vmem:[#allocation19] sm:$0x1]
    %v623 = vperm.slane %v621, 0
    %v625 = vadd.f32 %v619, %v623
    %v626 = vadd.f32 %v620, %v623
    %v627 = vadd.f32 %v625, %v613
    %v628 = vadd.f32 %v626, %v614
    %v629 = vpack.c.bf16 %v628, %v627
    %v632 = vunpack.c.l.b16 %v315
    %v633 = vunpack.c.l.b16 %v316
    %v634 = vpack.c.b16 %v633, %v632
    %vm635 = vcmask 130048
    %v637 = vsel %vm635, %v634, 0
    %639 = vmatpush.bf16.msra.mxu0 0
    %640 = vmatpush.bf16.msra.mxu0 0
    %641 = vmatpush.bf16.msra.mxu0 0
    %642 = vmatpush.bf16.msra.mxu0 0
    %643 = vmatpush.bf16.msra.mxu0 0
    %644 = vmatpush.bf16.msra.mxu0 0
    %645 = vmatpush.bf16.msra.mxu0 0
    %646 = vmatpush.bf16.msra.mxu0 %v629
    %647 = vmatmul.bf16.gmra.mxu0 %v637
    %v648 = vpop.f32.mrf.mxu0
    %v649 = vadd.f32 0.0, %v648
    %v650 = vpop.f32.mrf.mxu0
    %v651 = vadd.f32 0.0, %v650
    %652 = vdwg.mxu0
    %v653 = vpack.c.bf16 %v651, %v649
    %v654 = vld [vmem:[#allocation20] sm:$0xf]
    %v655 = vld [vmem:[#allocation20 + $0x4] sm:$0xf]
    %v656 = vld [vmem:[#allocation20 + $0x8] sm:$0xf]
    %v657 = vld [vmem:[#allocation20 + $0xc] sm:$0xf]
    %v658 = vld [vmem:[#allocation20 + $0x10] sm:$0xf]
    %v659 = vld [vmem:[#allocation20 + $0x14] sm:$0xf]
    %v660 = vld [vmem:[#allocation20 + $0x18] sm:$0xf]
    %v661 = vld [vmem:[#allocation20 + $0x1c] sm:$0xf]
    %v662 = vld [vmem:[#allocation20 + $0x20] sm:$0xf]
    %v663 = vld [vmem:[#allocation20 + $0x24] sm:$0xf]
    %v664 = vld [vmem:[#allocation20 + $0x28] sm:$0xf]
    %v665 = vld [vmem:[#allocation20 + $0x2c] sm:$0xf]
    %v666 = vld [vmem:[#allocation20 + $0x30] sm:$0xf]
    %v667 = vld [vmem:[#allocation20 + $0x34] sm:$0xf]
    %v668 = vld [vmem:[#allocation20 + $0x38] sm:$0xf]
    %v669 = vld [vmem:[#allocation20 + $0x3c] sm:$0xf]
    %v670 = vld [vmem:[%s12] sm:$0x1]
    %v672 = vperm.slane %v670, 0
    %v690 = vunpack.c.l.b16 %v654
    %v691 = vunpack.c.l.b16 %v655
    %v692 = vunpack.c.l.b16 %v656
    %v693 = vunpack.c.l.b16 %v657
    %v694 = vunpack.c.l.b16 %v658
    %v695 = vunpack.c.l.b16 %v659
    %v696 = vunpack.c.l.b16 %v660
    %v697 = vunpack.c.l.b16 %v661
    %v698 = vunpack.c.l.b16 %v662
    %v699 = vunpack.c.l.b16 %v663
    %v700 = vunpack.c.l.b16 %v664
    %v701 = vunpack.c.l.b16 %v665
    %v702 = vunpack.c.l.b16 %v666
    %v703 = vunpack.c.l.b16 %v667
    %v704 = vunpack.c.l.b16 %v668
    %v705 = vunpack.c.l.b16 %v669
    %v706 = vpack.c.b16 %v691, %v690
    %v707 = vpack.c.b16 %v693, %v692
    %v708 = vpack.c.b16 %v695, %v694
    %v709 = vpack.c.b16 %v697, %v696
    %v710 = vpack.c.b16 %v699, %v698
    %v711 = vpack.c.b16 %v701, %v700
    %v712 = vpack.c.b16 %v703, %v702
    %v713 = vpack.c.b16 %v705, %v704
    %722 = vmatpush.bf16.msra.mxu0 %v713
    %723 = vmatpush.bf16.msra.mxu0 %v712
    %724 = vmatpush.bf16.msra.mxu0 %v711
    %725 = vmatpush.bf16.msra.mxu0 %v710
    %726 = vmatpush.bf16.msra.mxu0 %v709
    %727 = vmatpush.bf16.msra.mxu0 %v708
    %728 = vmatpush.bf16.msra.mxu0 %v707
    %729 = vmatpush.bf16.msra.mxu0 %v706
    %730 = vmatmul.bf16.gmra.mxu0 %v653
    %v731 = vpop.f32.mrf.mxu0
    %v732 = vadd.f32 %v672, %v731
    %v733 = vpop.f32.mrf.mxu0
    %v734 = vadd.f32 %v672, %v733
    %735 = vdwg.mxu0
    %v736 = vmax.f32 %v732, 0.0
    %v737 = vmax.f32 %v734, 0.0
    %v738 = vld [vmem:[#allocation22] sm:$0xf]
    %v739 = vld [vmem:[#allocation22 + $0x4] sm:$0xf]
    %v740 = vld [vmem:[#allocation22 + $0x8] sm:$0xf]
    %v741 = vld [vmem:[#allocation22 + $0xc] sm:$0xf]
    %v742 = vld [vmem:[#allocation22 + $0x10] sm:$0xf]
    %v743 = vld [vmem:[#allocation22 + $0x14] sm:$0xf]
    %v744 = vld [vmem:[#allocation22 + $0x18] sm:$0xf]
    %v745 = vld [vmem:[#allocation22 + $0x1c] sm:$0xf]
    %v746 = vld [vmem:[#allocation22 + $0x20] sm:$0xf]
    %v747 = vld [vmem:[#allocation22 + $0x24] sm:$0xf]
    %v748 = vld [vmem:[#allocation22 + $0x28] sm:$0xf]
    %v749 = vld [vmem:[#allocation22 + $0x2c] sm:$0xf]
    %v750 = vld [vmem:[#allocation22 + $0x30] sm:$0xf]
    %v751 = vld [vmem:[#allocation22 + $0x34] sm:$0xf]
    %v752 = vld [vmem:[#allocation22 + $0x38] sm:$0xf]
    %v753 = vld [vmem:[#allocation22 + $0x3c] sm:$0xf]
    %v754 = vld [vmem:[%s14] sm:$0x1]
    %v756 = vperm.slane %v754, 0
    %v774 = vunpack.c.l.b16 %v738
    %v775 = vunpack.c.l.b16 %v739
    %v776 = vunpack.c.l.b16 %v740
    %v777 = vunpack.c.l.b16 %v741
    %v778 = vunpack.c.l.b16 %v742
    %v779 = vunpack.c.l.b16 %v743
    %v780 = vunpack.c.l.b16 %v744
    %v781 = vunpack.c.l.b16 %v745
    %v782 = vunpack.c.l.b16 %v746
    %v783 = vunpack.c.l.b16 %v747
    %v784 = vunpack.c.l.b16 %v748
    %v785 = vunpack.c.l.b16 %v749
    %v786 = vunpack.c.l.b16 %v750
    %v787 = vunpack.c.l.b16 %v751
    %v788 = vunpack.c.l.b16 %v752
    %v789 = vunpack.c.l.b16 %v753
    %v790 = vpack.c.b16 %v775, %v774
    %v791 = vpack.c.b16 %v777, %v776
    %v792 = vpack.c.b16 %v779, %v778
    %v793 = vpack.c.b16 %v781, %v780
    %v794 = vpack.c.b16 %v783, %v782
    %v795 = vpack.c.b16 %v785, %v784
    %v796 = vpack.c.b16 %v787, %v786
    %v797 = vpack.c.b16 %v789, %v788
    %806 = vmatpush.bf16.msra.mxu0 %v797
    %807 = vmatpush.bf16.msra.mxu0 %v796
    %808 = vmatpush.bf16.msra.mxu0 %v795
    %809 = vmatpush.bf16.msra.mxu0 %v794
    %810 = vmatpush.bf16.msra.mxu0 %v793
    %811 = vmatpush.bf16.msra.mxu0 %v792
    %812 = vmatpush.bf16.msra.mxu0 %v791
    %813 = vmatpush.bf16.msra.mxu0 %v790
    %814 = vmatmul.bf16.gmra.mxu0 %v629
    %v815 = vpop.f32.mrf.mxu0
    %v816 = vadd.f32 %v756, %v815
    %v817 = vpop.f32.mrf.mxu0
    %v818 = vadd.f32 %v756, %v817
    %819 = vdwg.mxu0
    %v820 = vmax.f32 %v816, 0.0
    %v821 = vmax.f32 %v818, 0.0
    %v822 = vadd.f32 %v736, %v820
    %v823 = vadd.f32 %v737, %v821
    %v824 = vld [vmem:[%s15] sm:$0x1]
    %v826 = vperm.slane %v824, 0
    %v828 = vmul.f32 %v822, %v826
    %v829 = vmul.f32 %v823, %v826
    %v830 = vld [vmem:[%s16] sm:$0x1]
    %v832 = vperm.slane %v830, 0
    %v834 = vadd.f32 %v828, %v832
    %v835 = vadd.f32 %v829, %v832
    %v836 = vunpack.c.l.bf16 %v315
    %v837 = vperm.slane %v836, 0
    %v838 = vlaneseq
    %v839 = vshrl.u32 %v838, 7
    %841 = vset.pattern.permute.xlu0 %v839
    %842 = vperm.xlu0 %841, %v837
    %v843 = vpop.permute.xlu0 %842
    %v844 = vperm.slane %v836, 1
    %v845 = vlaneseq
    %v846 = vshrl.u32 %v845, 7
    %848 = vset.pattern.permute.xlu0 %v846
    %849 = vperm.xlu0 %848, %v844
    %v850 = vpop.permute.xlu0 %849
    %v851 = vperm.slane %v836, 2
    %v852 = vlaneseq
    %v853 = vshrl.u32 %v852, 7
    %855 = vset.pattern.permute.xlu0 %v853
    %856 = vperm.xlu0 %855, %v851
    %v857 = vpop.permute.xlu0 %856
    %v858 = vperm.slane %v836, 3
    %v859 = vlaneseq
    %v860 = vshrl.u32 %v859, 7
    %862 = vset.pattern.permute.xlu0 %v860
    %863 = vperm.xlu0 %862, %v858
    %v864 = vpop.permute.xlu0 %863
    %v865 = vperm.slane %v836, 4
    %v866 = vlaneseq
    %v867 = vshrl.u32 %v866, 7
    %869 = vset.pattern.permute.xlu0 %v867
    %870 = vperm.xlu0 %869, %v865
    %v871 = vpop.permute.xlu0 %870
    %v872 = vperm.slane %v836, 5
    %v873 = vlaneseq
    %v874 = vshrl.u32 %v873, 7
    %876 = vset.pattern.permute.xlu0 %v874
    %877 = vperm.xlu0 %876, %v872
    %v878 = vpop.permute.xlu0 %877
    %v879 = vperm.slane %v836, 6
    %v880 = vlaneseq
    %v881 = vshrl.u32 %v880, 7
    %883 = vset.pattern.permute.xlu0 %v881
    %884 = vperm.xlu0 %883, %v879
    %v885 = vpop.permute.xlu0 %884
    %v886 = vperm.slane %v836, 7
    %v887 = vlaneseq
    %v888 = vshrl.u32 %v887, 7
    %890 = vset.pattern.permute.xlu0 %v888
    %891 = vperm.xlu0 %890, %v886
    %v892 = vpop.permute.xlu0 %891
    %vm893 = vcmp.gt.f32.partialorder %v843, 0.5
    %vm894 = vcmp.gt.f32.partialorder %v850, 0.5
    %vm895 = vcmp.gt.f32.partialorder %v857, 0.5
    %vm896 = vcmp.gt.f32.partialorder %v864, 0.5
    %vm897 = vcmp.gt.f32.partialorder %v871, 0.5
    %vm898 = vcmp.gt.f32.partialorder %v878, 0.5
    %vm899 = vcmp.gt.f32.partialorder %v885, 0.5
    %vm900 = vcmp.gt.f32.partialorder %v892, 0.5
    %v901 = vsel %vm893, 1, 0
    %v902 = vsel %vm894, 1, 0
    %v903 = vsel %vm895, 1, 0
    %v904 = vsel %vm896, 1, 0
    %v905 = vsel %vm897, 1, 0
    %v906 = vsel %vm898, 1, 0
    %v907 = vsel %vm899, 1, 0
    %v908 = vsel %vm900, 1, 0
    %vm909 = vcmp.eq.s32.totalorder %v901, 1
    %vm910 = vcmp.eq.s32.totalorder %v902, 1
    %vm911 = vcmp.eq.s32.totalorder %v903, 1
    %vm912 = vcmp.eq.s32.totalorder %v904, 1
    %vm913 = vcmp.eq.s32.totalorder %v905, 1
    %vm914 = vcmp.eq.s32.totalorder %v906, 1
    %vm915 = vcmp.eq.s32.totalorder %v907, 1
    %vm916 = vcmp.eq.s32.totalorder %v908, 1
    %v917 = vsel %vm909, %v834, -1e+30
    %v918 = vsel %vm910, %v834, -1e+30
    %v919 = vsel %vm911, %v834, -1e+30
    %v920 = vsel %vm912, %v834, -1e+30
    %v921 = vsel %vm913, %v834, -1e+30
    %v922 = vsel %vm914, %v834, -1e+30
    %v923 = vsel %vm915, %v834, -1e+30
    %v924 = vsel %vm916, %v834, -1e+30
    %v925 = vrot.slane %v917, 4
    %v926 = vmax.f32 %v917, %v925
    %v927 = vrot.slane %v926, 2
    %v928 = vmax.f32 %v926, %v927
    %v929 = vrot.slane %v928, 1
    %v930 = vmax.f32 %v928, %v929
    %v931 = vrot.slane %v918, 4
    %v932 = vmax.f32 %v918, %v931
    %v933 = vrot.slane %v932, 2
    %v934 = vmax.f32 %v932, %v933
    %v935 = vrot.slane %v934, 1
    %v936 = vmax.f32 %v934, %v935
    %v937 = vrot.slane %v919, 4
    %v938 = vmax.f32 %v919, %v937
    %v939 = vrot.slane %v938, 2
    %v940 = vmax.f32 %v938, %v939
    %v941 = vrot.slane %v940, 1
    %v942 = vmax.f32 %v940, %v941
    %v943 = vrot.slane %v920, 4
    %v944 = vmax.f32 %v920, %v943
    %v945 = vrot.slane %v944, 2
    %v946 = vmax.f32 %v944, %v945
    %v947 = vrot.slane %v946, 1
    %v948 = vmax.f32 %v946, %v947
    %v949 = vrot.slane %v921, 4
    %v950 = vmax.f32 %v921, %v949
    %v951 = vrot.slane %v950, 2
    %v952 = vmax.f32 %v950, %v951
    %v953 = vrot.slane %v952, 1
    %v954 = vmax.f32 %v952, %v953
    %v955 = vrot.slane %v922, 4
    %v956 = vmax.f32 %v922, %v955
    %v957 = vrot.slane %v956, 2
    %v958 = vmax.f32 %v956, %v957
    %v959 = vrot.slane %v958, 1
    %v960 = vmax.f32 %v958, %v959
    %v961 = vrot.slane %v923, 4
    %v962 = vmax.f32 %v923, %v961
    %v963 = vrot.slane %v962, 2
    %v964 = vmax.f32 %v962, %v963
    %v965 = vrot.slane %v964, 1
    %v966 = vmax.f32 %v964, %v965
    %v967 = vrot.slane %v924, 4
    %v968 = vmax.f32 %v924, %v967
    %v969 = vrot.slane %v968, 2
    %v970 = vmax.f32 %v968, %v969
    %v971 = vrot.slane %v970, 1
    %v972 = vmax.f32 %v970, %v971
    %v973 = vmax.f32 %v930, -1e+30
    %v974 = vmax.f32 %v936, -1e+30
    %v975 = vmax.f32 %v942, -1e+30
    %v976 = vmax.f32 %v948, -1e+30
    %v977 = vmax.f32 %v954, -1e+30
    %v978 = vmax.f32 %v960, -1e+30
    %v979 = vmax.f32 %v966, -1e+30
    %v980 = vmax.f32 %v972, -1e+30
    %v981 = vunpack.c.l.bf16 %v316
    %v982 = vperm.slane %v981, 0
    %v983 = vlaneseq
    %v984 = vshrl.u32 %v983, 7
    %v985 = vadd.s32 %v984, 8
    %986 = vset.pattern.permute.xlu0 %v985
    %987 = vperm.xlu0 %986, %v982
    %v988 = vpop.permute.xlu0 %987
    %v989 = vperm.slane %v981, 1
    %v990 = vlaneseq
    %v991 = vshrl.u32 %v990, 7
    %v992 = vadd.s32 %v991, 8
    %993 = vset.pattern.permute.xlu0 %v992
    %994 = vperm.xlu0 %993, %v989
    %v995 = vpop.permute.xlu0 %994
    %v996 = vperm.slane %v981, 2
    %v997 = vlaneseq
    %v998 = vshrl.u32 %v997, 7
    %v999 = vadd.s32 %v998, 8
    %1000 = vset.pattern.permute.xlu0 %v999
    %1001 = vperm.xlu0 %1000, %v996
    %v1002 = vpop.permute.xlu0 %1001
    %v1003 = vperm.slane %v981, 3
    %v1004 = vlaneseq
    %v1005 = vshrl.u32 %v1004, 7
    %v1006 = vadd.s32 %v1005, 8
    %1007 = vset.pattern.permute.xlu0 %v1006
    %1008 = vperm.xlu0 %1007, %v1003
    %v1009 = vpop.permute.xlu0 %1008
    %v1010 = vperm.slane %v981, 4
    %v1011 = vlaneseq
    %v1012 = vshrl.u32 %v1011, 7
    %v1013 = vadd.s32 %v1012, 8
    %1014 = vset.pattern.permute.xlu0 %v1013
    %1015 = vperm.xlu0 %1014, %v1010
    %v1016 = vpop.permute.xlu0 %1015
    %v1017 = vperm.slane %v981, 5
    %v1018 = vlaneseq
    %v1019 = vshrl.u32 %v1018, 7
    %v1020 = vadd.s32 %v1019, 8
    %1021 = vset.pattern.permute.xlu0 %v1020
    %1022 = vperm.xlu0 %1021, %v1017
    %v1023 = vpop.permute.xlu0 %1022
    %v1024 = vperm.slane %v981, 6
    %v1025 = vlaneseq
    %v1026 = vshrl.u32 %v1025, 7
    %v1027 = vadd.s32 %v1026, 8
    %1028 = vset.pattern.permute.xlu0 %v1027
    %1029 = vperm.xlu0 %1028, %v1024
    %v1030 = vpop.permute.xlu0 %1029
    %v1031 = vperm.slane %v981, 7
    %v1032 = vlaneseq
    %v1033 = vshrl.u32 %v1032, 7
    %v1034 = vadd.s32 %v1033, 8
    %1035 = vset.pattern.permute.xlu0 %v1034
    %1036 = vperm.xlu0 %1035, %v1031
    %v1037 = vpop.permute.xlu0 %1036
    %vm1038 = vcmp.gt.f32.partialorder %v988, 0.5
    %vm1039 = vcmp.gt.f32.partialorder %v995, 0.5
    %vm1040 = vcmp.gt.f32.partialorder %v1002, 0.5
    %vm1041 = vcmp.gt.f32.partialorder %v1009, 0.5
    %vm1042 = vcmp.gt.f32.partialorder %v1016, 0.5
    %vm1043 = vcmp.gt.f32.partialorder %v1023, 0.5
    %vm1044 = vcmp.gt.f32.partialorder %v1030, 0.5
    %vm1045 = vcmp.gt.f32.partialorder %v1037, 0.5
    %v1046 = vsel %vm1038, 1, 0
    %v1047 = vsel %vm1039, 1, 0
    %v1048 = vsel %vm1040, 1, 0
    %v1049 = vsel %vm1041, 1, 0
    %v1050 = vsel %vm1042, 1, 0
    %v1051 = vsel %vm1043, 1, 0
    %v1052 = vsel %vm1044, 1, 0
    %v1053 = vsel %vm1045, 1, 0
    %vm1054 = vcmp.eq.s32.totalorder %v1046, 1
    %vm1055 = vcmp.eq.s32.totalorder %v1047, 1
    %vm1056 = vcmp.eq.s32.totalorder %v1048, 1
    %vm1057 = vcmp.eq.s32.totalorder %v1049, 1
    %vm1058 = vcmp.eq.s32.totalorder %v1050, 1
    %vm1059 = vcmp.eq.s32.totalorder %v1051, 1
    %vm1060 = vcmp.eq.s32.totalorder %v1052, 1
    %vm1061 = vcmp.eq.s32.totalorder %v1053, 1
    %v1062 = vsel %vm1054, %v835, -1e+30
    %v1063 = vsel %vm1055, %v835, -1e+30
    %v1064 = vsel %vm1056, %v835, -1e+30
    %v1065 = vsel %vm1057, %v835, -1e+30
    %v1066 = vsel %vm1058, %v835, -1e+30
    %v1067 = vsel %vm1059, %v835, -1e+30
    %v1068 = vsel %vm1060, %v835, -1e+30
    %v1069 = vsel %vm1061, %v835, -1e+30
    %v1070 = vrot.slane %v1062, 4
    %v1071 = vmax.f32 %v1062, %v1070
    %v1072 = vrot.slane %v1071, 2
    %v1073 = vmax.f32 %v1071, %v1072
    %v1074 = vrot.slane %v1073, 1
    %v1075 = vmax.f32 %v1073, %v1074
    %v1076 = vrot.slane %v1063, 4
    %v1077 = vmax.f32 %v1063, %v1076
    %v1078 = vrot.slane %v1077, 2
    %v1079 = vmax.f32 %v1077, %v1078
    %v1080 = vrot.slane %v1079, 1
    %v1081 = vmax.f32 %v1079, %v1080
    %v1082 = vrot.slane %v1064, 4
    %v1083 = vmax.f32 %v1064, %v1082
    %v1084 = vrot.slane %v1083, 2
    %v1085 = vmax.f32 %v1083, %v1084
    %v1086 = vrot.slane %v1085, 1
    %v1087 = vmax.f32 %v1085, %v1086
    %v1088 = vrot.slane %v1065, 4
    %v1089 = vmax.f32 %v1065, %v1088
    %v1090 = vrot.slane %v1089, 2
    %v1091 = vmax.f32 %v1089, %v1090
    %v1092 = vrot.slane %v1091, 1
    %v1093 = vmax.f32 %v1091, %v1092
    %v1094 = vrot.slane %v1066, 4
    %v1095 = vmax.f32 %v1066, %v1094
    %v1096 = vrot.slane %v1095, 2
    %v1097 = vmax.f32 %v1095, %v1096
    %v1098 = vrot.slane %v1097, 1
    %v1099 = vmax.f32 %v1097, %v1098
    %v1100 = vrot.slane %v1067, 4
    %v1101 = vmax.f32 %v1067, %v1100
    %v1102 = vrot.slane %v1101, 2
    %v1103 = vmax.f32 %v1101, %v1102
    %v1104 = vrot.slane %v1103, 1
    %v1105 = vmax.f32 %v1103, %v1104
    %v1106 = vrot.slane %v1068, 4
    %v1107 = vmax.f32 %v1068, %v1106
    %v1108 = vrot.slane %v1107, 2
    %v1109 = vmax.f32 %v1107, %v1108
    %v1110 = vrot.slane %v1109, 1
    %v1111 = vmax.f32 %v1109, %v1110
    %v1112 = vrot.slane %v1069, 4
    %v1113 = vmax.f32 %v1069, %v1112
    %v1114 = vrot.slane %v1113, 2
    %v1115 = vmax.f32 %v1113, %v1114
    %v1116 = vrot.slane %v1115, 1
    %v1117 = vmax.f32 %v1115, %v1116
    %v1118 = vmax.f32 %v1075, -1e+30
    %v1119 = vmax.f32 %v1081, -1e+30
    %v1120 = vmax.f32 %v1087, -1e+30
    %v1121 = vmax.f32 %v1093, -1e+30
    %v1122 = vmax.f32 %v1099, -1e+30
    %v1123 = vmax.f32 %v1105, -1e+30
    %v1124 = vmax.f32 %v1111, -1e+30
    %v1125 = vmax.f32 %v1117, -1e+30
    %vm1134 = vcmask 1041409
    %v1135 = vsel %vm1134, %v974, %v973
    %vm1136 = vcmask 1042434
    %v1137 = vsel %vm1136, %v975, %v1135
    %vm1138 = vcmask 1043459
    %v1139 = vsel %vm1138, %v976, %v1137
    %vm1140 = vcmask 1044484
    %v1141 = vsel %vm1140, %v977, %v1139
    %vm1142 = vcmask 1045509
    %v1143 = vsel %vm1142, %v978, %v1141
    %vm1144 = vcmask 1046534
    %v1145 = vsel %vm1144, %v979, %v1143
    %vm1146 = vcmask 1047559
    %v1147 = vsel %vm1146, %v980, %v1145
    %v1157 = vsel %vm1134, %v1119, %v1118
    %v1158 = vsel %vm1136, %v1120, %v1157
    %v1159 = vsel %vm1138, %v1121, %v1158
    %v1160 = vsel %vm1140, %v1122, %v1159
    %v1161 = vsel %vm1142, %v1123, %v1160
    %v1162 = vsel %vm1144, %v1124, %v1161
    %v1163 = vsel %vm1146, %v1125, %v1162
    %v1165 = vpack.c.bf16 %v1163, %v1147
    %1166 = vmatpush.bf16.msra.mxu0 0
    %1167 = vmatpush.bf16.msra.mxu0 0
    %1168 = vmatpush.bf16.msra.mxu0 0
    %1169 = vmatpush.bf16.msra.mxu0 0
    %1170 = vmatpush.bf16.msra.mxu0 0
    %1171 = vmatpush.bf16.msra.mxu0 0
    %1172 = vmatpush.bf16.msra.mxu0 0
    %1173 = vmatpush.bf16.msra.mxu0 %v1165
    %1174 = vmatmul.bf16.gmra.mxu0 %v637
    %v1175 = vpop.f32.mrf.mxu0
    %v1176 = vadd.f32 0.0, %v1175
    %v1177 = vpop.f32.mrf.mxu0
    %v1178 = vadd.f32 0.0, %v1177
    %1179 = vdwg.mxu0
    %v1180 = vpack.c.bf16 %v1178, %v1176
    %v1181 = vld [vmem:[#allocation23] sm:$0xf]
    %v1182 = vld [vmem:[#allocation23 + $0x4] sm:$0xf]
    %v1183 = vld [vmem:[#allocation23 + $0x8] sm:$0xf]
    %v1184 = vld [vmem:[#allocation23 + $0xc] sm:$0xf]
    %v1185 = vld [vmem:[#allocation23 + $0x10] sm:$0xf]
    %v1186 = vld [vmem:[#allocation23 + $0x14] sm:$0xf]
    %v1187 = vld [vmem:[#allocation23 + $0x18] sm:$0xf]
    %v1188 = vld [vmem:[#allocation23 + $0x1c] sm:$0xf]
    %v1189 = vld [vmem:[#allocation23 + $0x20] sm:$0xf]
    %v1190 = vld [vmem:[#allocation23 + $0x24] sm:$0xf]
    %v1191 = vld [vmem:[#allocation23 + $0x28] sm:$0xf]
    %v1192 = vld [vmem:[#allocation23 + $0x2c] sm:$0xf]
    %v1193 = vld [vmem:[#allocation23 + $0x30] sm:$0xf]
    %v1194 = vld [vmem:[#allocation23 + $0x34] sm:$0xf]
    %v1195 = vld [vmem:[#allocation23 + $0x38] sm:$0xf]
    %v1196 = vld [vmem:[#allocation23 + $0x3c] sm:$0xf]
    %v1197 = vld [vmem:[%s18] sm:$0x1]
    %v1199 = vperm.slane %v1197, 0
    %v1217 = vunpack.c.l.b16 %v1181
    %v1218 = vunpack.c.l.b16 %v1182
    %v1219 = vunpack.c.l.b16 %v1183
    %v1220 = vunpack.c.l.b16 %v1184
    %v1221 = vunpack.c.l.b16 %v1185
    %v1222 = vunpack.c.l.b16 %v1186
    %v1223 = vunpack.c.l.b16 %v1187
    %v1224 = vunpack.c.l.b16 %v1188
    %v1225 = vunpack.c.l.b16 %v1189
    %v1226 = vunpack.c.l.b16 %v1190
    %v1227 = vunpack.c.l.b16 %v1191
    %v1228 = vunpack.c.l.b16 %v1192
    %v1229 = vunpack.c.l.b16 %v1193
    %v1230 = vunpack.c.l.b16 %v1194
    %v1231 = vunpack.c.l.b16 %v1195
    %v1232 = vunpack.c.l.b16 %v1196
    %v1233 = vpack.c.b16 %v1218, %v1217
    %v1234 = vpack.c.b16 %v1220, %v1219
    %v1235 = vpack.c.b16 %v1222, %v1221
    %v1236 = vpack.c.b16 %v1224, %v1223
    %v1237 = vpack.c.b16 %v1226, %v1225
    %v1238 = vpack.c.b16 %v1228, %v1227
    %v1239 = vpack.c.b16 %v1230, %v1229
    %v1240 = vpack.c.b16 %v1232, %v1231
    %1249 = vmatpush.bf16.msra.mxu0 %v1240
    %1250 = vmatpush.bf16.msra.mxu0 %v1239
    %1251 = vmatpush.bf16.msra.mxu0 %v1238
    %1252 = vmatpush.bf16.msra.mxu0 %v1237
    %1253 = vmatpush.bf16.msra.mxu0 %v1236
    %1254 = vmatpush.bf16.msra.mxu0 %v1235
    %1255 = vmatpush.bf16.msra.mxu0 %v1234
    %1256 = vmatpush.bf16.msra.mxu0 %v1233
    %1257 = vmatmul.bf16.gmra.mxu0 %v1180
    %v1258 = vpop.f32.mrf.mxu0
    %v1259 = vadd.f32 %v1199, %v1258
    %v1260 = vpop.f32.mrf.mxu0
    %v1261 = vadd.f32 %v1199, %v1260
    %1262 = vdwg.mxu0
    %v1263 = vmax.f32 %v1259, 0.0
    %v1264 = vmax.f32 %v1261, 0.0
    %v1265 = vld [vmem:[#allocation25] sm:$0xf]
    %v1266 = vld [vmem:[#allocation25 + $0x4] sm:$0xf]
    %v1267 = vld [vmem:[#allocation25 + $0x8] sm:$0xf]
    %v1268 = vld [vmem:[#allocation25 + $0xc] sm:$0xf]
    %v1269 = vld [vmem:[#allocation25 + $0x10] sm:$0xf]
    %v1270 = vld [vmem:[#allocation25 + $0x14] sm:$0xf]
    %v1271 = vld [vmem:[#allocation25 + $0x18] sm:$0xf]
    %v1272 = vld [vmem:[#allocation25 + $0x1c] sm:$0xf]
    %v1273 = vld [vmem:[#allocation25 + $0x20] sm:$0xf]
    %v1274 = vld [vmem:[#allocation25 + $0x24] sm:$0xf]
    %v1275 = vld [vmem:[#allocation25 + $0x28] sm:$0xf]
    %v1276 = vld [vmem:[#allocation25 + $0x2c] sm:$0xf]
    %v1277 = vld [vmem:[#allocation25 + $0x30] sm:$0xf]
    %v1278 = vld [vmem:[#allocation25 + $0x34] sm:$0xf]
    %v1279 = vld [vmem:[#allocation25 + $0x38] sm:$0xf]
    %v1280 = vld [vmem:[#allocation25 + $0x3c] sm:$0xf]
    %v1281 = vld [vmem:[%s20] sm:$0x1]
    %v1283 = vperm.slane %v1281, 0
    %v1301 = vunpack.c.l.b16 %v1265
    %v1302 = vunpack.c.l.b16 %v1266
    %v1303 = vunpack.c.l.b16 %v1267
    %v1304 = vunpack.c.l.b16 %v1268
    %v1305 = vunpack.c.l.b16 %v1269
    %v1306 = vunpack.c.l.b16 %v1270
    %v1307 = vunpack.c.l.b16 %v1271
    %v1308 = vunpack.c.l.b16 %v1272
    %v1309 = vunpack.c.l.b16 %v1273
    %v1310 = vunpack.c.l.b16 %v1274
    %v1311 = vunpack.c.l.b16 %v1275
    %v1312 = vunpack.c.l.b16 %v1276
    %v1313 = vunpack.c.l.b16 %v1277
    %v1314 = vunpack.c.l.b16 %v1278
    %v1315 = vunpack.c.l.b16 %v1279
    %v1316 = vunpack.c.l.b16 %v1280
    %v1317 = vpack.c.b16 %v1302, %v1301
    %v1318 = vpack.c.b16 %v1304, %v1303
    %v1319 = vpack.c.b16 %v1306, %v1305
    %v1320 = vpack.c.b16 %v1308, %v1307
    %v1321 = vpack.c.b16 %v1310, %v1309
    %v1322 = vpack.c.b16 %v1312, %v1311
    %v1323 = vpack.c.b16 %v1314, %v1313
    %v1324 = vpack.c.b16 %v1316, %v1315
    %1333 = vmatpush.bf16.msra.mxu0 %v1324
    %1334 = vmatpush.bf16.msra.mxu0 %v1323
    %1335 = vmatpush.bf16.msra.mxu0 %v1322
    %1336 = vmatpush.bf16.msra.mxu0 %v1321
    %1337 = vmatpush.bf16.msra.mxu0 %v1320
    %1338 = vmatpush.bf16.msra.mxu0 %v1319
    %1339 = vmatpush.bf16.msra.mxu0 %v1318
    %1340 = vmatpush.bf16.msra.mxu0 %v1317
    %1341 = vmatmul.bf16.gmra.mxu0 %v1165
    %v1342 = vpop.f32.mrf.mxu0
    %v1343 = vadd.f32 %v1283, %v1342
    %v1344 = vpop.f32.mrf.mxu0
    %v1345 = vadd.f32 %v1283, %v1344
    %1346 = vdwg.mxu0
    %v1347 = vmax.f32 %v1343, 0.0
    %v1348 = vmax.f32 %v1345, 0.0
    %v1349 = vadd.f32 %v1263, %v1347
    %v1350 = vadd.f32 %v1264, %v1348
    %v1351 = vld [vmem:[#allocation26] sm:$0x1]
    %v1353 = vperm.slane %v1351, 0
    %v1355 = vmul.f32 %v1349, %v1353
    %v1356 = vmul.f32 %v1350, %v1353
    %v1357 = vld [vmem:[%s22] sm:$0x1]
    %v1359 = vperm.slane %v1357, 0
    %v1361 = vadd.f32 %v1355, %v1359
    %v1362 = vadd.f32 %v1356, %v1359
    %1363 = vst [vmem:[#allocation28] sm:$0xff] %v1361
    %1364 = vst [vmem:[#allocation28 + $0x8] sm:$0xff] %v1362
    %v1365 = vpack.c.bf16 %v835, %v834
    %1366 = vmatpush.bf16.msra.mxu0 0
    %1367 = vmatpush.bf16.msra.mxu0 0
    %1368 = vmatpush.bf16.msra.mxu0 0
    %1369 = vmatpush.bf16.msra.mxu0 0
    %1370 = vmatpush.bf16.msra.mxu0 0
    %1371 = vmatpush.bf16.msra.mxu0 0
    %1372 = vmatpush.bf16.msra.mxu0 0
    %1373 = vmatpush.bf16.msra.mxu0 %v1365
    %1374 = vmatmul.bf16.gmra.mxu0 %v637
    %v1375 = vpop.f32.mrf.mxu0
    %v1376 = vadd.f32 0.0, %v1375
    %v1377 = vpop.f32.mrf.mxu0
    %v1378 = vadd.f32 0.0, %v1377
    %1379 = vdwg.mxu0
    %v1380 = vpack.c.bf16 %v1378, %v1376
    %s1381 = scalar_lea.vmem [#allocation20], 64
    %v1382 = vld [vmem:[%s1381] sm:$0xf]
    %v1383 = vld [vmem:[%s1381 + $0x4] sm:$0xf]
    %v1384 = vld [vmem:[%s1381 + $0x8] sm:$0xf]
    %v1385 = vld [vmem:[%s1381 + $0xc] sm:$0xf]
    %v1386 = vld [vmem:[%s1381 + $0x10] sm:$0xf]
    %v1387 = vld [vmem:[%s1381 + $0x14] sm:$0xf]
    %v1388 = vld [vmem:[%s1381 + $0x18] sm:$0xf]
    %v1389 = vld [vmem:[%s1381 + $0x1c] sm:$0xf]
    %v1390 = vld [vmem:[%s1381 + $0x20] sm:$0xf]
    %v1391 = vld [vmem:[%s1381 + $0x24] sm:$0xf]
    %v1392 = vld [vmem:[%s1381 + $0x28] sm:$0xf]
    %v1393 = vld [vmem:[%s1381 + $0x2c] sm:$0xf]
    %v1394 = vld [vmem:[%s1381 + $0x30] sm:$0xf]
    %v1395 = vld [vmem:[%s1381 + $0x34] sm:$0xf]
    %v1396 = vld [vmem:[%s1381 + $0x38] sm:$0xf]
    %v1397 = vld [vmem:[%s1381 + $0x3c] sm:$0xf]
    %s1398 = scalar_lea.vmem %s12, 1
    %v1399 = vld [vmem:[%s1398] sm:$0x1]
    %v1401 = vperm.slane %v1399, 0
    %v1419 = vunpack.c.l.b16 %v1382
    %v1420 = vunpack.c.l.b16 %v1383
    %v1421 = vunpack.c.l.b16 %v1384
    %v1422 = vunpack.c.l.b16 %v1385
    %v1423 = vunpack.c.l.b16 %v1386
    %v1424 = vunpack.c.l.b16 %v1387
    %v1425 = vunpack.c.l.b16 %v1388
    %v1426 = vunpack.c.l.b16 %v1389
    %v1427 = vunpack.c.l.b16 %v1390
    %v1428 = vunpack.c.l.b16 %v1391
    %v1429 = vunpack.c.l.b16 %v1392
    %v1430 = vunpack.c.l.b16 %v1393
    %v1431 = vunpack.c.l.b16 %v1394
    %v1432 = vunpack.c.l.b16 %v1395
    %v1433 = vunpack.c.l.b16 %v1396
    %v1434 = vunpack.c.l.b16 %v1397
    %v1435 = vpack.c.b16 %v1420, %v1419
    %v1436 = vpack.c.b16 %v1422, %v1421
    %v1437 = vpack.c.b16 %v1424, %v1423
    %v1438 = vpack.c.b16 %v1426, %v1425
    %v1439 = vpack.c.b16 %v1428, %v1427
    %v1440 = vpack.c.b16 %v1430, %v1429
    %v1441 = vpack.c.b16 %v1432, %v1431
    %v1442 = vpack.c.b16 %v1434, %v1433
    %1451 = vmatpush.bf16.msra.mxu0 %v1442
    %1452 = vmatpush.bf16.msra.mxu0 %v1441
    %1453 = vmatpush.bf16.msra.mxu0 %v1440
    %1454 = vmatpush.bf16.msra.mxu0 %v1439
    %1455 = vmatpush.bf16.msra.mxu0 %v1438
    %1456 = vmatpush.bf16.msra.mxu0 %v1437
    %1457 = vmatpush.bf16.msra.mxu0 %v1436
    %1458 = vmatpush.bf16.msra.mxu0 %v1435
    %1459 = vmatmul.bf16.gmra.mxu0 %v1380
    %v1460 = vpop.f32.mrf.mxu0
    %v1461 = vadd.f32 %v1401, %v1460
    %v1462 = vpop.f32.mrf.mxu0
    %v1463 = vadd.f32 %v1401, %v1462
    %1464 = vdwg.mxu0
    %v1465 = vmax.f32 %v1461, 0.0
    %v1466 = vmax.f32 %v1463, 0.0
    %s1467 = scalar_lea.vmem [#allocation22], 64
    %v1468 = vld [vmem:[%s1467] sm:$0xf]
    %v1469 = vld [vmem:[%s1467 + $0x4] sm:$0xf]
    %v1470 = vld [vmem:[%s1467 + $0x8] sm:$0xf]
    %v1471 = vld [vmem:[%s1467 + $0xc] sm:$0xf]
    %v1472 = vld [vmem:[%s1467 + $0x10] sm:$0xf]
    %v1473 = vld [vmem:[%s1467 + $0x14] sm:$0xf]
    %v1474 = vld [vmem:[%s1467 + $0x18] sm:$0xf]
    %v1475 = vld [vmem:[%s1467 + $0x1c] sm:$0xf]
    %v1476 = vld [vmem:[%s1467 + $0x20] sm:$0xf]
    %v1477 = vld [vmem:[%s1467 + $0x24] sm:$0xf]
    %v1478 = vld [vmem:[%s1467 + $0x28] sm:$0xf]
    %v1479 = vld [vmem:[%s1467 + $0x2c] sm:$0xf]
    %v1480 = vld [vmem:[%s1467 + $0x30] sm:$0xf]
    %v1481 = vld [vmem:[%s1467 + $0x34] sm:$0xf]
    %v1482 = vld [vmem:[%s1467 + $0x38] sm:$0xf]
    %v1483 = vld [vmem:[%s1467 + $0x3c] sm:$0xf]
    %s1484 = scalar_lea.vmem %s14, 1
    %v1485 = vld [vmem:[%s1484] sm:$0x1]
    %v1487 = vperm.slane %v1485, 0
    %v1505 = vunpack.c.l.b16 %v1468
    %v1506 = vunpack.c.l.b16 %v1469
    %v1507 = vunpack.c.l.b16 %v1470
    %v1508 = vunpack.c.l.b16 %v1471
    %v1509 = vunpack.c.l.b16 %v1472
    %v1510 = vunpack.c.l.b16 %v1473
    %v1511 = vunpack.c.l.b16 %v1474
    %v1512 = vunpack.c.l.b16 %v1475
    %v1513 = vunpack.c.l.b16 %v1476
    %v1514 = vunpack.c.l.b16 %v1477
    %v1515 = vunpack.c.l.b16 %v1478
    %v1516 = vunpack.c.l.b16 %v1479
    %v1517 = vunpack.c.l.b16 %v1480
    %v1518 = vunpack.c.l.b16 %v1481
    %v1519 = vunpack.c.l.b16 %v1482
    %v1520 = vunpack.c.l.b16 %v1483
    %v1521 = vpack.c.b16 %v1506, %v1505
    %v1522 = vpack.c.b16 %v1508, %v1507
    %v1523 = vpack.c.b16 %v1510, %v1509
    %v1524 = vpack.c.b16 %v1512, %v1511
    %v1525 = vpack.c.b16 %v1514, %v1513
    %v1526 = vpack.c.b16 %v1516, %v1515
    %v1527 = vpack.c.b16 %v1518, %v1517
    %v1528 = vpack.c.b16 %v1520, %v1519
    %1537 = vmatpush.bf16.msra.mxu0 %v1528
    %1538 = vmatpush.bf16.msra.mxu0 %v1527
    %1539 = vmatpush.bf16.msra.mxu0 %v1526
    %1540 = vmatpush.bf16.msra.mxu0 %v1525
    %1541 = vmatpush.bf16.msra.mxu0 %v1524
    %1542 = vmatpush.bf16.msra.mxu0 %v1523
    %1543 = vmatpush.bf16.msra.mxu0 %v1522
    %1544 = vmatpush.bf16.msra.mxu0 %v1521
    %1545 = vmatmul.bf16.gmra.mxu0 %v1365
    %v1546 = vpop.f32.mrf.mxu0
    %v1547 = vadd.f32 %v1487, %v1546
    %v1548 = vpop.f32.mrf.mxu0
    %v1549 = vadd.f32 %v1487, %v1548
    %1550 = vdwg.mxu0
    %v1551 = vmax.f32 %v1547, 0.0
    %v1552 = vmax.f32 %v1549, 0.0
    %v1553 = vadd.f32 %v1465, %v1551
    %v1554 = vadd.f32 %v1466, %v1552
    %s1555 = scalar_lea.vmem %s15, 1
    %v1556 = vld [vmem:[%s1555] sm:$0x1]
    %v1558 = vperm.slane %v1556, 0
    %v1560 = vmul.f32 %v1553, %v1558
    %v1561 = vmul.f32 %v1554, %v1558
    %s1562 = scalar_lea.vmem %s16, 1
    %v1563 = vld [vmem:[%s1562] sm:$0x1]
    %v1565 = vperm.slane %v1563, 0
    %v1567 = vadd.f32 %v1560, %v1565
    %v1568 = vadd.f32 %v1561, %v1565
    %v1569 = vsel %vm909, %v1567, -1e+30
    %v1570 = vsel %vm910, %v1567, -1e+30
    %v1571 = vsel %vm911, %v1567, -1e+30
    %v1572 = vsel %vm912, %v1567, -1e+30
    %v1573 = vsel %vm913, %v1567, -1e+30
    %v1574 = vsel %vm914, %v1567, -1e+30
    %v1575 = vsel %vm915, %v1567, -1e+30
    %v1576 = vsel %vm916, %v1567, -1e+30
    %v1577 = vrot.slane %v1569, 4
    %v1578 = vmax.f32 %v1569, %v1577
    %v1579 = vrot.slane %v1578, 2
    %v1580 = vmax.f32 %v1578, %v1579
    %v1581 = vrot.slane %v1580, 1
    %v1582 = vmax.f32 %v1580, %v1581
    %v1583 = vrot.slane %v1570, 4
    %v1584 = vmax.f32 %v1570, %v1583
    %v1585 = vrot.slane %v1584, 2
    %v1586 = vmax.f32 %v1584, %v1585
    %v1587 = vrot.slane %v1586, 1
    %v1588 = vmax.f32 %v1586, %v1587
    %v1589 = vrot.slane %v1571, 4
    %v1590 = vmax.f32 %v1571, %v1589
    %v1591 = vrot.slane %v1590, 2
    %v1592 = vmax.f32 %v1590, %v1591
    %v1593 = vrot.slane %v1592, 1
    %v1594 = vmax.f32 %v1592, %v1593
    %v1595 = vrot.slane %v1572, 4
    %v1596 = vmax.f32 %v1572, %v1595
    %v1597 = vrot.slane %v1596, 2
    %v1598 = vmax.f32 %v1596, %v1597
    %v1599 = vrot.slane %v1598, 1
    %v1600 = vmax.f32 %v1598, %v1599
    %v1601 = vrot.slane %v1573, 4
    %v1602 = vmax.f32 %v1573, %v1601
    %v1603 = vrot.slane %v1602, 2
    %v1604 = vmax.f32 %v1602, %v1603
    %v1605 = vrot.slane %v1604, 1
    %v1606 = vmax.f32 %v1604, %v1605
    %v1607 = vrot.slane %v1574, 4
    %v1608 = vmax.f32 %v1574, %v1607
    %v1609 = vrot.slane %v1608, 2
    %v1610 = vmax.f32 %v1608, %v1609
    %v1611 = vrot.slane %v1610, 1
    %v1612 = vmax.f32 %v1610, %v1611
    %v1613 = vrot.slane %v1575, 4
    %v1614 = vmax.f32 %v1575, %v1613
    %v1615 = vrot.slane %v1614, 2
    %v1616 = vmax.f32 %v1614, %v1615
    %v1617 = vrot.slane %v1616, 1
    %v1618 = vmax.f32 %v1616, %v1617
    %v1619 = vrot.slane %v1576, 4
    %v1620 = vmax.f32 %v1576, %v1619
    %v1621 = vrot.slane %v1620, 2
    %v1622 = vmax.f32 %v1620, %v1621
    %v1623 = vrot.slane %v1622, 1
    %v1624 = vmax.f32 %v1622, %v1623
    %v1625 = vmax.f32 %v1582, -1e+30
    %v1626 = vmax.f32 %v1588, -1e+30
    %v1627 = vmax.f32 %v1594, -1e+30
    %v1628 = vmax.f32 %v1600, -1e+30
    %v1629 = vmax.f32 %v1606, -1e+30
    %v1630 = vmax.f32 %v1612, -1e+30
    %v1631 = vmax.f32 %v1618, -1e+30
    %v1632 = vmax.f32 %v1624, -1e+30
    %v1633 = vsel %vm1054, %v1568, -1e+30
    %v1634 = vsel %vm1055, %v1568, -1e+30
    %v1635 = vsel %vm1056, %v1568, -1e+30
    %v1636 = vsel %vm1057, %v1568, -1e+30
    %v1637 = vsel %vm1058, %v1568, -1e+30
    %v1638 = vsel %vm1059, %v1568, -1e+30
    %v1639 = vsel %vm1060, %v1568, -1e+30
    %v1640 = vsel %vm1061, %v1568, -1e+30
    %v1641 = vrot.slane %v1633, 4
    %v1642 = vmax.f32 %v1633, %v1641
    %v1643 = vrot.slane %v1642, 2
    %v1644 = vmax.f32 %v1642, %v1643
    %v1645 = vrot.slane %v1644, 1
    %v1646 = vmax.f32 %v1644, %v1645
    %v1647 = vrot.slane %v1634, 4
    %v1648 = vmax.f32 %v1634, %v1647
    %v1649 = vrot.slane %v1648, 2
    %v1650 = vmax.f32 %v1648, %v1649
    %v1651 = vrot.slane %v1650, 1
    %v1652 = vmax.f32 %v1650, %v1651
    %v1653 = vrot.slane %v1635, 4
    %v1654 = vmax.f32 %v1635, %v1653
    %v1655 = vrot.slane %v1654, 2
    %v1656 = vmax.f32 %v1654, %v1655
    %v1657 = vrot.slane %v1656, 1
    %v1658 = vmax.f32 %v1656, %v1657
    %v1659 = vrot.slane %v1636, 4
    %v1660 = vmax.f32 %v1636, %v1659
    %v1661 = vrot.slane %v1660, 2
    %v1662 = vmax.f32 %v1660, %v1661
    %v1663 = vrot.slane %v1662, 1
    %v1664 = vmax.f32 %v1662, %v1663
    %v1665 = vrot.slane %v1637, 4
    %v1666 = vmax.f32 %v1637, %v1665
    %v1667 = vrot.slane %v1666, 2
    %v1668 = vmax.f32 %v1666, %v1667
    %v1669 = vrot.slane %v1668, 1
    %v1670 = vmax.f32 %v1668, %v1669
    %v1671 = vrot.slane %v1638, 4
    %v1672 = vmax.f32 %v1638, %v1671
    %v1673 = vrot.slane %v1672, 2
    %v1674 = vmax.f32 %v1672, %v1673
    %v1675 = vrot.slane %v1674, 1
    %v1676 = vmax.f32 %v1674, %v1675
    %v1677 = vrot.slane %v1639, 4
    %v1678 = vmax.f32 %v1639, %v1677
    %v1679 = vrot.slane %v1678, 2
    %v1680 = vmax.f32 %v1678, %v1679
    %v1681 = vrot.slane %v1680, 1
    %v1682 = vmax.f32 %v1680, %v1681
    %v1683 = vrot.slane %v1640, 4
    %v1684 = vmax.f32 %v1640, %v1683
    %v1685 = vrot.slane %v1684, 2
    %v1686 = vmax.f32 %v1684, %v1685
    %v1687 = vrot.slane %v1686, 1
    %v1688 = vmax.f32 %v1686, %v1687
    %v1689 = vmax.f32 %v1646, -1e+30
    %v1690 = vmax.f32 %v1652, -1e+30
    %v1691 = vmax.f32 %v1658, -1e+30
    %v1692 = vmax.f32 %v1664, -1e+30
    %v1693 = vmax.f32 %v1670, -1e+30
    %v1694 = vmax.f32 %v1676, -1e+30
    %v1695 = vmax.f32 %v1682, -1e+30
    %v1696 = vmax.f32 %v1688, -1e+30
    %v1705 = vsel %vm1134, %v1626, %v1625
    %v1706 = vsel %vm1136, %v1627, %v1705
    %v1707 = vsel %vm1138, %v1628, %v1706
    %v1708 = vsel %vm1140, %v1629, %v1707
    %v1709 = vsel %vm1142, %v1630, %v1708
    %v1710 = vsel %vm1144, %v1631, %v1709
    %v1711 = vsel %vm1146, %v1632, %v1710
    %v1721 = vsel %vm1134, %v1690, %v1689
    %v1722 = vsel %vm1136, %v1691, %v1721
    %v1723 = vsel %vm1138, %v1692, %v1722
    %v1724 = vsel %vm1140, %v1693, %v1723
    %v1725 = vsel %vm1142, %v1694, %v1724
    %v1726 = vsel %vm1144, %v1695, %v1725
    %v1727 = vsel %vm1146, %v1696, %v1726
    %v1729 = vpack.c.bf16 %v1727, %v1711
    %1730 = vmatpush.bf16.msra.mxu0 0
    %1731 = vmatpush.bf16.msra.mxu0 0
    %1732 = vmatpush.bf16.msra.mxu0 0
    %1733 = vmatpush.bf16.msra.mxu0 0
    %1734 = vmatpush.bf16.msra.mxu0 0
    %1735 = vmatpush.bf16.msra.mxu0 0
    %1736 = vmatpush.bf16.msra.mxu0 0
    %1737 = vmatpush.bf16.msra.mxu0 %v1729
    %1738 = vmatmul.bf16.gmra.mxu0 %v637
    %v1739 = vpop.f32.mrf.mxu0
    %v1740 = vadd.f32 0.0, %v1739
    %v1741 = vpop.f32.mrf.mxu0
    %v1742 = vadd.f32 0.0, %v1741
    %1743 = vdwg.mxu0
    %v1744 = vpack.c.bf16 %v1742, %v1740
    %s1745 = scalar_lea.vmem [#allocation23], 64
    %v1746 = vld [vmem:[%s1745] sm:$0xf]
    %v1747 = vld [vmem:[%s1745 + $0x4] sm:$0xf]
    %v1748 = vld [vmem:[%s1745 + $0x8] sm:$0xf]
    %v1749 = vld [vmem:[%s1745 + $0xc] sm:$0xf]
    %v1750 = vld [vmem:[%s1745 + $0x10] sm:$0xf]
    %v1751 = vld [vmem:[%s1745 + $0x14] sm:$0xf]
    %v1752 = vld [vmem:[%s1745 + $0x18] sm:$0xf]
    %v1753 = vld [vmem:[%s1745 + $0x1c] sm:$0xf]
    %v1754 = vld [vmem:[%s1745 + $0x20] sm:$0xf]
    %v1755 = vld [vmem:[%s1745 + $0x24] sm:$0xf]
    %v1756 = vld [vmem:[%s1745 + $0x28] sm:$0xf]
    %v1757 = vld [vmem:[%s1745 + $0x2c] sm:$0xf]
    %v1758 = vld [vmem:[%s1745 + $0x30] sm:$0xf]
    %v1759 = vld [vmem:[%s1745 + $0x34] sm:$0xf]
    %v1760 = vld [vmem:[%s1745 + $0x38] sm:$0xf]
    %v1761 = vld [vmem:[%s1745 + $0x3c] sm:$0xf]
    %s1762 = scalar_lea.vmem %s18, 1
    %v1763 = vld [vmem:[%s1762] sm:$0x1]
    %v1765 = vperm.slane %v1763, 0
    %v1783 = vunpack.c.l.b16 %v1746
    %v1784 = vunpack.c.l.b16 %v1747
    %v1785 = vunpack.c.l.b16 %v1748
    %v1786 = vunpack.c.l.b16 %v1749
    %v1787 = vunpack.c.l.b16 %v1750
    %v1788 = vunpack.c.l.b16 %v1751
    %v1789 = vunpack.c.l.b16 %v1752
    %v1790 = vunpack.c.l.b16 %v1753
    %v1791 = vunpack.c.l.b16 %v1754
    %v1792 = vunpack.c.l.b16 %v1755
    %v1793 = vunpack.c.l.b16 %v1756
    %v1794 = vunpack.c.l.b16 %v1757
    %v1795 = vunpack.c.l.b16 %v1758
    %v1796 = vunpack.c.l.b16 %v1759
    %v1797 = vunpack.c.l.b16 %v1760
    %v1798 = vunpack.c.l.b16 %v1761
    %v1799 = vpack.c.b16 %v1784, %v1783
    %v1800 = vpack.c.b16 %v1786, %v1785
    %v1801 = vpack.c.b16 %v1788, %v1787
    %v1802 = vpack.c.b16 %v1790, %v1789
    %v1803 = vpack.c.b16 %v1792, %v1791
    %v1804 = vpack.c.b16 %v1794, %v1793
    %v1805 = vpack.c.b16 %v1796, %v1795
    %v1806 = vpack.c.b16 %v1798, %v1797
    %1815 = vmatpush.bf16.msra.mxu0 %v1806
    %1816 = vmatpush.bf16.msra.mxu0 %v1805
    %1817 = vmatpush.bf16.msra.mxu0 %v1804
    %1818 = vmatpush.bf16.msra.mxu0 %v1803
    %1819 = vmatpush.bf16.msra.mxu0 %v1802
    %1820 = vmatpush.bf16.msra.mxu0 %v1801
    %1821 = vmatpush.bf16.msra.mxu0 %v1800
    %1822 = vmatpush.bf16.msra.mxu0 %v1799
    %1823 = vmatmul.bf16.gmra.mxu0 %v1744
    %v1824 = vpop.f32.mrf.mxu0
    %v1825 = vadd.f32 %v1765, %v1824
    %v1826 = vpop.f32.mrf.mxu0
    %v1827 = vadd.f32 %v1765, %v1826
    %1828 = vdwg.mxu0
    %v1829 = vmax.f32 %v1825, 0.0
    %v1830 = vmax.f32 %v1827, 0.0
    %s1831 = scalar_lea.vmem [#allocation25], 64
    %v1832 = vld [vmem:[%s1831] sm:$0xf]
    %v1833 = vld [vmem:[%s1831 + $0x4] sm:$0xf]
    %v1834 = vld [vmem:[%s1831 + $0x8] sm:$0xf]
    %v1835 = vld [vmem:[%s1831 + $0xc] sm:$0xf]
    %v1836 = vld [vmem:[%s1831 + $0x10] sm:$0xf]
    %v1837 = vld [vmem:[%s1831 + $0x14] sm:$0xf]
    %v1838 = vld [vmem:[%s1831 + $0x18] sm:$0xf]
    %v1839 = vld [vmem:[%s1831 + $0x1c] sm:$0xf]
    %v1840 = vld [vmem:[%s1831 + $0x20] sm:$0xf]
    %v1841 = vld [vmem:[%s1831 + $0x24] sm:$0xf]
    %v1842 = vld [vmem:[%s1831 + $0x28] sm:$0xf]
    %v1843 = vld [vmem:[%s1831 + $0x2c] sm:$0xf]
    %v1844 = vld [vmem:[%s1831 + $0x30] sm:$0xf]
    %v1845 = vld [vmem:[%s1831 + $0x34] sm:$0xf]
    %v1846 = vld [vmem:[%s1831 + $0x38] sm:$0xf]
    %v1847 = vld [vmem:[%s1831 + $0x3c] sm:$0xf]
    %s1848 = scalar_lea.vmem %s20, 1
    %v1849 = vld [vmem:[%s1848] sm:$0x1]
    %v1851 = vperm.slane %v1849, 0
    %v1869 = vunpack.c.l.b16 %v1832
    %v1870 = vunpack.c.l.b16 %v1833
    %v1871 = vunpack.c.l.b16 %v1834
    %v1872 = vunpack.c.l.b16 %v1835
    %v1873 = vunpack.c.l.b16 %v1836
    %v1874 = vunpack.c.l.b16 %v1837
    %v1875 = vunpack.c.l.b16 %v1838
    %v1876 = vunpack.c.l.b16 %v1839
    %v1877 = vunpack.c.l.b16 %v1840
    %v1878 = vunpack.c.l.b16 %v1841
    %v1879 = vunpack.c.l.b16 %v1842
    %v1880 = vunpack.c.l.b16 %v1843
    %v1881 = vunpack.c.l.b16 %v1844
    %v1882 = vunpack.c.l.b16 %v1845
    %v1883 = vunpack.c.l.b16 %v1846
    %v1884 = vunpack.c.l.b16 %v1847
    %v1885 = vpack.c.b16 %v1870, %v1869
    %v1886 = vpack.c.b16 %v1872, %v1871
    %v1887 = vpack.c.b16 %v1874, %v1873
    %v1888 = vpack.c.b16 %v1876, %v1875
    %v1889 = vpack.c.b16 %v1878, %v1877
    %v1890 = vpack.c.b16 %v1880, %v1879
    %v1891 = vpack.c.b16 %v1882, %v1881
    %v1892 = vpack.c.b16 %v1884, %v1883
    %1901 = vmatpush.bf16.msra.mxu0 %v1892
    %1902 = vmatpush.bf16.msra.mxu0 %v1891
    %1903 = vmatpush.bf16.msra.mxu0 %v1890
    %1904 = vmatpush.bf16.msra.mxu0 %v1889
    %1905 = vmatpush.bf16.msra.mxu0 %v1888
    %1906 = vmatpush.bf16.msra.mxu0 %v1887
    %1907 = vmatpush.bf16.msra.mxu0 %v1886
    %1908 = vmatpush.bf16.msra.mxu0 %v1885
    %1909 = vmatmul.bf16.gmra.mxu0 %v1729
    %v1910 = vpop.f32.mrf.mxu0
    %v1911 = vadd.f32 %v1851, %v1910
    %v1912 = vpop.f32.mrf.mxu0
    %v1913 = vadd.f32 %v1851, %v1912
    %1914 = vdwg.mxu0
    %v1915 = vmax.f32 %v1911, 0.0
    %v1916 = vmax.f32 %v1913, 0.0
    %v1917 = vadd.f32 %v1829, %v1915
    %v1918 = vadd.f32 %v1830, %v1916
    %s1919 = scalar_lea.vmem [#allocation26], 1
    %v1920 = vld [vmem:[%s1919] sm:$0x1]
    %v1922 = vperm.slane %v1920, 0
    %v1924 = vmul.f32 %v1917, %v1922
    %v1925 = vmul.f32 %v1918, %v1922
    %s1926 = scalar_lea.vmem %s22, 1
    %v1927 = vld [vmem:[%s1926] sm:$0x1]
    %v1929 = vperm.slane %v1927, 0
    %v1931 = vadd.f32 %v1924, %v1929
    %v1932 = vadd.f32 %v1925, %v1929
    %s1933 = scalar_lea.vmem [#allocation28], 16
    %1934 = vst [vmem:[%s1933] sm:$0xff] %v1931
    %1935 = vst [vmem:[%s1933 + $0x8] sm:$0xff] %v1932
    %v1936 = vpack.c.bf16 %v1568, %v1567
    %1937 = vmatpush.bf16.msra.mxu0 0
    %1938 = vmatpush.bf16.msra.mxu0 0
    %1939 = vmatpush.bf16.msra.mxu0 0
    %1940 = vmatpush.bf16.msra.mxu0 0
    %1941 = vmatpush.bf16.msra.mxu0 0
    %1942 = vmatpush.bf16.msra.mxu0 0
    %1943 = vmatpush.bf16.msra.mxu0 0
    %1944 = vmatpush.bf16.msra.mxu0 %v1936
    %1945 = vmatmul.bf16.gmra.mxu0 %v637
    %v1946 = vpop.f32.mrf.mxu0
    %v1947 = vadd.f32 0.0, %v1946
    %v1948 = vpop.f32.mrf.mxu0
    %v1949 = vadd.f32 0.0, %v1948
    %1950 = vdwg.mxu0
    %v1951 = vpack.c.bf16 %v1949, %v1947
    %s1952 = scalar_lea.vmem [#allocation20], 128
    %v1953 = vld [vmem:[%s1952] sm:$0xf]
    %v1954 = vld [vmem:[%s1952 + $0x4] sm:$0xf]
    %v1955 = vld [vmem:[%s1952 + $0x8] sm:$0xf]
    %v1956 = vld [vmem:[%s1952 + $0xc] sm:$0xf]
    %v1957 = vld [vmem:[%s1952 + $0x10] sm:$0xf]
    %v1958 = vld [vmem:[%s1952 + $0x14] sm:$0xf]
    %v1959 = vld [vmem:[%s1952 + $0x18] sm:$0xf]
    %v1960 = vld [vmem:[%s1952 + $0x1c] sm:$0xf]
    %v1961 = vld [vmem:[%s1952 + $0x20] sm:$0xf]
    %v1962 = vld [vmem:[%s1952 + $0x24] sm:$0xf]
    %v1963 = vld [vmem:[%s1952 + $0x28] sm:$0xf]
    %v1964 = vld [vmem:[%s1952 + $0x2c] sm:$0xf]
    %v1965 = vld [vmem:[%s1952 + $0x30] sm:$0xf]
    %v1966 = vld [vmem:[%s1952 + $0x34] sm:$0xf]
    %v1967 = vld [vmem:[%s1952 + $0x38] sm:$0xf]
    %v1968 = vld [vmem:[%s1952 + $0x3c] sm:$0xf]
    %s1969 = scalar_lea.vmem %s12, 2
    %v1970 = vld [vmem:[%s1969] sm:$0x1]
    %v1972 = vperm.slane %v1970, 0
    %v1990 = vunpack.c.l.b16 %v1953
    %v1991 = vunpack.c.l.b16 %v1954
    %v1992 = vunpack.c.l.b16 %v1955
    %v1993 = vunpack.c.l.b16 %v1956
    %v1994 = vunpack.c.l.b16 %v1957
    %v1995 = vunpack.c.l.b16 %v1958
    %v1996 = vunpack.c.l.b16 %v1959
    %v1997 = vunpack.c.l.b16 %v1960
    %v1998 = vunpack.c.l.b16 %v1961
    %v1999 = vunpack.c.l.b16 %v1962
    %v2000 = vunpack.c.l.b16 %v1963
    %v2001 = vunpack.c.l.b16 %v1964
    %v2002 = vunpack.c.l.b16 %v1965
    %v2003 = vunpack.c.l.b16 %v1966
    %v2004 = vunpack.c.l.b16 %v1967
    %v2005 = vunpack.c.l.b16 %v1968
    %v2006 = vpack.c.b16 %v1991, %v1990
    %v2007 = vpack.c.b16 %v1993, %v1992
    %v2008 = vpack.c.b16 %v1995, %v1994
    %v2009 = vpack.c.b16 %v1997, %v1996
    %v2010 = vpack.c.b16 %v1999, %v1998
    %v2011 = vpack.c.b16 %v2001, %v2000
    %v2012 = vpack.c.b16 %v2003, %v2002
    %v2013 = vpack.c.b16 %v2005, %v2004
    %2022 = vmatpush.bf16.msra.mxu0 %v2013
    %2023 = vmatpush.bf16.msra.mxu0 %v2012
    %2024 = vmatpush.bf16.msra.mxu0 %v2011
    %2025 = vmatpush.bf16.msra.mxu0 %v2010
    %2026 = vmatpush.bf16.msra.mxu0 %v2009
    %2027 = vmatpush.bf16.msra.mxu0 %v2008
    %2028 = vmatpush.bf16.msra.mxu0 %v2007
    %2029 = vmatpush.bf16.msra.mxu0 %v2006
    %2030 = vmatmul.bf16.gmra.mxu0 %v1951
    %v2031 = vpop.f32.mrf.mxu0
    %v2032 = vadd.f32 %v1972, %v2031
    %v2033 = vpop.f32.mrf.mxu0
    %v2034 = vadd.f32 %v1972, %v2033
    %2035 = vdwg.mxu0
    %v2036 = vmax.f32 %v2032, 0.0
    %v2037 = vmax.f32 %v2034, 0.0
    %s2038 = scalar_lea.vmem [#allocation22], 128
    %v2039 = vld [vmem:[%s2038] sm:$0xf]
    %v2040 = vld [vmem:[%s2038 + $0x4] sm:$0xf]
    %v2041 = vld [vmem:[%s2038 + $0x8] sm:$0xf]
    %v2042 = vld [vmem:[%s2038 + $0xc] sm:$0xf]
    %v2043 = vld [vmem:[%s2038 + $0x10] sm:$0xf]
    %v2044 = vld [vmem:[%s2038 + $0x14] sm:$0xf]
    %v2045 = vld [vmem:[%s2038 + $0x18] sm:$0xf]
    %v2046 = vld [vmem:[%s2038 + $0x1c] sm:$0xf]
    %v2047 = vld [vmem:[%s2038 + $0x20] sm:$0xf]
    %v2048 = vld [vmem:[%s2038 + $0x24] sm:$0xf]
    %v2049 = vld [vmem:[%s2038 + $0x28] sm:$0xf]
    %v2050 = vld [vmem:[%s2038 + $0x2c] sm:$0xf]
    %v2051 = vld [vmem:[%s2038 + $0x30] sm:$0xf]
    %v2052 = vld [vmem:[%s2038 + $0x34] sm:$0xf]
    %v2053 = vld [vmem:[%s2038 + $0x38] sm:$0xf]
    %v2054 = vld [vmem:[%s2038 + $0x3c] sm:$0xf]
    %s2055 = scalar_lea.vmem %s14, 2
    %v2056 = vld [vmem:[%s2055] sm:$0x1]
    %v2058 = vperm.slane %v2056, 0
    %v2076 = vunpack.c.l.b16 %v2039
    %v2077 = vunpack.c.l.b16 %v2040
    %v2078 = vunpack.c.l.b16 %v2041
    %v2079 = vunpack.c.l.b16 %v2042
    %v2080 = vunpack.c.l.b16 %v2043
    %v2081 = vunpack.c.l.b16 %v2044
    %v2082 = vunpack.c.l.b16 %v2045
    %v2083 = vunpack.c.l.b16 %v2046
    %v2084 = vunpack.c.l.b16 %v2047
    %v2085 = vunpack.c.l.b16 %v2048
    %v2086 = vunpack.c.l.b16 %v2049
    %v2087 = vunpack.c.l.b16 %v2050
    %v2088 = vunpack.c.l.b16 %v2051
    %v2089 = vunpack.c.l.b16 %v2052
    %v2090 = vunpack.c.l.b16 %v2053
    %v2091 = vunpack.c.l.b16 %v2054
    %v2092 = vpack.c.b16 %v2077, %v2076
    %v2093 = vpack.c.b16 %v2079, %v2078
    %v2094 = vpack.c.b16 %v2081, %v2080
    %v2095 = vpack.c.b16 %v2083, %v2082
    %v2096 = vpack.c.b16 %v2085, %v2084
    %v2097 = vpack.c.b16 %v2087, %v2086
    %v2098 = vpack.c.b16 %v2089, %v2088
    %v2099 = vpack.c.b16 %v2091, %v2090
    %2108 = vmatpush.bf16.msra.mxu0 %v2099
    %2109 = vmatpush.bf16.msra.mxu0 %v2098
    %2110 = vmatpush.bf16.msra.mxu0 %v2097
    %2111 = vmatpush.bf16.msra.mxu0 %v2096
    %2112 = vmatpush.bf16.msra.mxu0 %v2095
    %2113 = vmatpush.bf16.msra.mxu0 %v2094
    %2114 = vmatpush.bf16.msra.mxu0 %v2093
    %2115 = vmatpush.bf16.msra.mxu0 %v2092
    %2116 = vmatmul.bf16.gmra.mxu0 %v1936
    %v2117 = vpop.f32.mrf.mxu0
    %v2118 = vadd.f32 %v2058, %v2117
    %v2119 = vpop.f32.mrf.mxu0
    %v2120 = vadd.f32 %v2058, %v2119
    %2121 = vdwg.mxu0
    %v2122 = vmax.f32 %v2118, 0.0
    %v2123 = vmax.f32 %v2120, 0.0
    %v2124 = vadd.f32 %v2036, %v2122
    %v2125 = vadd.f32 %v2037, %v2123
    %s2126 = scalar_lea.vmem %s15, 2
    %v2127 = vld [vmem:[%s2126] sm:$0x1]
    %v2129 = vperm.slane %v2127, 0
    %v2131 = vmul.f32 %v2124, %v2129
    %v2132 = vmul.f32 %v2125, %v2129
    %s2133 = scalar_lea.vmem %s16, 2
    %v2134 = vld [vmem:[%s2133] sm:$0x1]
    %v2136 = vperm.slane %v2134, 0
    %v2138 = vadd.f32 %v2131, %v2136
    %v2139 = vadd.f32 %v2132, %v2136
    %v2140 = vsel %vm909, %v2138, -1e+30
    %v2141 = vsel %vm910, %v2138, -1e+30
    %v2142 = vsel %vm911, %v2138, -1e+30
    %v2143 = vsel %vm912, %v2138, -1e+30
    %v2144 = vsel %vm913, %v2138, -1e+30
    %v2145 = vsel %vm914, %v2138, -1e+30
    %v2146 = vsel %vm915, %v2138, -1e+30
    %v2147 = vsel %vm916, %v2138, -1e+30
    %v2148 = vrot.slane %v2140, 4
    %v2149 = vmax.f32 %v2140, %v2148
    %v2150 = vrot.slane %v2149, 2
    %v2151 = vmax.f32 %v2149, %v2150
    %v2152 = vrot.slane %v2151, 1
    %v2153 = vmax.f32 %v2151, %v2152
    %v2154 = vrot.slane %v2141, 4
    %v2155 = vmax.f32 %v2141, %v2154
    %v2156 = vrot.slane %v2155, 2
    %v2157 = vmax.f32 %v2155, %v2156
    %v2158 = vrot.slane %v2157, 1
    %v2159 = vmax.f32 %v2157, %v2158
    %v2160 = vrot.slane %v2142, 4
    %v2161 = vmax.f32 %v2142, %v2160
    %v2162 = vrot.slane %v2161, 2
    %v2163 = vmax.f32 %v2161, %v2162
    %v2164 = vrot.slane %v2163, 1
    %v2165 = vmax.f32 %v2163, %v2164
    %v2166 = vrot.slane %v2143, 4
    %v2167 = vmax.f32 %v2143, %v2166
    %v2168 = vrot.slane %v2167, 2
    %v2169 = vmax.f32 %v2167, %v2168
    %v2170 = vrot.slane %v2169, 1
    %v2171 = vmax.f32 %v2169, %v2170
    %v2172 = vrot.slane %v2144, 4
    %v2173 = vmax.f32 %v2144, %v2172
    %v2174 = vrot.slane %v2173, 2
    %v2175 = vmax.f32 %v2173, %v2174
    %v2176 = vrot.slane %v2175, 1
    %v2177 = vmax.f32 %v2175, %v2176
    %v2178 = vrot.slane %v2145, 4
    %v2179 = vmax.f32 %v2145, %v2178
    %v2180 = vrot.slane %v2179, 2
    %v2181 = vmax.f32 %v2179, %v2180
    %v2182 = vrot.slane %v2181, 1
    %v2183 = vmax.f32 %v2181, %v2182
    %v2184 = vrot.slane %v2146, 4
    %v2185 = vmax.f32 %v2146, %v2184
    %v2186 = vrot.slane %v2185, 2
    %v2187 = vmax.f32 %v2185, %v2186
    %v2188 = vrot.slane %v2187, 1
    %v2189 = vmax.f32 %v2187, %v2188
    %v2190 = vrot.slane %v2147, 4
    %v2191 = vmax.f32 %v2147, %v2190
    %v2192 = vrot.slane %v2191, 2
    %v2193 = vmax.f32 %v2191, %v2192
    %v2194 = vrot.slane %v2193, 1
    %v2195 = vmax.f32 %v2193, %v2194
    %v2196 = vmax.f32 %v2153, -1e+30
    %v2197 = vmax.f32 %v2159, -1e+30
    %v2198 = vmax.f32 %v2165, -1e+30
    %v2199 = vmax.f32 %v2171, -1e+30
    %v2200 = vmax.f32 %v2177, -1e+30
    %v2201 = vmax.f32 %v2183, -1e+30
    %v2202 = vmax.f32 %v2189, -1e+30
    %v2203 = vmax.f32 %v2195, -1e+30
    %v2204 = vsel %vm1054, %v2139, -1e+30
    %v2205 = vsel %vm1055, %v2139, -1e+30
    %v2206 = vsel %vm1056, %v2139, -1e+30
    %v2207 = vsel %vm1057, %v2139, -1e+30
    %v2208 = vsel %vm1058, %v2139, -1e+30
    %v2209 = vsel %vm1059, %v2139, -1e+30
    %v2210 = vsel %vm1060, %v2139, -1e+30
    %v2211 = vsel %vm1061, %v2139, -1e+30
    %v2212 = vrot.slane %v2204, 4
    %v2213 = vmax.f32 %v2204, %v2212
    %v2214 = vrot.slane %v2213, 2
    %v2215 = vmax.f32 %v2213, %v2214
    %v2216 = vrot.slane %v2215, 1
    %v2217 = vmax.f32 %v2215, %v2216
    %v2218 = vrot.slane %v2205, 4
    %v2219 = vmax.f32 %v2205, %v2218
    %v2220 = vrot.slane %v2219, 2
    %v2221 = vmax.f32 %v2219, %v2220
    %v2222 = vrot.slane %v2221, 1
    %v2223 = vmax.f32 %v2221, %v2222
    %v2224 = vrot.slane %v2206, 4
    %v2225 = vmax.f32 %v2206, %v2224
    %v2226 = vrot.slane %v2225, 2
    %v2227 = vmax.f32 %v2225, %v2226
    %v2228 = vrot.slane %v2227, 1
    %v2229 = vmax.f32 %v2227, %v2228
    %v2230 = vrot.slane %v2207, 4
    %v2231 = vmax.f32 %v2207, %v2230
    %v2232 = vrot.slane %v2231, 2
    %v2233 = vmax.f32 %v2231, %v2232
    %v2234 = vrot.slane %v2233, 1
    %v2235 = vmax.f32 %v2233, %v2234
    %v2236 = vrot.slane %v2208, 4
    %v2237 = vmax.f32 %v2208, %v2236
    %v2238 = vrot.slane %v2237, 2
    %v2239 = vmax.f32 %v2237, %v2238
    %v2240 = vrot.slane %v2239, 1
    %v2241 = vmax.f32 %v2239, %v2240
    %v2242 = vrot.slane %v2209, 4
    %v2243 = vmax.f32 %v2209, %v2242
    %v2244 = vrot.slane %v2243, 2
    %v2245 = vmax.f32 %v2243, %v2244
    %v2246 = vrot.slane %v2245, 1
    %v2247 = vmax.f32 %v2245, %v2246
    %v2248 = vrot.slane %v2210, 4
    %v2249 = vmax.f32 %v2210, %v2248
    %v2250 = vrot.slane %v2249, 2
    %v2251 = vmax.f32 %v2249, %v2250
    %v2252 = vrot.slane %v2251, 1
    %v2253 = vmax.f32 %v2251, %v2252
    %v2254 = vrot.slane %v2211, 4
    %v2255 = vmax.f32 %v2211, %v2254
    %v2256 = vrot.slane %v2255, 2
    %v2257 = vmax.f32 %v2255, %v2256
    %v2258 = vrot.slane %v2257, 1
    %v2259 = vmax.f32 %v2257, %v2258
    %v2260 = vmax.f32 %v2217, -1e+30
    %v2261 = vmax.f32 %v2223, -1e+30
    %v2262 = vmax.f32 %v2229, -1e+30
    %v2263 = vmax.f32 %v2235, -1e+30
    %v2264 = vmax.f32 %v2241, -1e+30
    %v2265 = vmax.f32 %v2247, -1e+30
    %v2266 = vmax.f32 %v2253, -1e+30
    %v2267 = vmax.f32 %v2259, -1e+30
    %v2276 = vsel %vm1134, %v2197, %v2196
    %v2277 = vsel %vm1136, %v2198, %v2276
    %v2278 = vsel %vm1138, %v2199, %v2277
    %v2279 = vsel %vm1140, %v2200, %v2278
    %v2280 = vsel %vm1142, %v2201, %v2279
    %v2281 = vsel %vm1144, %v2202, %v2280
    %v2282 = vsel %vm1146, %v2203, %v2281
    %v2292 = vsel %vm1134, %v2261, %v2260
    %v2293 = vsel %vm1136, %v2262, %v2292
    %v2294 = vsel %vm1138, %v2263, %v2293
    %v2295 = vsel %vm1140, %v2264, %v2294
    %v2296 = vsel %vm1142, %v2265, %v2295
    %v2297 = vsel %vm1144, %v2266, %v2296
    %v2298 = vsel %vm1146, %v2267, %v2297
    %v2300 = vpack.c.bf16 %v2298, %v2282
    %2301 = vmatpush.bf16.msra.mxu0 0
    %2302 = vmatpush.bf16.msra.mxu0 0
    %2303 = vmatpush.bf16.msra.mxu0 0
    %2304 = vmatpush.bf16.msra.mxu0 0
    %2305 = vmatpush.bf16.msra.mxu0 0
    %2306 = vmatpush.bf16.msra.mxu0 0
    %2307 = vmatpush.bf16.msra.mxu0 0
    %2308 = vmatpush.bf16.msra.mxu0 %v2300
    %2309 = vmatmul.bf16.gmra.mxu0 %v637
    %v2310 = vpop.f32.mrf.mxu0
    %v2311 = vadd.f32 0.0, %v2310
    %v2312 = vpop.f32.mrf.mxu0
    %v2313 = vadd.f32 0.0, %v2312
    %2314 = vdwg.mxu0
    %v2315 = vpack.c.bf16 %v2313, %v2311
    %s2316 = scalar_lea.vmem [#allocation23], 128
    %v2317 = vld [vmem:[%s2316] sm:$0xf]
    %v2318 = vld [vmem:[%s2316 + $0x4] sm:$0xf]
    %v2319 = vld [vmem:[%s2316 + $0x8] sm:$0xf]
    %v2320 = vld [vmem:[%s2316 + $0xc] sm:$0xf]
    %v2321 = vld [vmem:[%s2316 + $0x10] sm:$0xf]
    %v2322 = vld [vmem:[%s2316 + $0x14] sm:$0xf]
    %v2323 = vld [vmem:[%s2316 + $0x18] sm:$0xf]
    %v2324 = vld [vmem:[%s2316 + $0x1c] sm:$0xf]
    %v2325 = vld [vmem:[%s2316 + $0x20] sm:$0xf]
    %v2326 = vld [vmem:[%s2316 + $0x24] sm:$0xf]
    %v2327 = vld [vmem:[%s2316 + $0x28] sm:$0xf]
    %v2328 = vld [vmem:[%s2316 + $0x2c] sm:$0xf]
    %v2329 = vld [vmem:[%s2316 + $0x30] sm:$0xf]
    %v2330 = vld [vmem:[%s2316 + $0x34] sm:$0xf]
    %v2331 = vld [vmem:[%s2316 + $0x38] sm:$0xf]
    %v2332 = vld [vmem:[%s2316 + $0x3c] sm:$0xf]
    %s2333 = scalar_lea.vmem %s18, 2
    %v2334 = vld [vmem:[%s2333] sm:$0x1]
    %v2336 = vperm.slane %v2334, 0
    %v2354 = vunpack.c.l.b16 %v2317
    %v2355 = vunpack.c.l.b16 %v2318
    %v2356 = vunpack.c.l.b16 %v2319
    %v2357 = vunpack.c.l.b16 %v2320
    %v2358 = vunpack.c.l.b16 %v2321
    %v2359 = vunpack.c.l.b16 %v2322
    %v2360 = vunpack.c.l.b16 %v2323
    %v2361 = vunpack.c.l.b16 %v2324
    %v2362 = vunpack.c.l.b16 %v2325
    %v2363 = vunpack.c.l.b16 %v2326
    %v2364 = vunpack.c.l.b16 %v2327
    %v2365 = vunpack.c.l.b16 %v2328
    %v2366 = vunpack.c.l.b16 %v2329
    %v2367 = vunpack.c.l.b16 %v2330
    %v2368 = vunpack.c.l.b16 %v2331
    %v2369 = vunpack.c.l.b16 %v2332
    %v2370 = vpack.c.b16 %v2355, %v2354
    %v2371 = vpack.c.b16 %v2357, %v2356
    %v2372 = vpack.c.b16 %v2359, %v2358
    %v2373 = vpack.c.b16 %v2361, %v2360
    %v2374 = vpack.c.b16 %v2363, %v2362
    %v2375 = vpack.c.b16 %v2365, %v2364
    %v2376 = vpack.c.b16 %v2367, %v2366
    %v2377 = vpack.c.b16 %v2369, %v2368
    %2386 = vmatpush.bf16.msra.mxu0 %v2377
    %2387 = vmatpush.bf16.msra.mxu0 %v2376
    %2388 = vmatpush.bf16.msra.mxu0 %v2375
    %2389 = vmatpush.bf16.msra.mxu0 %v2374
    %2390 = vmatpush.bf16.msra.mxu0 %v2373
    %2391 = vmatpush.bf16.msra.mxu0 %v2372
    %2392 = vmatpush.bf16.msra.mxu0 %v2371
    %2393 = vmatpush.bf16.msra.mxu0 %v2370
    %2394 = vmatmul.bf16.gmra.mxu0 %v2315
    %v2395 = vpop.f32.mrf.mxu0
    %v2396 = vadd.f32 %v2336, %v2395
    %v2397 = vpop.f32.mrf.mxu0
    %v2398 = vadd.f32 %v2336, %v2397
    %2399 = vdwg.mxu0
    %v2400 = vmax.f32 %v2396, 0.0
    %v2401 = vmax.f32 %v2398, 0.0
    %s2402 = scalar_lea.vmem [#allocation25], 128
    %v2403 = vld [vmem:[%s2402] sm:$0xf]
    %v2404 = vld [vmem:[%s2402 + $0x4] sm:$0xf]
    %v2405 = vld [vmem:[%s2402 + $0x8] sm:$0xf]
    %v2406 = vld [vmem:[%s2402 + $0xc] sm:$0xf]
    %v2407 = vld [vmem:[%s2402 + $0x10] sm:$0xf]
    %v2408 = vld [vmem:[%s2402 + $0x14] sm:$0xf]
    %v2409 = vld [vmem:[%s2402 + $0x18] sm:$0xf]
    %v2410 = vld [vmem:[%s2402 + $0x1c] sm:$0xf]
    %v2411 = vld [vmem:[%s2402 + $0x20] sm:$0xf]
    %v2412 = vld [vmem:[%s2402 + $0x24] sm:$0xf]
    %v2413 = vld [vmem:[%s2402 + $0x28] sm:$0xf]
    %v2414 = vld [vmem:[%s2402 + $0x2c] sm:$0xf]
    %v2415 = vld [vmem:[%s2402 + $0x30] sm:$0xf]
    %v2416 = vld [vmem:[%s2402 + $0x34] sm:$0xf]
    %v2417 = vld [vmem:[%s2402 + $0x38] sm:$0xf]
    %v2418 = vld [vmem:[%s2402 + $0x3c] sm:$0xf]
    %s2419 = scalar_lea.vmem %s20, 2
    %v2420 = vld [vmem:[%s2419] sm:$0x1]
    %v2422 = vperm.slane %v2420, 0
    %v2440 = vunpack.c.l.b16 %v2403
    %v2441 = vunpack.c.l.b16 %v2404
    %v2442 = vunpack.c.l.b16 %v2405
    %v2443 = vunpack.c.l.b16 %v2406
    %v2444 = vunpack.c.l.b16 %v2407
    %v2445 = vunpack.c.l.b16 %v2408
    %v2446 = vunpack.c.l.b16 %v2409
    %v2447 = vunpack.c.l.b16 %v2410
    %v2448 = vunpack.c.l.b16 %v2411
    %v2449 = vunpack.c.l.b16 %v2412
    %v2450 = vunpack.c.l.b16 %v2413
    %v2451 = vunpack.c.l.b16 %v2414
    %v2452 = vunpack.c.l.b16 %v2415
    %v2453 = vunpack.c.l.b16 %v2416
    %v2454 = vunpack.c.l.b16 %v2417
    %v2455 = vunpack.c.l.b16 %v2418
    %v2456 = vpack.c.b16 %v2441, %v2440
    %v2457 = vpack.c.b16 %v2443, %v2442
    %v2458 = vpack.c.b16 %v2445, %v2444
    %v2459 = vpack.c.b16 %v2447, %v2446
    %v2460 = vpack.c.b16 %v2449, %v2448
    %v2461 = vpack.c.b16 %v2451, %v2450
    %v2462 = vpack.c.b16 %v2453, %v2452
    %v2463 = vpack.c.b16 %v2455, %v2454
    %2472 = vmatpush.bf16.msra.mxu0 %v2463
    %2473 = vmatpush.bf16.msra.mxu0 %v2462
    %2474 = vmatpush.bf16.msra.mxu0 %v2461
    %2475 = vmatpush.bf16.msra.mxu0 %v2460
    %2476 = vmatpush.bf16.msra.mxu0 %v2459
    %2477 = vmatpush.bf16.msra.mxu0 %v2458
    %2478 = vmatpush.bf16.msra.mxu0 %v2457
    %2479 = vmatpush.bf16.msra.mxu0 %v2456
    %2480 = vmatmul.bf16.gmra.mxu0 %v2300
    %v2481 = vpop.f32.mrf.mxu0
    %v2482 = vadd.f32 %v2422, %v2481
    %v2483 = vpop.f32.mrf.mxu0
    %v2484 = vadd.f32 %v2422, %v2483
    %2485 = vdwg.mxu0
    %v2486 = vmax.f32 %v2482, 0.0
    %v2487 = vmax.f32 %v2484, 0.0
    %v2488 = vadd.f32 %v2400, %v2486
    %v2489 = vadd.f32 %v2401, %v2487
    %s2490 = scalar_lea.vmem [#allocation26], 2
    %v2491 = vld [vmem:[%s2490] sm:$0x1]
    %v2493 = vperm.slane %v2491, 0
    %v2495 = vmul.f32 %v2488, %v2493
    %v2496 = vmul.f32 %v2489, %v2493
    %s2497 = scalar_lea.vmem %s22, 2
    %v2498 = vld [vmem:[%s2497] sm:$0x1]
    %v2500 = vperm.slane %v2498, 0
    %v2502 = vadd.f32 %v2495, %v2500
    %v2503 = vadd.f32 %v2496, %v2500
    %s2504 = scalar_lea.vmem [#allocation28], 32
    %2505 = vst [vmem:[%s2504] sm:$0xff] %v2502
    %2506 = vst [vmem:[%s2504 + $0x8] sm:$0xff] %v2503
    // Predicated region
    $region158: #{tpu_custom_call.1} parent=1 // pred_check
      _
    $region159: #{tpu_custom_call.1} parent=1 // pred_check_branch
      %2508 = sbr.rel (0) target = $region161
    $region160: #{tpu_custom_call.1} parent=1 // pred_region
      %2510 = vsyncadd [#allocation4], 0
      %s2511 = sshll.u32 [#allocation28], 4
      %s2512 = int_to_ptr.vmem [resolvable:$true] %s2511
      %s2513 = sshll.u32 %s23, 4
      %s2514 = int_to_ptr.hbm [resolvable:$true] %s2513
      %2519 = dma.vmem_to_hbm [thread:$0]  %s2512, 768, %s2514, [#allocation4], 128, 128, 8
    $region161: #{tpu_custom_call.1} parent=1 // pred_fallthru
      _
    // Predicated region
    $region162: #{tpu_custom_call.1} parent=1 // pred_check
      _
    $region163: #{tpu_custom_call.1} parent=1 // pred_check_branch
      %2521 = sbr.rel (0) target = $region165
    $region164: #{tpu_custom_call.1} parent=1 // pred_region
      %2523 = dma.done [#allocation4], 768
    $region165: #{tpu_custom_call.1} parent=1 // pred_fallthru
      _
    %2524 = vsyncpa [#allocation3], 1
    %2525 = vsyncpa [#allocation6], 1
    %2526 = vsyncpa [#allocation9], 1
    %2527 = vsyncpa [#allocation12], 1
    %2528 = vsyncpa [#allocation15], 1
    %2529 = vsyncpa [#allocation18], 1
    %2530 = vsyncpa [#allocation21], 1
    %2531 = vsyncpa [#allocation24], 1
    %2532 = vsyncpa [#allocation27], 1
    %2533 = vsyncpa [#allocation4], 1

</llo_original>
